<compile_context>
chip_gen: v5e
topology: v5e:2x2
jax: 0.10.0
libtpu: 0.0.40
codegen_flags: <defaults>
</compile_context>

<pallas_src>
import functools
import math

import jax
import jax.numpy as jnp
from jax.experimental import pallas as pl
from jax.experimental.pallas import tpu as pltpu


FEAT1 = 512            # ResNet18 feature width
FEAT2 = 1408           # "EfficientNetB2" feature width (per class name)
FEAT_TOTAL = FEAT1 + FEAT2   # 1920 = 15 * 128 (lane-dense)
_LANE = 128
_HW_TILE_CAP = 512     # rows per grid step; bounds the (HW_TILE, 1920) f32 intermediate


def _round_up(x, m):
    return ((x + m - 1) // m) * m


# --------------------------------------------------------------------------
# Fused Pallas kernel: both backbones + GAP + classification head
# --------------------------------------------------------------------------
def _fused_ensemble_kernel(patches_ref, wc_ref, bc_ref, wh_ref, bh_ref,
                           logits_ref, acc_ref, *, hw_total, hw_tile):
    """One grid step = (one batch element, one HW chunk).

    patches_ref: (1, hw_tile, K)  bf16  im2col patch chunk for this image
    wc_ref:      (K, F)           bf16  concatenated conv weights of BOTH backbones
    bc_ref:      (1, F)           f32   concatenated conv bias
    wh_ref:      (F, NCP)         f32   head weight (num_classes lane-padded to 128)
    bh_ref:      (1, NCP)         f32   head bias (padded)
    logits_ref:  (1, 1, NCP)      f32   output logits (written at last HW step)
    acc_ref:     (1, F)           f32   sum-of-ReLU accumulator (VMEM scratch)
    """
    hw_i = pl.program_id(1)

    @pl.when(hw_i == 0)
    def _():
        acc_ref[...] = jnp.zeros_like(acc_ref)

    p = patches_ref[0]                                                 # (hw_tile, K)
    y = jnp.dot(p, wc_ref[...], preferred_element_type=jnp.float32)    # (hw_tile, F)
    y = jnp.maximum(y + bc_ref[...], 0.0)                              # bias + ReLU, f32

    if hw_total % hw_tile != 0:
        # Mask rows past the true H*W: zero-padded patch rows would otherwise
        # contribute ReLU(bias) to the pooled sum.
        row = jax.lax.broadcasted_iota(jnp.int32, (hw_tile, 1), 0)
        y = jnp.where(row < (hw_total - hw_i * hw_tile), y, 0.0)

    acc_ref[...] += jnp.sum(y, axis=0, keepdims=True)                  # (1, F)

    @pl.when(hw_i == pl.num_programs(1) - 1)
    def _():
        # Global average pool, then the classification head (dropout = identity
        # at inference). Output is lane-dense (NCP = 128 multiple).
        feats = acc_ref[...] * (1.0 / float(hw_total))                 # (1, F)
        logits = jnp.dot(feats, wh_ref[...], preferred_element_type=jnp.float32)
        logits_ref[0] = logits + bh_ref[...]


# --------------------------------------------------------------------------
# Wrapper
# --------------------------------------------------------------------------
def _im2col_3x3(x_nhwc):
    """3x3, stride 1, pad 1 patch extraction. (B,H,W,C) -> (B, H*W, 9*C).

    Patch-feature ordering is (kh, kw, cin); conv weights must be reshaped from
    PyTorch (Cout,Cin,3,3) as .transpose(2,3,1,0).reshape(9*Cin, Cout) to match.
    """
    B, H, W, C = x_nhwc.shape
    xp = jnp.pad(x_nhwc, ((0, 0), (1, 1), (1, 1), (0, 0)))
    taps = []
    for dh in range(3):
        for dw in range(3):
            taps.append(xp[:, dh:dh + H, dw:dw + W, :])                # (B,H,W,C)
    p = jnp.stack(taps, axis=3)                                        # (B,H,W,9,C)
    return p.reshape(B, H * W, 9 * C)


def ensemble_forward_impl(params, x):
    """x: (B, Cin, H, W) float32 NCHW. Returns logits (B, num_classes)."""
    B, Cin, H, W = x.shape
    K = 9 * Cin
    HW = H * W
    F = FEAT_TOTAL
    NC = params["head_b"].shape[0]
    NCP = _round_up(max(NC, _LANE), _LANE)

    # ---- fuse both backbones: one (K, 1920) conv weight, one (1920,) bias ----
    wc = jnp.concatenate([params["bb1_w"], params["bb2_w"]], axis=1).astype(jnp.bfloat16)
    bc2d = jnp.concatenate([params["bb1_b"], params["bb2_b"]], axis=0)
    bc2d = bc2d.reshape(1, F).astype(jnp.float32)

    # ---- lane-dense head weights (pad num_classes up to a multiple of 128) ----
    wh = jnp.pad(params["head_w"], ((0, 0), (0, NCP - NC))).astype(jnp.float32)
    bh = jnp.pad(params["head_b"], (0, NCP - NC)).reshape(1, NCP).astype(jnp.float32)

    # ---- im2col patches in bf16 (halves HBM bytes of the dominant stream) ----
    x_nhwc = jnp.transpose(x, (0, 2, 3, 1)).astype(jnp.bfloat16)
    patches = _im2col_3x3(x_nhwc)                                      # (B, HW, K)

    # HW tiling: biggest row block that keeps the (hw_tile, 1920) f32 intermediate
    # well under the scoped VMEM limit on every generation (incl. v7x 64 MiB).
    hw_tile = min(_round_up(HW, 8), _HW_TILE_CAP)
    num_hw = math.ceil(HW / hw_tile)
    hw_pad = num_hw * hw_tile - HW
    if hw_pad:
        patches = jnp.pad(patches, ((0, 0), (0, hw_pad), (0, 0)))

    kernel = functools.partial(_fused_ensemble_kernel, hw_total=HW, hw_tile=hw_tile)

    out = pl.pallas_call(
        kernel,
        out_shape=jax.ShapeDtypeStruct((B, 1, NCP), jnp.float32),
        grid_spec=pltpu.PrefetchScalarGridSpec(
            num_scalar_prefetch=0,
            grid=(B, num_hw),
            in_specs=[
                pl.BlockSpec((1, hw_tile, K), lambda b, h: (b, h, 0)),  # patches
                pl.BlockSpec((K, F), lambda b, h: (0, 0)),              # fused conv W
                pl.BlockSpec((1, F), lambda b, h: (0, 0)),              # fused conv b
                pl.BlockSpec((F, NCP), lambda b, h: (0, 0)),            # head W
                pl.BlockSpec((1, NCP), lambda b, h: (0, 0)),            # head b
            ],
            out_specs=pl.BlockSpec((1, 1, NCP), lambda b, h: (b, 0, 0)),
            scratch_shapes=[pltpu.VMEM((1, F), jnp.float32)],
        ),
        compiler_params=pltpu.CompilerParams(
            dimension_semantics=("parallel", "arbitrary"),
            vmem_limit_bytes=32 * 1024 * 1024,
        ),
    )(patches, wc, bc2d, wh, bh)

    return out.reshape(B, NCP)[:, :NC]


ensemble_forward = jax.jit(ensemble_forward_impl)


# --------------------------------------------------------------------------
# Params (stand-in for the PyTorch weights)
# --------------------------------------------------------------------------
def init_params(key, in_chs=3, num_classes=10):
    k1, k2, k3, k4, k5, k6 = jax.random.split(key, 6)
    K = 9 * in_chs
    return {
        "bb1_w": jax.random.normal(k1, (K, FEAT1), jnp.float32) * 0.05,
        "bb1_b": jax.random.normal(k2, (FEAT1,), jnp.float32) * 0.01,
        "bb2_w": jax.random.normal(k3, (K, FEAT2), jnp.float32) * 0.05,
        "bb2_b": jax.random.normal(k4, (FEAT2,), jnp.float32) * 0.01,
        "head_w": jax.random.normal(k5, (FEAT1 + FEAT2, num_classes), jnp.float32) * 0.02,
        "head_b": jax.random.normal(k6, (num_classes,), jnp.float32) * 0.01,
    }


if __name__ == "__main__":
    key = jax.random.PRNGKey(0)
    pkey, xkey = jax.random.split(key)

    num_classes = 10
    B, C, H, W = 2, 3, 16, 16
    params = init_params(pkey, in_chs=C, num_classes=num_classes)
    x = jax.random.normal(xkey, (B, C, H, W), jnp.float32)

    out = ensemble_forward(params, x)
    out = jax.block_until_ready(out)
    assert out.shape == (B, num_classes), out.shape
    assert bool(jnp.all(jnp.isfinite(out)))
    print("KERNEL_OK")
</pallas_src>

<mosaic_0001>
module attributes {stable_mosaic.version = 11 : i64} {
  func.func @_fused_ensemble_kernel(%arg0: i32, %arg1: i32, %arg2: memref<1x256x27xbf16, #tpu.memory_space<vmem>>, %arg3: memref<27x1920xbf16, #tpu.memory_space<vmem>>, %arg4: memref<1x1920xf32, #tpu.memory_space<vmem>>, %arg5: memref<1920x128xf32, #tpu.memory_space<vmem>>, %arg6: memref<1x128xf32, #tpu.memory_space<vmem>>, %arg7: memref<1x1x128xf32, #tpu.memory_space<vmem>>, %arg8: memref<1x1920xf32, #tpu.memory_space<vmem>>) attributes {dimension_semantics = [#tpu.dimension_semantics<parallel>, #tpu.dimension_semantics<arbitrary>], iteration_bounds = array<i64: 2, 1>, scalar_prefetch = 0 : i64, scratch_operands = 1 : i64, tpu.core_type = #tpu.core_type<tc>, window_params = [{transform_indices = @transform_0, window_bounds = array<i64: 1, 256, 27>}, {pipeline_mode = #tpu.pipeline_mode<synchronous>, transform_indices = @transform_1, window_bounds = array<i64: 27, 1920>}, {pipeline_mode = #tpu.pipeline_mode<synchronous>, transform_indices = @transform_2, window_bounds = array<i64: 1, 1920>}, {pipeline_mode = #tpu.pipeline_mode<synchronous>, transform_indices = @transform_3, window_bounds = array<i64: 1920, 128>}, {pipeline_mode = #tpu.pipeline_mode<synchronous>, transform_indices = @transform_4, window_bounds = array<i64: 1, 128>}, {transform_indices = @transform_5, window_bounds = array<i64: 1, 1, 128>}]} {
    %c0_i32 = arith.constant 0 : i32
    %0 = arith.cmpi eq, %arg1, %c0_i32 : i32
    %1 = arith.extui %0 : i1 to i32
    %c0_i32_0 = arith.constant 0 : i32
    %2 = arith.cmpi ne, %1, %c0_i32_0 : i32
    scf.if %2 {
      %cst_15 = arith.constant 0.000000e+00 : f32
      %20 = vector.broadcast %cst_15 : f32 to vector<1x1920xf32>
      %c0_16 = arith.constant 0 : index
      %c0_17 = arith.constant 0 : index
      %21 = vector.load %arg8[%c0_16, %c0_17] : memref<1x1920xf32, #tpu.memory_space<vmem>>, vector<1x1920xf32>
      tpu.vector_store %arg8[%c0_16, %c0_17], %20 {strides = array<i32>} : memref<1x1920xf32, #tpu.memory_space<vmem>>, vector<1x1920xf32>,
    } else {
    }
    %c0 = arith.constant 0 : index
    %c0_1 = arith.constant 0 : index
    %c0_2 = arith.constant 0 : index
    %3 = vector.load %arg2[%c0, %c0_1, %c0_2] : memref<1x256x27xbf16, #tpu.memory_space<vmem>>, vector<1x256x27xbf16>
    %4 = vector.shape_cast %3 : vector<1x256x27xbf16> to vector<256x27xbf16>
    %c0_3 = arith.constant 0 : index
    %c0_4 = arith.constant 0 : index
    %5 = vector.load %arg3[%c0_3, %c0_4] : memref<27x1920xbf16, #tpu.memory_space<vmem>>, vector<27x1920xbf16>
    %cst = arith.constant dense<0.000000e+00> : vector<256x1920xf32>
    %6 = tpu.matmul %4, %5, %cst {dimension_numbers = #tpu.dot_dimension_numbers<[1], [0], [0], [1], [0, 0, 1, 1], [], []>} : vector<256x27xbf16>, vector<27x1920xbf16>, vector<256x1920xf32> -> vector<256x1920xf32>
    %c0_5 = arith.constant 0 : index
    %c0_6 = arith.constant 0 : index
    %7 = vector.load %arg4[%c0_5, %c0_6] : memref<1x1920xf32, #tpu.memory_space<vmem>>, vector<1x1920xf32>
    %8 = vector.broadcast %7 : vector<1x1920xf32> to vector<256x1920xf32>
    %9 = arith.addf %6, %8 : vector<256x1920xf32>
    %cst_7 = arith.constant 0.000000e+00 : f32
    %10 = vector.broadcast %cst_7 : f32 to vector<256x1920xf32>
    %11 = arith.maximumf %9, %10 : vector<256x1920xf32>
    %c0_8 = arith.constant 0 : index
    %c0_9 = arith.constant 0 : index
    %12 = vector.load %arg8[%c0_8, %c0_9] : memref<1x1920xf32, #tpu.memory_space<vmem>>, vector<1x1920xf32>
    %cst_10 = arith.constant dense<0.000000e+00> : vector<1920xf32>
    %13 = vector.multi_reduction <add>, %11, %cst_10 [0] : vector<256x1920xf32> to vector<1920xf32>
    %14 = vector.shape_cast %13 : vector<1920xf32> to vector<1x1920xf32>
    %15 = arith.addf %12, %14 : vector<1x1920xf32>
    %c0_11 = arith.constant 0 : index
    %c0_12 = arith.constant 0 : index
    %16 = vector.load %arg8[%c0_11, %c0_12] : memref<1x1920xf32, #tpu.memory_space<vmem>>, vector<1x1920xf32>
    tpu.vector_store %arg8[%c0_11, %c0_12], %15 {strides = array<i32>} : memref<1x1920xf32, #tpu.memory_space<vmem>>, vector<1x1920xf32>,
    %c0_i32_13 = arith.constant 0 : i32
    %17 = arith.cmpi eq, %arg1, %c0_i32_13 : i32
    %18 = arith.extui %17 : i1 to i32
    %c0_i32_14 = arith.constant 0 : i32
    %19 = arith.cmpi ne, %18, %c0_i32_14 : i32
    scf.if %19 {
      %c0_15 = arith.constant 0 : index
      %c0_16 = arith.constant 0 : index
      %20 = vector.load %arg8[%c0_15, %c0_16] : memref<1x1920xf32, #tpu.memory_space<vmem>>, vector<1x1920xf32>
      %cst_17 = arith.constant 3.906250e-03 : f32
      %21 = vector.broadcast %cst_17 : f32 to vector<1x1920xf32>
      %22 = arith.mulf %20, %21 : vector<1x1920xf32>
      %c0_18 = arith.constant 0 : index
      %c0_19 = arith.constant 0 : index
      %23 = vector.load %arg5[%c0_18, %c0_19] : memref<1920x128xf32, #tpu.memory_space<vmem>>, vector<1920x128xf32>
      %cst_20 = arith.constant dense<0.000000e+00> : vector<1x128xf32>
      %24 = tpu.matmul %22, %23, %cst_20 {dimension_numbers = #tpu.dot_dimension_numbers<[1], [0], [0], [1], [0, 0, 1, 1], [], []>} : vector<1x1920xf32>, vector<1920x128xf32>, vector<1x128xf32> -> vector<1x128xf32>
      %c0_21 = arith.constant 0 : index
      %c0_22 = arith.constant 0 : index
      %25 = vector.load %arg6[%c0_21, %c0_22] : memref<1x128xf32, #tpu.memory_space<vmem>>, vector<1x128xf32>
      %26 = arith.addf %24, %25 : vector<1x128xf32>
      %c0_23 = arith.constant 0 : index
      %c0_24 = arith.constant 0 : index
      %c0_25 = arith.constant 0 : index
      %27 = vector.load %arg7[%c0_23, %c0_24, %c0_25] : memref<1x1x128xf32, #tpu.memory_space<vmem>>, vector<1x1x128xf32>
      %28 = vector.shape_cast %27 : vector<1x1x128xf32> to vector<1x128xf32>
      %29 = vector.shape_cast %26 : vector<1x128xf32> to vector<1x1x128xf32>
      tpu.vector_store %arg7[%c0_23, %c0_24, %c0_25], %29 {strides = array<i32>} : memref<1x1x128xf32, #tpu.memory_space<vmem>>, vector<1x1x128xf32>,
    } else {
    }
    return
  }
  func.func @transform_0(%arg0: i32, %arg1: i32) -> (i32, i32, i32) {
    %c0_i32 = arith.constant 0 : i32
    %c0_i32_0 = arith.constant 0 : i32
    return %arg0, %arg1, %c0_i32 : i32, i32, i32
  }
  func.func @transform_1(%arg0: i32, %arg1: i32) -> (i32, i32) {
    %c0_i32 = arith.constant 0 : i32
    %c0_i32_0 = arith.constant 0 : i32
    %c0_i32_1 = arith.constant 0 : i32
    return %c0_i32, %c0_i32_0 : i32, i32
  }
  func.func @transform_2(%arg0: i32, %arg1: i32) -> (i32, i32) {
    %c0_i32 = arith.constant 0 : i32
    %c0_i32_0 = arith.constant 0 : i32
    %c0_i32_1 = arith.constant 0 : i32
    return %c0_i32, %c0_i32_0 : i32, i32
  }
  func.func @transform_3(%arg0: i32, %arg1: i32) -> (i32, i32) {
    %c0_i32 = arith.constant 0 : i32
    %c0_i32_0 = arith.constant 0 : i32
    %c0_i32_1 = arith.constant 0 : i32
    return %c0_i32, %c0_i32_0 : i32, i32
  }
  func.func @transform_4(%arg0: i32, %arg1: i32) -> (i32, i32) {
    %c0_i32 = arith.constant 0 : i32
    %c0_i32_0 = arith.constant 0 : i32
    %c0_i32_1 = arith.constant 0 : i32
    return %c0_i32, %c0_i32_0 : i32, i32
  }
  func.func @transform_5(%arg0: i32, %arg1: i32) -> (i32, i32, i32) {
    %c0_i32 = arith.constant 0 : i32
    %c0_i32_0 = arith.constant 0 : i32
    %c0_i32_1 = arith.constant 0 : i32
    return %arg0, %c0_i32, %c0_i32_0 : i32, i32, i32
  }
}

</mosaic_0001>

<llo_original>
// kernel: ensemble_forward_impl.1
$region0: #{ensemble_forward_impl.1}
  #allocation0 [shape = 'u32[]', space=smem, size = 0x4, offset = 0x4, fixed_abs, tag = 'smem constant byte address 0x4 - core index']
  #allocation1 [shape = 'u32[72,128]{1,0:T(1,128)}', space=vmem, size = 0x9000, scoped, tag = 'internal scratch']
  #allocation2 [shape = 'f32[1,1920]{1,0:T(1,128)}', space=vmem, size = 0x1e00, scoped, tag = 'scratch operand']
  %s0 = inlined_call_operand.vmem [shape: bf16[2,256,27], index: 0, kind: input, shape index: {}]
  %s1 = inlined_call_operand.vmem [shape: bf16[27,1920], index: 1, kind: input, shape index: {}]
  %s2 = inlined_call_operand.vmem [shape: f32[1,1920], index: 2, kind: input, shape index: {}]
  %s3 = inlined_call_operand.vmem [shape: f32[1920,128], index: 3, kind: input, shape index: {}]
  %s4 = inlined_call_operand.vmem [shape: f32[1,128], index: 4, kind: input, shape index: {}]
  %s5 = inlined_call_operand.hbm [shape: f32[2,1,128], index: 5, kind: output, shape index: {}]
  %s6 = sld [smem:[#allocation0]]
  $region61: #{ensemble_forward_impl.1} parent=0
    _
  %s8 = ssub.s32 1, %s6
  %s9 = scalar_select 0, %s8, %s6
  $region1: #{ensemble_forward_impl.1} parent=0
    #allocation3 [shape = 'u8[1024]{0}', space=vmem, size = 0x400, scoped, tag = 'output window, operand 0']
    #allocation4 [shape = 's32[2]{0}', space=sflag, size = 0x8, scoped, tag = 'scoped memory for ensemble_forward_impl.1']
    %10 = vsyncpa [#allocation4], 0
    %s11 = scalar_lea.sflag [#allocation4], 1
    %12 = vsyncpa %s11, 0
    loop: start=0, step=1, limit=4
    $region2: #{ensemble_forward_impl.1} parent=1 // loop_pre_header
      _
    $region3: #{ensemble_forward_impl.1} parent=1 // loop_header
      %s14 = sphi 0, %s18
      %p15 = scmp.ge.s32.totalorder %s14, 4
      %s21 = sphi 0, %s33
      %s22 = sphi 0, %s29
      %s23 = sphi 0, %s21
      %s24 = sphi 0, %s22
      %s25 = sphi 0, %s23
      %s26 = sphi 0, %s24
      %s38 = sphi 0, %s40
      %s41 = sphi 0, %s38
      %s42 = sphi 0, %s41
      %s58 = sphi 0, %s42
      %s62 = sphi 0, %s62
      %s64 = sphi 0, %s62
      %s65 = sphi 0, %s64
      %s79 = sphi 0, %s65
      %s83 = sphi 0, %s83
      %s85 = sphi 0, %s83
      %s86 = sphi 0, %s85
      %s100 = sphi 0, %s86
      %s104 = sphi 0, %s104
      %s106 = sphi 0, %s104
      %s107 = sphi 0, %s106
      %s121 = sphi 0, %s107
      %s125 = sphi 0, %s125
      %s127 = sphi 0, %s125
      %s128 = sphi 0, %s127
      %s142 = sphi 0, %s128
      %s148 = sphi 0, %s150
      %s151 = sphi 0, %s148
      %s152 = sphi 0, %s151
      %s168 = sphi 0, %s152
    $region4: #{ensemble_forward_impl.1} parent=1 // loop_header_branch
      %17 = sbr.rel (%p15) target = $region8
    $region5: #{ensemble_forward_impl.1} parent=1 // loop_body
      %s19 = ssub.s32 %s14, 1
      %s20 = ssub.s32 %s14, 2
      %s27 = sadd.s32 1, %s22
      %p28 = scmp.ge.s32.totalorder %s27, 1
      %s29 = scalar_select %p28, 0, %s27
      %s30 = sadd.s32 1, %s21
      %s31 = scalar_select %p28, %s30, %s21
      %p32 = scmp.ge.s32.totalorder %s31, 2
      %s33 = scalar_select %p32, 0, %s31
      %s34 = ssub.s32 %s21, %s33
      %s35 = ssub.s32 %s22, %s29
      %s36 = sor.u32 %s34, %s35
      %p37 = scmp.eq.s32.totalorder %s36, 0
      %s39 = sadd.s32 %s38, 1
      %s40 = scalar_select %p37, %s38, %s39
      %p43 = pneg %p37
      %p44 = scmp.eq.s32.totalorder %s14, 1
      %p45 = por %p43, %p44
      %p46 = scmp.ne.s32.totalorder %s38, %s41
      %p47 = scmp.eq.s32.totalorder %s14, 0
      %p48 = por %p46, %p47
      %p49 = scmp.ne.s32.totalorder %s38, %s41
      %p50 = scmp.eq.s32.totalorder %s19, 1
      %p51 = por %p49, %p50
      %p52 = scmp.ne.s32.totalorder %s41, %s42
      %p53 = scmp.eq.s32.totalorder %s19, 0
      %p54 = por %p52, %p53
      %p55 = scmp.ne.s32.totalorder %s41, %s42
      %p56 = scmp.eq.s32.totalorder %s20, 1
      %p57 = por %p55, %p56
      %p59 = scmp.ne.s32.totalorder %s42, %s58
      %p60 = scmp.eq.s32.totalorder %s20, 0
      %p61 = por %p59, %p60
      %s63 = sadd.s32 %s62, 1
      %p66 = scmp.eq.s32.totalorder %s14, 1
      %p67 = scmp.ne.s32.totalorder %s62, %s64
      %p68 = scmp.eq.s32.totalorder %s14, 0
      %p69 = por %p67, %p68
      %p70 = scmp.ne.s32.totalorder %s62, %s64
      %p71 = scmp.eq.s32.totalorder %s19, 1
      %p72 = por %p70, %p71
      %p73 = scmp.ne.s32.totalorder %s64, %s65
      %p74 = scmp.eq.s32.totalorder %s19, 0
      %p75 = por %p73, %p74
      %p76 = scmp.ne.s32.totalorder %s64, %s65
      %p77 = scmp.eq.s32.totalorder %s20, 1
      %p78 = por %p76, %p77
      %p80 = scmp.ne.s32.totalorder %s65, %s79
      %p81 = scmp.eq.s32.totalorder %s20, 0
      %p82 = por %p80, %p81
      %s84 = sadd.s32 %s83, 1
      %p87 = scmp.eq.s32.totalorder %s14, 1
      %p88 = scmp.ne.s32.totalorder %s83, %s85
      %p89 = scmp.eq.s32.totalorder %s14, 0
      %p90 = por %p88, %p89
      %p91 = scmp.ne.s32.totalorder %s83, %s85
      %p92 = scmp.eq.s32.totalorder %s19, 1
      %p93 = por %p91, %p92
      %p94 = scmp.ne.s32.totalorder %s85, %s86
      %p95 = scmp.eq.s32.totalorder %s19, 0
      %p96 = por %p94, %p95
      %p97 = scmp.ne.s32.totalorder %s85, %s86
      %p98 = scmp.eq.s32.totalorder %s20, 1
      %p99 = por %p97, %p98
      %p101 = scmp.ne.s32.totalorder %s86, %s100
      %p102 = scmp.eq.s32.totalorder %s20, 0
      %p103 = por %p101, %p102
      %s105 = sadd.s32 %s104, 1
      %p108 = scmp.eq.s32.totalorder %s14, 1
      %p109 = scmp.ne.s32.totalorder %s104, %s106
      %p110 = scmp.eq.s32.totalorder %s14, 0
      %p111 = por %p109, %p110
      %p112 = scmp.ne.s32.totalorder %s104, %s106
      %p113 = scmp.eq.s32.totalorder %s19, 1
      %p114 = por %p112, %p113
      %p115 = scmp.ne.s32.totalorder %s106, %s107
      %p116 = scmp.eq.s32.totalorder %s19, 0
      %p117 = por %p115, %p116
      %p118 = scmp.ne.s32.totalorder %s106, %s107
      %p119 = scmp.eq.s32.totalorder %s20, 1
      %p120 = por %p118, %p119
      %p122 = scmp.ne.s32.totalorder %s107, %s121
      %p123 = scmp.eq.s32.totalorder %s20, 0
      %p124 = por %p122, %p123
      %s126 = sadd.s32 %s125, 1
      %p129 = scmp.eq.s32.totalorder %s14, 1
      %p130 = scmp.ne.s32.totalorder %s125, %s127
      %p131 = scmp.eq.s32.totalorder %s14, 0
      %p132 = por %p130, %p131
      %p133 = scmp.ne.s32.totalorder %s125, %s127
      %p134 = scmp.eq.s32.totalorder %s19, 1
      %p135 = por %p133, %p134
      %p136 = scmp.ne.s32.totalorder %s127, %s128
      %p137 = scmp.eq.s32.totalorder %s19, 0
      %p138 = por %p136, %p137
      %p139 = scmp.ne.s32.totalorder %s127, %s128
      %p140 = scmp.eq.s32.totalorder %s20, 1
      %p141 = por %p139, %p140
      %p143 = scmp.ne.s32.totalorder %s128, %s142
      %p144 = scmp.eq.s32.totalorder %s20, 0
      %p145 = por %p143, %p144
      %s146 = ssub.s32 %s21, %s33
      %p147 = scmp.eq.s32.totalorder %s146, 0
      %s149 = sadd.s32 %s148, 1
      %s150 = scalar_select %p147, %s148, %s149
      %p153 = pneg %p147
      %p154 = scmp.eq.s32.totalorder %s14, 1
      %p155 = por %p153, %p154
      %p156 = scmp.ne.s32.totalorder %s148, %s151
      %p157 = scmp.eq.s32.totalorder %s14, 0
      %p158 = por %p156, %p157
      %p159 = scmp.ne.s32.totalorder %s148, %s151
      %p160 = scmp.eq.s32.totalorder %s19, 1
      %p161 = por %p159, %p160
      %p162 = scmp.ne.s32.totalorder %s151, %s152
      %p163 = scmp.eq.s32.totalorder %s19, 0
      %p164 = por %p162, %p163
      %p165 = scmp.ne.s32.totalorder %s151, %s152
      %p166 = scmp.eq.s32.totalorder %s20, 1
      %p167 = por %p165, %p166
      %p169 = scmp.ne.s32.totalorder %s152, %s168
      %p170 = scmp.eq.s32.totalorder %s20, 0
      %p171 = por %p169, %p170
      %p172 = scmp.le.s32.totalorder 1, %s14
      %p173 = scmp.lt.s32.totalorder %s14, 3
      %p174 = pnand %p172, %p173
      %p175 = pneg %p174
      // Predicated region
      $region9: #{ensemble_forward_impl.1} parent=5 // pred_check
        _
      $region10: #{ensemble_forward_impl.1} parent=5 // pred_check_branch
        %177 = sbr.rel (%p174) target = $region12
      $region11: #{ensemble_forward_impl.1} parent=5 // pred_region
        %s178 = ssub.s32 %s14, 1
        // Predicated region
        $region13: #{ensemble_forward_impl.1} parent=11 // pred_check
          %p179 = pneg %p75
        $region14: #{ensemble_forward_impl.1} parent=11 // pred_check_branch
          %181 = sbr.rel (%p179) target = $region16
        $region15: #{ensemble_forward_impl.1} parent=11 // pred_region
          _
        $region16: #{ensemble_forward_impl.1} parent=11 // pred_fallthru
          _
        // Predicated region
        $region17: #{ensemble_forward_impl.1} parent=11 // pred_check
          %p182 = pneg %p96
        $region18: #{ensemble_forward_impl.1} parent=11 // pred_check_branch
          %184 = sbr.rel (%p182) target = $region20
        $region19: #{ensemble_forward_impl.1} parent=11 // pred_region
          _
        $region20: #{ensemble_forward_impl.1} parent=11 // pred_fallthru
          _
        // Predicated region
        $region21: #{ensemble_forward_impl.1} parent=11 // pred_check
          %p185 = pneg %p117
        $region22: #{ensemble_forward_impl.1} parent=11 // pred_check_branch
          %187 = sbr.rel (%p185) target = $region24
        $region23: #{ensemble_forward_impl.1} parent=11 // pred_region
          _
        $region24: #{ensemble_forward_impl.1} parent=11 // pred_fallthru
          _
        // Predicated region
        $region25: #{ensemble_forward_impl.1} parent=11 // pred_check
          %p188 = pneg %p138
        $region26: #{ensemble_forward_impl.1} parent=11 // pred_check_branch
          %190 = sbr.rel (%p188) target = $region28
        $region27: #{ensemble_forward_impl.1} parent=11 // pred_region
          _
        $region28: #{ensemble_forward_impl.1} parent=11 // pred_fallthru
          _
      $region12: #{ensemble_forward_impl.1} parent=5 // pred_fallthru
        _
      %p191 = scmp.lt.s32.totalorder %s14, 2
      // Predicated region
      $region29: #{ensemble_forward_impl.1} parent=5 // pred_check
        %p192 = pneg %p191
      $region30: #{ensemble_forward_impl.1} parent=5 // pred_check_branch
        %194 = sbr.rel (%p192) target = $region32
      $region31: #{ensemble_forward_impl.1} parent=5 // pred_region
        // Predicated region
        $region33: #{ensemble_forward_impl.1} parent=31 // pred_check
          %p195 = pneg %p48
        $region34: #{ensemble_forward_impl.1} parent=31 // pred_check_branch
          %197 = sbr.rel (%p195) target = $region36
        $region35: #{ensemble_forward_impl.1} parent=31 // pred_region
          %s198 = smul.u32 32, %s22
          %p199 = scmp.lt.s32.totalorder %s21, 1
          %s200 = scalar_select %p199, %s21, 1
          %p201 = scmp.lt.s32.totalorder %s198, 31
          %s202 = scalar_select %p201, %s198, 31
          %s203 = smul.addr %s200, 32
          %s204 = sadd.s32 %s202, %s203
          %s205 = smul.addr %s204, 4
          %s206 = scalar_lea.vmem %s0, %s205
          %s207 = smul.u32 32, %s22
        $region36: #{ensemble_forward_impl.1} parent=31 // pred_fallthru
          _
      $region32: #{ensemble_forward_impl.1} parent=5 // pred_fallthru
        _
      %p208 = scmp.le.s32.totalorder 1, %s14
      %p209 = scmp.lt.s32.totalorder %s14, 3
      %p210 = pnand %p208, %p209
      %p211 = pneg %p210
      // Predicated region
      $region37: #{ensemble_forward_impl.1} parent=5 // pred_check
        _
      $region38: #{ensemble_forward_impl.1} parent=5 // pred_check_branch
        %213 = sbr.rel (%p210) target = $region40
      $region39: #{ensemble_forward_impl.1} parent=5 // pred_region
        %s214 = ssub.s32 %s14, 1
        %s215 = smul.u32 32, %s24
        %p216 = scmp.lt.s32.totalorder %s23, 1
        %s217 = scalar_select %p216, %s23, 1
        %p218 = scmp.lt.s32.totalorder %s215, 31
        %s219 = scalar_select %p218, %s215, 31
        %s220 = smul.addr %s217, 32
        %s221 = sadd.s32 %s219, %s220
        %s222 = smul.addr %s221, 4
        %s223 = scalar_lea.vmem %s0, %s222
        %p224 = pneg %p54
        %p225 = pneg %p51
        %p226 = pneg %p75
        %p227 = pneg %p72
        %p228 = pneg %p96
        %p229 = pneg %p93
        %p230 = pneg %p117
        %p231 = pneg %p114
        %p232 = pneg %p138
        %p233 = pneg %p135
        %p234 = pneg %p164
        %p235 = pneg %p161
        %s236 = sand.u32 %s151, 1
        %s237 = scalar_lea.sflag [#allocation4], %s236
        %s238 = sand.u32 %s151, 1
        %s239 = scalar_lea.vmem [#allocation3], %s238
        %s240 = smul.u32 32, %s24
        %p241 = scmp.lt.s32.totalorder %s23, 1
        %s242 = scalar_select %p241, %s23, 1
        %p243 = scmp.lt.s32.totalorder %s240, 31
        %s244 = scalar_select %p243, %s240, 31
        %s245 = smul.addr %s242, 32
        %s246 = sadd.s32 %s244, %s245
        %s247 = smul.addr %s246, 4
        %s248 = scalar_lea.vmem %s0, %s247
        %s249 = smul.u32 32, %s24
        %p251 = scmp.eq.s32.totalorder %s24, 0
        // Predicated region
        $region41: #{ensemble_forward_impl.1} parent=39 // pred_check
          %p252 = pneg %p251
        $region42: #{ensemble_forward_impl.1} parent=39 // pred_check_branch
          %254 = sbr.rel (%p252) target = $region44
        $region43: #{ensemble_forward_impl.1} parent=39 // pred_region
          %255 = vst [vmem:[#allocation2] sm:$0xff] 0.0
          %v256 = vlaneseq
          %vm257 = vcmp.ge.s32.totalorder %v256, 0
          %vm258 = vcmp.lt.s32.totalorder %v256, 896
          %vm259 = vmand %vm257, %vm258
          %260 = vst.msk [vmem:[#allocation2 + $0x8] sm:$0x7f] %vm259, 0.0
        $region44: #{ensemble_forward_impl.1} parent=39 // pred_fallthru
          _
        %v261 = vld [vmem:[%s248] sm:$0xf]
        %v262 = vld [vmem:[%s248 + $0x4] sm:$0xf]
        %v263 = vld [vmem:[%s248 + $0x8] sm:$0xf]
        %v264 = vld [vmem:[%s248 + $0xc] sm:$0xf]
        %v265 = vld [vmem:[%s248 + $0x10] sm:$0xf]
        %v266 = vld [vmem:[%s248 + $0x14] sm:$0xf]
        %v267 = vld [vmem:[%s248 + $0x18] sm:$0xf]
        %v268 = vld [vmem:[%s248 + $0x1c] sm:$0xf]
        %v269 = vld [vmem:[%s248 + $0x20] sm:$0xf]
        %v270 = vld [vmem:[%s248 + $0x24] sm:$0xf]
        %v271 = vld [vmem:[%s248 + $0x28] sm:$0xf]
        %v272 = vld [vmem:[%s248 + $0x2c] sm:$0xf]
        %v273 = vld [vmem:[%s248 + $0x30] sm:$0xf]
        %v274 = vld [vmem:[%s248 + $0x34] sm:$0xf]
        %v275 = vld [vmem:[%s248 + $0x38] sm:$0xf]
        %v276 = vld [vmem:[%s248 + $0x3c] sm:$0xf]
        %v277 = vld [vmem:[%s248 + $0x40] sm:$0xf]
        %v278 = vld [vmem:[%s248 + $0x44] sm:$0xf]
        %v279 = vld [vmem:[%s248 + $0x48] sm:$0xf]
        %v280 = vld [vmem:[%s248 + $0x4c] sm:$0xf]
        %v281 = vld [vmem:[%s248 + $0x50] sm:$0xf]
        %v282 = vld [vmem:[%s248 + $0x54] sm:$0xf]
        %v283 = vld [vmem:[%s248 + $0x58] sm:$0xf]
        %v284 = vld [vmem:[%s248 + $0x5c] sm:$0xf]
        %v285 = vld [vmem:[%s248 + $0x60] sm:$0xf]
        %v286 = vld [vmem:[%s248 + $0x64] sm:$0xf]
        %v287 = vld [vmem:[%s248 + $0x68] sm:$0xf]
        %v288 = vld [vmem:[%s248 + $0x6c] sm:$0xf]
        %v289 = vld [vmem:[%s248 + $0x70] sm:$0xf]
        %v290 = vld [vmem:[%s248 + $0x74] sm:$0xf]
        %v291 = vld [vmem:[%s248 + $0x78] sm:$0xf]
        %v292 = vld [vmem:[%s248 + $0x7c] sm:$0xf]
        %v293 = vld [vmem:[%s1] sm:$0xff]
        %v294 = vld [vmem:[%s1 + $0x8] sm:$0xff]
        %v295 = vld [vmem:[%s1 + $0x10] sm:$0xff]
        %v296 = vld [vmem:[%s1 + $0x18] sm:$0xff]
        %v297 = vld [vmem:[%s1 + $0x20] sm:$0xff]
        %v298 = vld [vmem:[%s1 + $0x28] sm:$0xff]
        %v299 = vld [vmem:[%s1 + $0x30] sm:$0xff]
        %v300 = vld [vmem:[%s1 + $0x38] sm:$0xf]
        %v301 = vld [vmem:[%s1 + $0x3c] sm:$0xff]
        %v302 = vld [vmem:[%s1 + $0x44] sm:$0xff]
        %v303 = vld [vmem:[%s1 + $0x4c] sm:$0xff]
        %v304 = vld [vmem:[%s1 + $0x54] sm:$0xff]
        %v305 = vld [vmem:[%s1 + $0x5c] sm:$0xff]
        %v306 = vld [vmem:[%s1 + $0x64] sm:$0xff]
        %v307 = vld [vmem:[%s1 + $0x6c] sm:$0xff]
        %v308 = vld [vmem:[%s1 + $0x74] sm:$0xf]
        %v309 = vld [vmem:[%s1 + $0x78] sm:$0xff]
        %v310 = vld [vmem:[%s1 + $0x80] sm:$0xff]
        %v311 = vld [vmem:[%s1 + $0x88] sm:$0xff]
        %v312 = vld [vmem:[%s1 + $0x90] sm:$0xff]
        %v313 = vld [vmem:[%s1 + $0x98] sm:$0xff]
        %v314 = vld [vmem:[%s1 + $0xa0] sm:$0xff]
        %v315 = vld [vmem:[%s1 + $0xa8] sm:$0xff]
        %v316 = vld [vmem:[%s1 + $0xb0] sm:$0xf]
        %v317 = vld [vmem:[%s1 + $0xb4] sm:$0x33]
        %v318 = vld [vmem:[%s1 + $0xbc] sm:$0x33]
        %v319 = vld [vmem:[%s1 + $0xc4] sm:$0x33]
        %v320 = vld [vmem:[%s1 + $0xcc] sm:$0x33]
        %v321 = vld [vmem:[%s1 + $0xd4] sm:$0x33]
        %v322 = vld [vmem:[%s1 + $0xdc] sm:$0x33]
        %v323 = vld [vmem:[%s1 + $0xe4] sm:$0x33]
        %v324 = vld [vmem:[%s1 + $0xec] sm:$0x3]
        %v325 = vld [vmem:[%s2] sm:$0xff]
        %v326 = vld [vmem:[%s2 + $0x8] sm:$0xff]
        %v329 = vperm.slane %v325, 0
        %v330 = vperm.slane %v325, 1
        %v331 = vperm.slane %v325, 2
        %v332 = vperm.slane %v325, 3
        %v333 = vperm.slane %v325, 4
        %v334 = vperm.slane %v325, 5
        %v335 = vperm.slane %v325, 6
        %v336 = vperm.slane %v325, 7
        %v337 = vperm.slane %v326, 0
        %v338 = vperm.slane %v326, 1
        %v339 = vperm.slane %v326, 2
        %v340 = vperm.slane %v326, 3
        %v341 = vperm.slane %v326, 4
        %v342 = vperm.slane %v326, 5
        %v343 = vperm.slane %v326, 6
        %v391 = vunpack.c.l.b16 %v261
        %v392 = vunpack.c.l.b16 %v262
        %v393 = vunpack.c.l.b16 %v263
        %v394 = vunpack.c.l.b16 %v264
        %v395 = vunpack.c.l.b16 %v265
        %v396 = vunpack.c.l.b16 %v266
        %v397 = vunpack.c.l.b16 %v267
        %v398 = vunpack.c.l.b16 %v268
        %v399 = vunpack.c.l.b16 %v269
        %v400 = vunpack.c.l.b16 %v270
        %v401 = vunpack.c.l.b16 %v271
        %v402 = vunpack.c.l.b16 %v272
        %v403 = vunpack.c.l.b16 %v273
        %v404 = vunpack.c.l.b16 %v274
        %v405 = vunpack.c.l.b16 %v275
        %v406 = vunpack.c.l.b16 %v276
        %v407 = vunpack.c.l.b16 %v277
        %v408 = vunpack.c.l.b16 %v278
        %v409 = vunpack.c.l.b16 %v279
        %v410 = vunpack.c.l.b16 %v280
        %v411 = vunpack.c.l.b16 %v281
        %v412 = vunpack.c.l.b16 %v282
        %v413 = vunpack.c.l.b16 %v283
        %v414 = vunpack.c.l.b16 %v284
        %v415 = vunpack.c.l.b16 %v285
        %v416 = vunpack.c.l.b16 %v286
        %v417 = vunpack.c.l.b16 %v287
        %v418 = vunpack.c.l.b16 %v288
        %v419 = vunpack.c.l.b16 %v289
        %v420 = vunpack.c.l.b16 %v290
        %v421 = vunpack.c.l.b16 %v291
        %v422 = vunpack.c.l.b16 %v292
        %v423 = vpack.c.b16 %v392, %v391
        %v424 = vpack.c.b16 %v394, %v393
        %v425 = vpack.c.b16 %v396, %v395
        %v426 = vpack.c.b16 %v398, %v397
        %v427 = vpack.c.b16 %v400, %v399
        %v428 = vpack.c.b16 %v402, %v401
        %v429 = vpack.c.b16 %v404, %v403
        %v430 = vpack.c.b16 %v406, %v405
        %v431 = vpack.c.b16 %v408, %v407
        %v432 = vpack.c.b16 %v410, %v409
        %v433 = vpack.c.b16 %v412, %v411
        %v434 = vpack.c.b16 %v414, %v413
        %v435 = vpack.c.b16 %v416, %v415
        %v436 = vpack.c.b16 %v418, %v417
        %v437 = vpack.c.b16 %v420, %v419
        %v438 = vpack.c.b16 %v422, %v421
        %v471 = vunpack.c.l.b16 %v293
        %v472 = vunpack.c.h.b16 %v293
        %v473 = vunpack.c.l.b16 %v294
        %v474 = vunpack.c.h.b16 %v294
        %v475 = vunpack.c.l.b16 %v295
        %v476 = vunpack.c.h.b16 %v295
        %v477 = vunpack.c.l.b16 %v296
        %v478 = vunpack.c.h.b16 %v296
        %v479 = vunpack.c.l.b16 %v297
        %v480 = vunpack.c.h.b16 %v297
        %v481 = vunpack.c.l.b16 %v298
        %v482 = vunpack.c.h.b16 %v298
        %v483 = vunpack.c.l.b16 %v299
        %v484 = vunpack.c.h.b16 %v299
        %v485 = vunpack.c.l.b16 %v300
        %v486 = vunpack.c.l.b16 %v301
        %v487 = vunpack.c.h.b16 %v301
        %v488 = vunpack.c.l.b16 %v302
        %v489 = vunpack.c.h.b16 %v302
        %v490 = vunpack.c.l.b16 %v303
        %v491 = vunpack.c.h.b16 %v303
        %v492 = vunpack.c.l.b16 %v304
        %v493 = vunpack.c.h.b16 %v304
        %v494 = vunpack.c.l.b16 %v305
        %v495 = vunpack.c.h.b16 %v305
        %v496 = vunpack.c.l.b16 %v306
        %v497 = vunpack.c.h.b16 %v306
        %v498 = vunpack.c.l.b16 %v307
        %v499 = vunpack.c.h.b16 %v307
        %v500 = vunpack.c.l.b16 %v308
        %v501 = vunpack.c.l.b16 %v309
        %v502 = vunpack.c.h.b16 %v309
        %v503 = vunpack.c.l.b16 %v310
        %v504 = vunpack.c.h.b16 %v310
        %v505 = vunpack.c.l.b16 %v311
        %v506 = vunpack.c.h.b16 %v311
        %v507 = vunpack.c.l.b16 %v312
        %v508 = vunpack.c.h.b16 %v312
        %v509 = vunpack.c.l.b16 %v313
        %v510 = vunpack.c.h.b16 %v313
        %v511 = vunpack.c.l.b16 %v314
        %v512 = vunpack.c.h.b16 %v314
        %v513 = vunpack.c.l.b16 %v315
        %v514 = vunpack.c.h.b16 %v315
        %v515 = vunpack.c.l.b16 %v316
        %v516 = vunpack.c.l.b16 %v317
        %v517 = vunpack.c.h.b16 %v317
        %v518 = vunpack.c.l.b16 %v318
        %v519 = vunpack.c.h.b16 %v318
        %v520 = vunpack.c.l.b16 %v319
        %v521 = vunpack.c.h.b16 %v319
        %v522 = vunpack.c.l.b16 %v320
        %v523 = vunpack.c.h.b16 %v320
        %v524 = vunpack.c.l.b16 %v321
        %v525 = vunpack.c.h.b16 %v321
        %v526 = vunpack.c.l.b16 %v322
        %v527 = vunpack.c.h.b16 %v322
        %v528 = vunpack.c.l.b16 %v323
        %v529 = vunpack.c.h.b16 %v323
        %v530 = vunpack.c.l.b16 %v324
        %v531 = vpack.c.b16 %v486, %v471
        %v532 = vpack.c.b16 %v487, %v472
        %v533 = vpack.c.b16 %v488, %v473
        %v534 = vpack.c.b16 %v489, %v474
        %v535 = vpack.c.b16 %v490, %v475
        %v536 = vpack.c.b16 %v491, %v476
        %v537 = vpack.c.b16 %v492, %v477
        %v538 = vpack.c.b16 %v493, %v478
        %v539 = vpack.c.b16 %v494, %v479
        %v540 = vpack.c.b16 %v495, %v480
        %v541 = vpack.c.b16 %v496, %v481
        %v542 = vpack.c.b16 %v497, %v482
        %v543 = vpack.c.b16 %v498, %v483
        %v544 = vpack.c.b16 %v499, %v484
        %v545 = vpack.c.b16 %v500, %v485
        %v546 = vpack.c.b16 %v516, %v501
        %v547 = vpack.c.b16 %v517, %v502
        %v548 = vpack.c.b16 %v518, %v503
        %v549 = vpack.c.b16 %v519, %v504
        %v550 = vpack.c.b16 %v520, %v505
        %v551 = vpack.c.b16 %v521, %v506
        %v552 = vpack.c.b16 %v522, %v507
        %v553 = vpack.c.b16 %v523, %v508
        %v554 = vpack.c.b16 %v524, %v509
        %v555 = vpack.c.b16 %v525, %v510
        %v556 = vpack.c.b16 %v526, %v511
        %v557 = vpack.c.b16 %v527, %v512
        %v558 = vpack.c.b16 %v528, %v513
        %v559 = vpack.c.b16 %v529, %v514
        %v560 = vpack.c.b16 %v530, %v515
        %vm576 = vcmask 220160
        %v578 = vsel %vm576, %v423, 0
        %v581 = vsel %vm576, %v424, 0
        %v584 = vsel %vm576, %v425, 0
        %v587 = vsel %vm576, %v426, 0
        %v590 = vsel %vm576, %v427, 0
        %v593 = vsel %vm576, %v428, 0
        %v596 = vsel %vm576, %v429, 0
        %v599 = vsel %vm576, %v430, 0
        %v602 = vsel %vm576, %v431, 0
        %v605 = vsel %vm576, %v432, 0
        %v608 = vsel %vm576, %v433, 0
        %v611 = vsel %vm576, %v434, 0
        %v614 = vsel %vm576, %v435, 0
        %v617 = vsel %vm576, %v436, 0
        %v620 = vsel %vm576, %v437, 0
        %v623 = vsel %vm576, %v438, 0
        %vm625 = vcmask 1044480
        %vm626 = vcmask 1045504
        %v627 = vsel %vm625, 4294967295, 65535
        %v628 = vsel %vm626, %v627, 0
        %v630 = vand.u32 %v546, %v628
        %v633 = vand.u32 %v547, %v628
        %v636 = vand.u32 %v548, %v628
        %v639 = vand.u32 %v549, %v628
        %v642 = vand.u32 %v550, %v628
        %v645 = vand.u32 %v551, %v628
        %v648 = vand.u32 %v552, %v628
        %v651 = vand.u32 %v553, %v628
        %v654 = vand.u32 %v554, %v628
        %v657 = vand.u32 %v555, %v628
        %v660 = vand.u32 %v556, %v628
        %v663 = vand.u32 %v557, %v628
        %v666 = vand.u32 %v558, %v628
        %v669 = vand.u32 %v559, %v628
        %v672 = vand.u32 %v560, %v628
        %674 = vmatpush.bf16.msra.mxu0 0
        %675 = vmatpush.bf16.msra.mxu0 0
        %676 = vmatpush.bf16.msra.mxu0 0
        %677 = vmatpush.bf16.msra.mxu0 0
        %678 = vmatpush.bf16.msra.mxu0 0
        %679 = vmatpush.bf16.msra.mxu0 0
        %680 = vmatpush.bf16.msra.mxu0 %v630
        %681 = vmatpush.bf16.msra.mxu0 %v531
        %682 = vmatmul.bf16.gmra.mxu0 %v578
        %v683 = vpop.f32.mrf.mxu0
        %v684 = vadd.f32 %v329, %v683
        %v685 = vpop.f32.mrf.mxu0
        %v686 = vadd.f32 %v329, %v685
        %687 = vmatmul.bf16.gmra.mxu0 %v581
        %v688 = vpop.f32.mrf.mxu0
        %v689 = vadd.f32 %v329, %v688
        %v690 = vpop.f32.mrf.mxu0
        %v691 = vadd.f32 %v329, %v690
        %692 = vmatmul.bf16.gmra.mxu0 %v584
        %v693 = vpop.f32.mrf.mxu0
        %v694 = vadd.f32 %v329, %v693
        %v695 = vpop.f32.mrf.mxu0
        %v696 = vadd.f32 %v329, %v695
        %697 = vmatmul.bf16.gmra.mxu0 %v587
        %v698 = vpop.f32.mrf.mxu0
        %v699 = vadd.f32 %v329, %v698
        %v700 = vpop.f32.mrf.mxu0
        %v701 = vadd.f32 %v329, %v700
        %702 = vmatmul.bf16.gmra.mxu0 %v590
        %v703 = vpop.f32.mrf.mxu0
        %v704 = vadd.f32 %v329, %v703
        %v705 = vpop.f32.mrf.mxu0
        %v706 = vadd.f32 %v329, %v705
        %707 = vmatmul.bf16.gmra.mxu0 %v593
        %v708 = vpop.f32.mrf.mxu0
        %v709 = vadd.f32 %v329, %v708
        %v710 = vpop.f32.mrf.mxu0
        %v711 = vadd.f32 %v329, %v710
        %712 = vmatmul.bf16.gmra.mxu0 %v596
        %v713 = vpop.f32.mrf.mxu0
        %v714 = vadd.f32 %v329, %v713
        %v715 = vpop.f32.mrf.mxu0
        %v716 = vadd.f32 %v329, %v715
        %717 = vmatmul.bf16.gmra.mxu0 %v599
        %v718 = vpop.f32.mrf.mxu0
        %v719 = vadd.f32 %v329, %v718
        %v720 = vpop.f32.mrf.mxu0
        %v721 = vadd.f32 %v329, %v720
        %722 = vmatmul.bf16.gmra.mxu0 %v602
        %v723 = vpop.f32.mrf.mxu0
        %v724 = vadd.f32 %v329, %v723
        %v725 = vpop.f32.mrf.mxu0
        %v726 = vadd.f32 %v329, %v725
        %727 = vmatmul.bf16.gmra.mxu0 %v605
        %v728 = vpop.f32.mrf.mxu0
        %v729 = vadd.f32 %v329, %v728
        %v730 = vpop.f32.mrf.mxu0
        %v731 = vadd.f32 %v329, %v730
        %732 = vmatmul.bf16.gmra.mxu0 %v608
        %v733 = vpop.f32.mrf.mxu0
        %v734 = vadd.f32 %v329, %v733
        %v735 = vpop.f32.mrf.mxu0
        %v736 = vadd.f32 %v329, %v735
        %737 = vmatmul.bf16.gmra.mxu0 %v611
        %v738 = vpop.f32.mrf.mxu0
        %v739 = vadd.f32 %v329, %v738
        %v740 = vpop.f32.mrf.mxu0
        %v741 = vadd.f32 %v329, %v740
        %742 = vmatmul.bf16.gmra.mxu0 %v614
        %v743 = vpop.f32.mrf.mxu0
        %v744 = vadd.f32 %v329, %v743
        %v745 = vpop.f32.mrf.mxu0
        %v746 = vadd.f32 %v329, %v745
        %747 = vmatmul.bf16.gmra.mxu0 %v617
        %v748 = vpop.f32.mrf.mxu0
        %v749 = vadd.f32 %v329, %v748
        %v750 = vpop.f32.mrf.mxu0
        %v751 = vadd.f32 %v329, %v750
        %752 = vmatmul.bf16.gmra.mxu0 %v620
        %v753 = vpop.f32.mrf.mxu0
        %v754 = vadd.f32 %v329, %v753
        %v755 = vpop.f32.mrf.mxu0
        %v756 = vadd.f32 %v329, %v755
        %757 = vmatmul.bf16.gmra.mxu0 %v623
        %v758 = vpop.f32.mrf.mxu0
        %v759 = vadd.f32 %v329, %v758
        %v760 = vpop.f32.mrf.mxu0
        %v761 = vadd.f32 %v329, %v760
        %762 = vdwg.mxu0
        %763 = vmatpush.bf16.msra.mxu0 0
        %764 = vmatpush.bf16.msra.mxu0 0
        %765 = vmatpush.bf16.msra.mxu0 0
        %766 = vmatpush.bf16.msra.mxu0 0
        %767 = vmatpush.bf16.msra.mxu0 0
        %768 = vmatpush.bf16.msra.mxu0 0
        %769 = vmatpush.bf16.msra.mxu0 %v633
        %770 = vmatpush.bf16.msra.mxu0 %v532
        %771 = vmatmul.bf16.gmra.mxu0 %v578
        %v772 = vpop.f32.mrf.mxu0
        %v773 = vadd.f32 %v330, %v772
        %v774 = vpop.f32.mrf.mxu0
        %v775 = vadd.f32 %v330, %v774
        %776 = vmatmul.bf16.gmra.mxu0 %v581
        %v777 = vpop.f32.mrf.mxu0
        %v778 = vadd.f32 %v330, %v777
        %v779 = vpop.f32.mrf.mxu0
        %v780 = vadd.f32 %v330, %v779
        %781 = vmatmul.bf16.gmra.mxu0 %v584
        %v782 = vpop.f32.mrf.mxu0
        %v783 = vadd.f32 %v330, %v782
        %v784 = vpop.f32.mrf.mxu0
        %v785 = vadd.f32 %v330, %v784
        %786 = vmatmul.bf16.gmra.mxu0 %v587
        %v787 = vpop.f32.mrf.mxu0
        %v788 = vadd.f32 %v330, %v787
        %v789 = vpop.f32.mrf.mxu0
        %v790 = vadd.f32 %v330, %v789
        %791 = vmatmul.bf16.gmra.mxu0 %v590
        %v792 = vpop.f32.mrf.mxu0
        %v793 = vadd.f32 %v330, %v792
        %v794 = vpop.f32.mrf.mxu0
        %v795 = vadd.f32 %v330, %v794
        %796 = vmatmul.bf16.gmra.mxu0 %v593
        %v797 = vpop.f32.mrf.mxu0
        %v798 = vadd.f32 %v330, %v797
        %v799 = vpop.f32.mrf.mxu0
        %v800 = vadd.f32 %v330, %v799
        %801 = vmatmul.bf16.gmra.mxu0 %v596
        %v802 = vpop.f32.mrf.mxu0
        %v803 = vadd.f32 %v330, %v802
        %v804 = vpop.f32.mrf.mxu0
        %v805 = vadd.f32 %v330, %v804
        %806 = vmatmul.bf16.gmra.mxu0 %v599
        %v807 = vpop.f32.mrf.mxu0
        %v808 = vadd.f32 %v330, %v807
        %v809 = vpop.f32.mrf.mxu0
        %v810 = vadd.f32 %v330, %v809
        %811 = vmatmul.bf16.gmra.mxu0 %v602
        %v812 = vpop.f32.mrf.mxu0
        %v813 = vadd.f32 %v330, %v812
        %v814 = vpop.f32.mrf.mxu0
        %v815 = vadd.f32 %v330, %v814
        %816 = vmatmul.bf16.gmra.mxu0 %v605
        %v817 = vpop.f32.mrf.mxu0
        %v818 = vadd.f32 %v330, %v817
        %v819 = vpop.f32.mrf.mxu0
        %v820 = vadd.f32 %v330, %v819
        %821 = vmatmul.bf16.gmra.mxu0 %v608
        %v822 = vpop.f32.mrf.mxu0
        %v823 = vadd.f32 %v330, %v822
        %v824 = vpop.f32.mrf.mxu0
        %v825 = vadd.f32 %v330, %v824
        %826 = vmatmul.bf16.gmra.mxu0 %v611
        %v827 = vpop.f32.mrf.mxu0
        %v828 = vadd.f32 %v330, %v827
        %v829 = vpop.f32.mrf.mxu0
        %v830 = vadd.f32 %v330, %v829
        %831 = vmatmul.bf16.gmra.mxu0 %v614
        %v832 = vpop.f32.mrf.mxu0
        %v833 = vadd.f32 %v330, %v832
        %v834 = vpop.f32.mrf.mxu0
        %v835 = vadd.f32 %v330, %v834
        %836 = vmatmul.bf16.gmra.mxu0 %v617
        %v837 = vpop.f32.mrf.mxu0
        %v838 = vadd.f32 %v330, %v837
        %v839 = vpop.f32.mrf.mxu0
        %v840 = vadd.f32 %v330, %v839
        %841 = vmatmul.bf16.gmra.mxu0 %v620
        %v842 = vpop.f32.mrf.mxu0
        %v843 = vadd.f32 %v330, %v842
        %v844 = vpop.f32.mrf.mxu0
        %v845 = vadd.f32 %v330, %v844
        %846 = vmatmul.bf16.gmra.mxu0 %v623
        %v847 = vpop.f32.mrf.mxu0
        %v848 = vadd.f32 %v330, %v847
        %v849 = vpop.f32.mrf.mxu0
        %v850 = vadd.f32 %v330, %v849
        %851 = vdwg.mxu0
        %852 = vmatpush.bf16.msra.mxu0 0
        %853 = vmatpush.bf16.msra.mxu0 0
        %854 = vmatpush.bf16.msra.mxu0 0
        %855 = vmatpush.bf16.msra.mxu0 0
        %856 = vmatpush.bf16.msra.mxu0 0
        %857 = vmatpush.bf16.msra.mxu0 0
        %858 = vmatpush.bf16.msra.mxu0 %v636
        %859 = vmatpush.bf16.msra.mxu0 %v533
        %860 = vmatmul.bf16.gmra.mxu0 %v578
        %v861 = vpop.f32.mrf.mxu0
        %v862 = vadd.f32 %v331, %v861
        %v863 = vpop.f32.mrf.mxu0
        %v864 = vadd.f32 %v331, %v863
        %865 = vmatmul.bf16.gmra.mxu0 %v581
        %v866 = vpop.f32.mrf.mxu0
        %v867 = vadd.f32 %v331, %v866
        %v868 = vpop.f32.mrf.mxu0
        %v869 = vadd.f32 %v331, %v868
        %870 = vmatmul.bf16.gmra.mxu0 %v584
        %v871 = vpop.f32.mrf.mxu0
        %v872 = vadd.f32 %v331, %v871
        %v873 = vpop.f32.mrf.mxu0
        %v874 = vadd.f32 %v331, %v873
        %875 = vmatmul.bf16.gmra.mxu0 %v587
        %v876 = vpop.f32.mrf.mxu0
        %v877 = vadd.f32 %v331, %v876
        %v878 = vpop.f32.mrf.mxu0
        %v879 = vadd.f32 %v331, %v878
        %880 = vmatmul.bf16.gmra.mxu0 %v590
        %v881 = vpop.f32.mrf.mxu0
        %v882 = vadd.f32 %v331, %v881
        %v883 = vpop.f32.mrf.mxu0
        %v884 = vadd.f32 %v331, %v883
        %885 = vmatmul.bf16.gmra.mxu0 %v593
        %v886 = vpop.f32.mrf.mxu0
        %v887 = vadd.f32 %v331, %v886
        %v888 = vpop.f32.mrf.mxu0
        %v889 = vadd.f32 %v331, %v888
        %890 = vmatmul.bf16.gmra.mxu0 %v596
        %v891 = vpop.f32.mrf.mxu0
        %v892 = vadd.f32 %v331, %v891
        %v893 = vpop.f32.mrf.mxu0
        %v894 = vadd.f32 %v331, %v893
        %895 = vmatmul.bf16.gmra.mxu0 %v599
        %v896 = vpop.f32.mrf.mxu0
        %v897 = vadd.f32 %v331, %v896
        %v898 = vpop.f32.mrf.mxu0
        %v899 = vadd.f32 %v331, %v898
        %900 = vmatmul.bf16.gmra.mxu0 %v602
        %v901 = vpop.f32.mrf.mxu0
        %v902 = vadd.f32 %v331, %v901
        %v903 = vpop.f32.mrf.mxu0
        %v904 = vadd.f32 %v331, %v903
        %905 = vmatmul.bf16.gmra.mxu0 %v605
        %v906 = vpop.f32.mrf.mxu0
        %v907 = vadd.f32 %v331, %v906
        %v908 = vpop.f32.mrf.mxu0
        %v909 = vadd.f32 %v331, %v908
        %910 = vmatmul.bf16.gmra.mxu0 %v608
        %v911 = vpop.f32.mrf.mxu0
        %v912 = vadd.f32 %v331, %v911
        %v913 = vpop.f32.mrf.mxu0
        %v914 = vadd.f32 %v331, %v913
        %915 = vmatmul.bf16.gmra.mxu0 %v611
        %v916 = vpop.f32.mrf.mxu0
        %v917 = vadd.f32 %v331, %v916
        %v918 = vpop.f32.mrf.mxu0
        %v919 = vadd.f32 %v331, %v918
        %920 = vmatmul.bf16.gmra.mxu0 %v614
        %v921 = vpop.f32.mrf.mxu0
        %v922 = vadd.f32 %v331, %v921
        %v923 = vpop.f32.mrf.mxu0
        %v924 = vadd.f32 %v331, %v923
        %925 = vmatmul.bf16.gmra.mxu0 %v617
        %v926 = vpop.f32.mrf.mxu0
        %v927 = vadd.f32 %v331, %v926
        %v928 = vpop.f32.mrf.mxu0
        %v929 = vadd.f32 %v331, %v928
        %930 = vmatmul.bf16.gmra.mxu0 %v620
        %v931 = vpop.f32.mrf.mxu0
        %v932 = vadd.f32 %v331, %v931
        %v933 = vpop.f32.mrf.mxu0
        %v934 = vadd.f32 %v331, %v933
        %935 = vmatmul.bf16.gmra.mxu0 %v623
        %v936 = vpop.f32.mrf.mxu0
        %v937 = vadd.f32 %v331, %v936
        %v938 = vpop.f32.mrf.mxu0
        %v939 = vadd.f32 %v331, %v938
        %940 = vdwg.mxu0
        %941 = vmatpush.bf16.msra.mxu0 0
        %942 = vmatpush.bf16.msra.mxu0 0
        %943 = vmatpush.bf16.msra.mxu0 0
        %944 = vmatpush.bf16.msra.mxu0 0
        %945 = vmatpush.bf16.msra.mxu0 0
        %946 = vmatpush.bf16.msra.mxu0 0
        %947 = vmatpush.bf16.msra.mxu0 %v639
        %948 = vmatpush.bf16.msra.mxu0 %v534
        %949 = vmatmul.bf16.gmra.mxu0 %v578
        %v950 = vpop.f32.mrf.mxu0
        %v951 = vadd.f32 %v332, %v950
        %v952 = vpop.f32.mrf.mxu0
        %v953 = vadd.f32 %v332, %v952
        %954 = vmatmul.bf16.gmra.mxu0 %v581
        %v955 = vpop.f32.mrf.mxu0
        %v956 = vadd.f32 %v332, %v955
        %v957 = vpop.f32.mrf.mxu0
        %v958 = vadd.f32 %v332, %v957
        %959 = vmatmul.bf16.gmra.mxu0 %v584
        %v960 = vpop.f32.mrf.mxu0
        %v961 = vadd.f32 %v332, %v960
        %v962 = vpop.f32.mrf.mxu0
        %v963 = vadd.f32 %v332, %v962
        %964 = vmatmul.bf16.gmra.mxu0 %v587
        %v965 = vpop.f32.mrf.mxu0
        %v966 = vadd.f32 %v332, %v965
        %v967 = vpop.f32.mrf.mxu0
        %v968 = vadd.f32 %v332, %v967
        %969 = vmatmul.bf16.gmra.mxu0 %v590
        %v970 = vpop.f32.mrf.mxu0
        %v971 = vadd.f32 %v332, %v970
        %v972 = vpop.f32.mrf.mxu0
        %v973 = vadd.f32 %v332, %v972
        %974 = vmatmul.bf16.gmra.mxu0 %v593
        %v975 = vpop.f32.mrf.mxu0
        %v976 = vadd.f32 %v332, %v975
        %v977 = vpop.f32.mrf.mxu0
        %v978 = vadd.f32 %v332, %v977
        %979 = vmatmul.bf16.gmra.mxu0 %v596
        %v980 = vpop.f32.mrf.mxu0
        %v981 = vadd.f32 %v332, %v980
        %v982 = vpop.f32.mrf.mxu0
        %v983 = vadd.f32 %v332, %v982
        %984 = vmatmul.bf16.gmra.mxu0 %v599
        %v985 = vpop.f32.mrf.mxu0
        %v986 = vadd.f32 %v332, %v985
        %v987 = vpop.f32.mrf.mxu0
        %v988 = vadd.f32 %v332, %v987
        %989 = vmatmul.bf16.gmra.mxu0 %v602
        %v990 = vpop.f32.mrf.mxu0
        %v991 = vadd.f32 %v332, %v990
        %v992 = vpop.f32.mrf.mxu0
        %v993 = vadd.f32 %v332, %v992
        %994 = vmatmul.bf16.gmra.mxu0 %v605
        %v995 = vpop.f32.mrf.mxu0
        %v996 = vadd.f32 %v332, %v995
        %v997 = vpop.f32.mrf.mxu0
        %v998 = vadd.f32 %v332, %v997
        %999 = vmatmul.bf16.gmra.mxu0 %v608
        %v1000 = vpop.f32.mrf.mxu0
        %v1001 = vadd.f32 %v332, %v1000
        %v1002 = vpop.f32.mrf.mxu0
        %v1003 = vadd.f32 %v332, %v1002
        %1004 = vmatmul.bf16.gmra.mxu0 %v611
        %v1005 = vpop.f32.mrf.mxu0
        %v1006 = vadd.f32 %v332, %v1005
        %v1007 = vpop.f32.mrf.mxu0
        %v1008 = vadd.f32 %v332, %v1007
        %1009 = vmatmul.bf16.gmra.mxu0 %v614
        %v1010 = vpop.f32.mrf.mxu0
        %v1011 = vadd.f32 %v332, %v1010
        %v1012 = vpop.f32.mrf.mxu0
        %v1013 = vadd.f32 %v332, %v1012
        %1014 = vmatmul.bf16.gmra.mxu0 %v617
        %v1015 = vpop.f32.mrf.mxu0
        %v1016 = vadd.f32 %v332, %v1015
        %v1017 = vpop.f32.mrf.mxu0
        %v1018 = vadd.f32 %v332, %v1017
        %1019 = vmatmul.bf16.gmra.mxu0 %v620
        %v1020 = vpop.f32.mrf.mxu0
        %v1021 = vadd.f32 %v332, %v1020
        %v1022 = vpop.f32.mrf.mxu0
        %v1023 = vadd.f32 %v332, %v1022
        %1024 = vmatmul.bf16.gmra.mxu0 %v623
        %v1025 = vpop.f32.mrf.mxu0
        %v1026 = vadd.f32 %v332, %v1025
        %v1027 = vpop.f32.mrf.mxu0
        %v1028 = vadd.f32 %v332, %v1027
        %1029 = vdwg.mxu0
        %1030 = vmatpush.bf16.msra.mxu0 0
        %1031 = vmatpush.bf16.msra.mxu0 0
        %1032 = vmatpush.bf16.msra.mxu0 0
        %1033 = vmatpush.bf16.msra.mxu0 0
        %1034 = vmatpush.bf16.msra.mxu0 0
        %1035 = vmatpush.bf16.msra.mxu0 0
        %1036 = vmatpush.bf16.msra.mxu0 %v642
        %1037 = vmatpush.bf16.msra.mxu0 %v535
        %1038 = vmatmul.bf16.gmra.mxu0 %v578
        %v1039 = vpop.f32.mrf.mxu0
        %v1040 = vadd.f32 %v333, %v1039
        %v1041 = vpop.f32.mrf.mxu0
        %v1042 = vadd.f32 %v333, %v1041
        %1043 = vmatmul.bf16.gmra.mxu0 %v581
        %v1044 = vpop.f32.mrf.mxu0
        %v1045 = vadd.f32 %v333, %v1044
        %v1046 = vpop.f32.mrf.mxu0
        %v1047 = vadd.f32 %v333, %v1046
        %1048 = vmatmul.bf16.gmra.mxu0 %v584
        %v1049 = vpop.f32.mrf.mxu0
        %v1050 = vadd.f32 %v333, %v1049
        %v1051 = vpop.f32.mrf.mxu0
        %v1052 = vadd.f32 %v333, %v1051
        %1053 = vmatmul.bf16.gmra.mxu0 %v587
        %v1054 = vpop.f32.mrf.mxu0
        %v1055 = vadd.f32 %v333, %v1054
        %v1056 = vpop.f32.mrf.mxu0
        %v1057 = vadd.f32 %v333, %v1056
        %1058 = vmatmul.bf16.gmra.mxu0 %v590
        %v1059 = vpop.f32.mrf.mxu0
        %v1060 = vadd.f32 %v333, %v1059
        %v1061 = vpop.f32.mrf.mxu0
        %v1062 = vadd.f32 %v333, %v1061
        %1063 = vmatmul.bf16.gmra.mxu0 %v593
        %v1064 = vpop.f32.mrf.mxu0
        %v1065 = vadd.f32 %v333, %v1064
        %v1066 = vpop.f32.mrf.mxu0
        %v1067 = vadd.f32 %v333, %v1066
        %1068 = vmatmul.bf16.gmra.mxu0 %v596
        %v1069 = vpop.f32.mrf.mxu0
        %v1070 = vadd.f32 %v333, %v1069
        %v1071 = vpop.f32.mrf.mxu0
        %v1072 = vadd.f32 %v333, %v1071
        %1073 = vmatmul.bf16.gmra.mxu0 %v599
        %v1074 = vpop.f32.mrf.mxu0
        %v1075 = vadd.f32 %v333, %v1074
        %v1076 = vpop.f32.mrf.mxu0
        %v1077 = vadd.f32 %v333, %v1076
        %1078 = vmatmul.bf16.gmra.mxu0 %v602
        %v1079 = vpop.f32.mrf.mxu0
        %v1080 = vadd.f32 %v333, %v1079
        %v1081 = vpop.f32.mrf.mxu0
        %v1082 = vadd.f32 %v333, %v1081
        %1083 = vmatmul.bf16.gmra.mxu0 %v605
        %v1084 = vpop.f32.mrf.mxu0
        %v1085 = vadd.f32 %v333, %v1084
        %v1086 = vpop.f32.mrf.mxu0
        %v1087 = vadd.f32 %v333, %v1086
        %1088 = vmatmul.bf16.gmra.mxu0 %v608
        %v1089 = vpop.f32.mrf.mxu0
        %v1090 = vadd.f32 %v333, %v1089
        %v1091 = vpop.f32.mrf.mxu0
        %v1092 = vadd.f32 %v333, %v1091
        %1093 = vmatmul.bf16.gmra.mxu0 %v611
        %v1094 = vpop.f32.mrf.mxu0
        %v1095 = vadd.f32 %v333, %v1094
        %v1096 = vpop.f32.mrf.mxu0
        %v1097 = vadd.f32 %v333, %v1096
        %1098 = vmatmul.bf16.gmra.mxu0 %v614
        %v1099 = vpop.f32.mrf.mxu0
        %v1100 = vadd.f32 %v333, %v1099
        %v1101 = vpop.f32.mrf.mxu0
        %v1102 = vadd.f32 %v333, %v1101
        %1103 = vmatmul.bf16.gmra.mxu0 %v617
        %v1104 = vpop.f32.mrf.mxu0
        %v1105 = vadd.f32 %v333, %v1104
        %v1106 = vpop.f32.mrf.mxu0
        %v1107 = vadd.f32 %v333, %v1106
        %1108 = vmatmul.bf16.gmra.mxu0 %v620
        %v1109 = vpop.f32.mrf.mxu0
        %v1110 = vadd.f32 %v333, %v1109
        %v1111 = vpop.f32.mrf.mxu0
        %v1112 = vadd.f32 %v333, %v1111
        %1113 = vmatmul.bf16.gmra.mxu0 %v623
        %v1114 = vpop.f32.mrf.mxu0
        %v1115 = vadd.f32 %v333, %v1114
        %v1116 = vpop.f32.mrf.mxu0
        %v1117 = vadd.f32 %v333, %v1116
        %1118 = vdwg.mxu0
        %1119 = vmatpush.bf16.msra.mxu0 0
        %1120 = vmatpush.bf16.msra.mxu0 0
        %1121 = vmatpush.bf16.msra.mxu0 0
        %1122 = vmatpush.bf16.msra.mxu0 0
        %1123 = vmatpush.bf16.msra.mxu0 0
        %1124 = vmatpush.bf16.msra.mxu0 0
        %1125 = vmatpush.bf16.msra.mxu0 %v645
        %1126 = vmatpush.bf16.msra.mxu0 %v536
        %1127 = vmatmul.bf16.gmra.mxu0 %v578
        %v1128 = vpop.f32.mrf.mxu0
        %v1129 = vadd.f32 %v334, %v1128
        %v1130 = vpop.f32.mrf.mxu0
        %v1131 = vadd.f32 %v334, %v1130
        %1132 = vmatmul.bf16.gmra.mxu0 %v581
        %v1133 = vpop.f32.mrf.mxu0
        %v1134 = vadd.f32 %v334, %v1133
        %v1135 = vpop.f32.mrf.mxu0
        %v1136 = vadd.f32 %v334, %v1135
        %1137 = vmatmul.bf16.gmra.mxu0 %v584
        %v1138 = vpop.f32.mrf.mxu0
        %v1139 = vadd.f32 %v334, %v1138
        %v1140 = vpop.f32.mrf.mxu0
        %v1141 = vadd.f32 %v334, %v1140
        %1142 = vmatmul.bf16.gmra.mxu0 %v587
        %v1143 = vpop.f32.mrf.mxu0
        %v1144 = vadd.f32 %v334, %v1143
        %v1145 = vpop.f32.mrf.mxu0
        %v1146 = vadd.f32 %v334, %v1145
        %1147 = vmatmul.bf16.gmra.mxu0 %v590
        %v1148 = vpop.f32.mrf.mxu0
        %v1149 = vadd.f32 %v334, %v1148
        %v1150 = vpop.f32.mrf.mxu0
        %v1151 = vadd.f32 %v334, %v1150
        %1152 = vmatmul.bf16.gmra.mxu0 %v593
        %v1153 = vpop.f32.mrf.mxu0
        %v1154 = vadd.f32 %v334, %v1153
        %v1155 = vpop.f32.mrf.mxu0
        %v1156 = vadd.f32 %v334, %v1155
        %1157 = vmatmul.bf16.gmra.mxu0 %v596
        %v1158 = vpop.f32.mrf.mxu0
        %v1159 = vadd.f32 %v334, %v1158
        %v1160 = vpop.f32.mrf.mxu0
        %v1161 = vadd.f32 %v334, %v1160
        %1162 = vmatmul.bf16.gmra.mxu0 %v599
        %v1163 = vpop.f32.mrf.mxu0
        %v1164 = vadd.f32 %v334, %v1163
        %v1165 = vpop.f32.mrf.mxu0
        %v1166 = vadd.f32 %v334, %v1165
        %1167 = vmatmul.bf16.gmra.mxu0 %v602
        %v1168 = vpop.f32.mrf.mxu0
        %v1169 = vadd.f32 %v334, %v1168
        %v1170 = vpop.f32.mrf.mxu0
        %v1171 = vadd.f32 %v334, %v1170
        %1172 = vmatmul.bf16.gmra.mxu0 %v605
        %v1173 = vpop.f32.mrf.mxu0
        %v1174 = vadd.f32 %v334, %v1173
        %v1175 = vpop.f32.mrf.mxu0
        %v1176 = vadd.f32 %v334, %v1175
        %1177 = vmatmul.bf16.gmra.mxu0 %v608
        %v1178 = vpop.f32.mrf.mxu0
        %v1179 = vadd.f32 %v334, %v1178
        %v1180 = vpop.f32.mrf.mxu0
        %v1181 = vadd.f32 %v334, %v1180
        %1182 = vmatmul.bf16.gmra.mxu0 %v611
        %v1183 = vpop.f32.mrf.mxu0
        %v1184 = vadd.f32 %v334, %v1183
        %v1185 = vpop.f32.mrf.mxu0
        %v1186 = vadd.f32 %v334, %v1185
        %1187 = vmatmul.bf16.gmra.mxu0 %v614
        %v1188 = vpop.f32.mrf.mxu0
        %v1189 = vadd.f32 %v334, %v1188
        %v1190 = vpop.f32.mrf.mxu0
        %v1191 = vadd.f32 %v334, %v1190
        %1192 = vmatmul.bf16.gmra.mxu0 %v617
        %v1193 = vpop.f32.mrf.mxu0
        %v1194 = vadd.f32 %v334, %v1193
        %v1195 = vpop.f32.mrf.mxu0
        %v1196 = vadd.f32 %v334, %v1195
        %1197 = vmatmul.bf16.gmra.mxu0 %v620
        %v1198 = vpop.f32.mrf.mxu0
        %v1199 = vadd.f32 %v334, %v1198
        %v1200 = vpop.f32.mrf.mxu0
        %v1201 = vadd.f32 %v334, %v1200
        %1202 = vmatmul.bf16.gmra.mxu0 %v623
        %v1203 = vpop.f32.mrf.mxu0
        %v1204 = vadd.f32 %v334, %v1203
        %v1205 = vpop.f32.mrf.mxu0
        %v1206 = vadd.f32 %v334, %v1205
        %1207 = vdwg.mxu0
        %1208 = vmatpush.bf16.msra.mxu0 0
        %1209 = vmatpush.bf16.msra.mxu0 0
        %1210 = vmatpush.bf16.msra.mxu0 0
        %1211 = vmatpush.bf16.msra.mxu0 0
        %1212 = vmatpush.bf16.msra.mxu0 0
        %1213 = vmatpush.bf16.msra.mxu0 0
        %1214 = vmatpush.bf16.msra.mxu0 %v648
        %1215 = vmatpush.bf16.msra.mxu0 %v537
        %1216 = vmatmul.bf16.gmra.mxu0 %v578
        %v1217 = vpop.f32.mrf.mxu0
        %v1218 = vadd.f32 %v335, %v1217
        %v1219 = vpop.f32.mrf.mxu0
        %v1220 = vadd.f32 %v335, %v1219
        %1221 = vmatmul.bf16.gmra.mxu0 %v581
        %v1222 = vpop.f32.mrf.mxu0
        %v1223 = vadd.f32 %v335, %v1222
        %v1224 = vpop.f32.mrf.mxu0
        %v1225 = vadd.f32 %v335, %v1224
        %1226 = vmatmul.bf16.gmra.mxu0 %v584
        %v1227 = vpop.f32.mrf.mxu0
        %v1228 = vadd.f32 %v335, %v1227
        %v1229 = vpop.f32.mrf.mxu0
        %v1230 = vadd.f32 %v335, %v1229
        %1231 = vmatmul.bf16.gmra.mxu0 %v587
        %v1232 = vpop.f32.mrf.mxu0
        %v1233 = vadd.f32 %v335, %v1232
        %v1234 = vpop.f32.mrf.mxu0
        %v1235 = vadd.f32 %v335, %v1234
        %1236 = vmatmul.bf16.gmra.mxu0 %v590
        %v1237 = vpop.f32.mrf.mxu0
        %v1238 = vadd.f32 %v335, %v1237
        %v1239 = vpop.f32.mrf.mxu0
        %v1240 = vadd.f32 %v335, %v1239
        %1241 = vmatmul.bf16.gmra.mxu0 %v593
        %v1242 = vpop.f32.mrf.mxu0
        %v1243 = vadd.f32 %v335, %v1242
        %v1244 = vpop.f32.mrf.mxu0
        %v1245 = vadd.f32 %v335, %v1244
        %1246 = vmatmul.bf16.gmra.mxu0 %v596
        %v1247 = vpop.f32.mrf.mxu0
        %v1248 = vadd.f32 %v335, %v1247
        %v1249 = vpop.f32.mrf.mxu0
        %v1250 = vadd.f32 %v335, %v1249
        %1251 = vmatmul.bf16.gmra.mxu0 %v599
        %v1252 = vpop.f32.mrf.mxu0
        %v1253 = vadd.f32 %v335, %v1252
        %v1254 = vpop.f32.mrf.mxu0
        %v1255 = vadd.f32 %v335, %v1254
        %1256 = vmatmul.bf16.gmra.mxu0 %v602
        %v1257 = vpop.f32.mrf.mxu0
        %v1258 = vadd.f32 %v335, %v1257
        %v1259 = vpop.f32.mrf.mxu0
        %v1260 = vadd.f32 %v335, %v1259
        %1261 = vmatmul.bf16.gmra.mxu0 %v605
        %v1262 = vpop.f32.mrf.mxu0
        %v1263 = vadd.f32 %v335, %v1262
        %v1264 = vpop.f32.mrf.mxu0
        %v1265 = vadd.f32 %v335, %v1264
        %1266 = vmatmul.bf16.gmra.mxu0 %v608
        %v1267 = vpop.f32.mrf.mxu0
        %v1268 = vadd.f32 %v335, %v1267
        %v1269 = vpop.f32.mrf.mxu0
        %v1270 = vadd.f32 %v335, %v1269
        %1271 = vmatmul.bf16.gmra.mxu0 %v611
        %v1272 = vpop.f32.mrf.mxu0
        %v1273 = vadd.f32 %v335, %v1272
        %v1274 = vpop.f32.mrf.mxu0
        %v1275 = vadd.f32 %v335, %v1274
        %1276 = vmatmul.bf16.gmra.mxu0 %v614
        %v1277 = vpop.f32.mrf.mxu0
        %v1278 = vadd.f32 %v335, %v1277
        %v1279 = vpop.f32.mrf.mxu0
        %v1280 = vadd.f32 %v335, %v1279
        %1281 = vmatmul.bf16.gmra.mxu0 %v617
        %v1282 = vpop.f32.mrf.mxu0
        %v1283 = vadd.f32 %v335, %v1282
        %v1284 = vpop.f32.mrf.mxu0
        %v1285 = vadd.f32 %v335, %v1284
        %1286 = vmatmul.bf16.gmra.mxu0 %v620
        %v1287 = vpop.f32.mrf.mxu0
        %v1288 = vadd.f32 %v335, %v1287
        %v1289 = vpop.f32.mrf.mxu0
        %v1290 = vadd.f32 %v335, %v1289
        %1291 = vmatmul.bf16.gmra.mxu0 %v623
        %v1292 = vpop.f32.mrf.mxu0
        %v1293 = vadd.f32 %v335, %v1292
        %v1294 = vpop.f32.mrf.mxu0
        %v1295 = vadd.f32 %v335, %v1294
        %1296 = vdwg.mxu0
        %1297 = vmatpush.bf16.msra.mxu0 0
        %1298 = vmatpush.bf16.msra.mxu0 0
        %1299 = vmatpush.bf16.msra.mxu0 0
        %1300 = vmatpush.bf16.msra.mxu0 0
        %1301 = vmatpush.bf16.msra.mxu0 0
        %1302 = vmatpush.bf16.msra.mxu0 0
        %1303 = vmatpush.bf16.msra.mxu0 %v651
        %1304 = vmatpush.bf16.msra.mxu0 %v538
        %1305 = vmatmul.bf16.gmra.mxu0 %v578
        %v1306 = vpop.f32.mrf.mxu0
        %v1307 = vadd.f32 %v336, %v1306
        %v1308 = vpop.f32.mrf.mxu0
        %v1309 = vadd.f32 %v336, %v1308
        %1310 = vmatmul.bf16.gmra.mxu0 %v581
        %v1311 = vpop.f32.mrf.mxu0
        %v1312 = vadd.f32 %v336, %v1311
        %v1313 = vpop.f32.mrf.mxu0
        %v1314 = vadd.f32 %v336, %v1313
        %1315 = vmatmul.bf16.gmra.mxu0 %v584
        %v1316 = vpop.f32.mrf.mxu0
        %v1317 = vadd.f32 %v336, %v1316
        %v1318 = vpop.f32.mrf.mxu0
        %v1319 = vadd.f32 %v336, %v1318
        %1320 = vmatmul.bf16.gmra.mxu0 %v587
        %v1321 = vpop.f32.mrf.mxu0
        %v1322 = vadd.f32 %v336, %v1321
        %v1323 = vpop.f32.mrf.mxu0
        %v1324 = vadd.f32 %v336, %v1323
        %1325 = vmatmul.bf16.gmra.mxu0 %v590
        %v1326 = vpop.f32.mrf.mxu0
        %v1327 = vadd.f32 %v336, %v1326
        %v1328 = vpop.f32.mrf.mxu0
        %v1329 = vadd.f32 %v336, %v1328
        %1330 = vmatmul.bf16.gmra.mxu0 %v593
        %v1331 = vpop.f32.mrf.mxu0
        %v1332 = vadd.f32 %v336, %v1331
        %v1333 = vpop.f32.mrf.mxu0
        %v1334 = vadd.f32 %v336, %v1333
        %1335 = vmatmul.bf16.gmra.mxu0 %v596
        %v1336 = vpop.f32.mrf.mxu0
        %v1337 = vadd.f32 %v336, %v1336
        %v1338 = vpop.f32.mrf.mxu0
        %v1339 = vadd.f32 %v336, %v1338
        %1340 = vmatmul.bf16.gmra.mxu0 %v599
        %v1341 = vpop.f32.mrf.mxu0
        %v1342 = vadd.f32 %v336, %v1341
        %v1343 = vpop.f32.mrf.mxu0
        %v1344 = vadd.f32 %v336, %v1343
        %1345 = vmatmul.bf16.gmra.mxu0 %v602
        %v1346 = vpop.f32.mrf.mxu0
        %v1347 = vadd.f32 %v336, %v1346
        %v1348 = vpop.f32.mrf.mxu0
        %v1349 = vadd.f32 %v336, %v1348
        %1350 = vmatmul.bf16.gmra.mxu0 %v605
        %v1351 = vpop.f32.mrf.mxu0
        %v1352 = vadd.f32 %v336, %v1351
        %v1353 = vpop.f32.mrf.mxu0
        %v1354 = vadd.f32 %v336, %v1353
        %1355 = vmatmul.bf16.gmra.mxu0 %v608
        %v1356 = vpop.f32.mrf.mxu0
        %v1357 = vadd.f32 %v336, %v1356
        %v1358 = vpop.f32.mrf.mxu0
        %v1359 = vadd.f32 %v336, %v1358
        %1360 = vmatmul.bf16.gmra.mxu0 %v611
        %v1361 = vpop.f32.mrf.mxu0
        %v1362 = vadd.f32 %v336, %v1361
        %v1363 = vpop.f32.mrf.mxu0
        %v1364 = vadd.f32 %v336, %v1363
        %1365 = vmatmul.bf16.gmra.mxu0 %v614
        %v1366 = vpop.f32.mrf.mxu0
        %v1367 = vadd.f32 %v336, %v1366
        %v1368 = vpop.f32.mrf.mxu0
        %v1369 = vadd.f32 %v336, %v1368
        %1370 = vmatmul.bf16.gmra.mxu0 %v617
        %v1371 = vpop.f32.mrf.mxu0
        %v1372 = vadd.f32 %v336, %v1371
        %v1373 = vpop.f32.mrf.mxu0
        %v1374 = vadd.f32 %v336, %v1373
        %1375 = vmatmul.bf16.gmra.mxu0 %v620
        %v1376 = vpop.f32.mrf.mxu0
        %v1377 = vadd.f32 %v336, %v1376
        %v1378 = vpop.f32.mrf.mxu0
        %v1379 = vadd.f32 %v336, %v1378
        %1380 = vmatmul.bf16.gmra.mxu0 %v623
        %v1381 = vpop.f32.mrf.mxu0
        %v1382 = vadd.f32 %v336, %v1381
        %v1383 = vpop.f32.mrf.mxu0
        %v1384 = vadd.f32 %v336, %v1383
        %1385 = vdwg.mxu0
        %1386 = vmatpush.bf16.msra.mxu0 0
        %1387 = vmatpush.bf16.msra.mxu0 0
        %1388 = vmatpush.bf16.msra.mxu0 0
        %1389 = vmatpush.bf16.msra.mxu0 0
        %1390 = vmatpush.bf16.msra.mxu0 0
        %1391 = vmatpush.bf16.msra.mxu0 0
        %1392 = vmatpush.bf16.msra.mxu0 %v654
        %1393 = vmatpush.bf16.msra.mxu0 %v539
        %1394 = vmatmul.bf16.gmra.mxu0 %v578
        %v1395 = vpop.f32.mrf.mxu0
        %v1396 = vadd.f32 %v337, %v1395
        %v1397 = vpop.f32.mrf.mxu0
        %v1398 = vadd.f32 %v337, %v1397
        %1399 = vmatmul.bf16.gmra.mxu0 %v581
        %v1400 = vpop.f32.mrf.mxu0
        %v1401 = vadd.f32 %v337, %v1400
        %v1402 = vpop.f32.mrf.mxu0
        %v1403 = vadd.f32 %v337, %v1402
        %1404 = vmatmul.bf16.gmra.mxu0 %v584
        %v1405 = vpop.f32.mrf.mxu0
        %v1406 = vadd.f32 %v337, %v1405
        %v1407 = vpop.f32.mrf.mxu0
        %v1408 = vadd.f32 %v337, %v1407
        %1409 = vmatmul.bf16.gmra.mxu0 %v587
        %v1410 = vpop.f32.mrf.mxu0
        %v1411 = vadd.f32 %v337, %v1410
        %v1412 = vpop.f32.mrf.mxu0
        %v1413 = vadd.f32 %v337, %v1412
        %1414 = vmatmul.bf16.gmra.mxu0 %v590
        %v1415 = vpop.f32.mrf.mxu0
        %v1416 = vadd.f32 %v337, %v1415
        %v1417 = vpop.f32.mrf.mxu0
        %v1418 = vadd.f32 %v337, %v1417
        %1419 = vmatmul.bf16.gmra.mxu0 %v593
        %v1420 = vpop.f32.mrf.mxu0
        %v1421 = vadd.f32 %v337, %v1420
        %v1422 = vpop.f32.mrf.mxu0
        %v1423 = vadd.f32 %v337, %v1422
        %1424 = vmatmul.bf16.gmra.mxu0 %v596
        %v1425 = vpop.f32.mrf.mxu0
        %v1426 = vadd.f32 %v337, %v1425
        %v1427 = vpop.f32.mrf.mxu0
        %v1428 = vadd.f32 %v337, %v1427
        %1429 = vmatmul.bf16.gmra.mxu0 %v599
        %v1430 = vpop.f32.mrf.mxu0
        %v1431 = vadd.f32 %v337, %v1430
        %v1432 = vpop.f32.mrf.mxu0
        %v1433 = vadd.f32 %v337, %v1432
        %1434 = vmatmul.bf16.gmra.mxu0 %v602
        %v1435 = vpop.f32.mrf.mxu0
        %v1436 = vadd.f32 %v337, %v1435
        %v1437 = vpop.f32.mrf.mxu0
        %v1438 = vadd.f32 %v337, %v1437
        %1439 = vmatmul.bf16.gmra.mxu0 %v605
        %v1440 = vpop.f32.mrf.mxu0
        %v1441 = vadd.f32 %v337, %v1440
        %v1442 = vpop.f32.mrf.mxu0
        %v1443 = vadd.f32 %v337, %v1442
        %1444 = vmatmul.bf16.gmra.mxu0 %v608
        %v1445 = vpop.f32.mrf.mxu0
        %v1446 = vadd.f32 %v337, %v1445
        %v1447 = vpop.f32.mrf.mxu0
        %v1448 = vadd.f32 %v337, %v1447
        %1449 = vmatmul.bf16.gmra.mxu0 %v611
        %v1450 = vpop.f32.mrf.mxu0
        %v1451 = vadd.f32 %v337, %v1450
        %v1452 = vpop.f32.mrf.mxu0
        %v1453 = vadd.f32 %v337, %v1452
        %1454 = vmatmul.bf16.gmra.mxu0 %v614
        %v1455 = vpop.f32.mrf.mxu0
        %v1456 = vadd.f32 %v337, %v1455
        %v1457 = vpop.f32.mrf.mxu0
        %v1458 = vadd.f32 %v337, %v1457
        %1459 = vmatmul.bf16.gmra.mxu0 %v617
        %v1460 = vpop.f32.mrf.mxu0
        %v1461 = vadd.f32 %v337, %v1460
        %v1462 = vpop.f32.mrf.mxu0
        %v1463 = vadd.f32 %v337, %v1462
        %1464 = vmatmul.bf16.gmra.mxu0 %v620
        %v1465 = vpop.f32.mrf.mxu0
        %v1466 = vadd.f32 %v337, %v1465
        %v1467 = vpop.f32.mrf.mxu0
        %v1468 = vadd.f32 %v337, %v1467
        %1469 = vmatmul.bf16.gmra.mxu0 %v623
        %v1470 = vpop.f32.mrf.mxu0
        %v1471 = vadd.f32 %v337, %v1470
        %v1472 = vpop.f32.mrf.mxu0
        %v1473 = vadd.f32 %v337, %v1472
        %1474 = vdwg.mxu0
        %1475 = vmatpush.bf16.msra.mxu0 0
        %1476 = vmatpush.bf16.msra.mxu0 0
        %1477 = vmatpush.bf16.msra.mxu0 0
        %1478 = vmatpush.bf16.msra.mxu0 0
        %1479 = vmatpush.bf16.msra.mxu0 0
        %1480 = vmatpush.bf16.msra.mxu0 0
        %1481 = vmatpush.bf16.msra.mxu0 %v657
        %1482 = vmatpush.bf16.msra.mxu0 %v540
        %1483 = vmatmul.bf16.gmra.mxu0 %v578
        %v1484 = vpop.f32.mrf.mxu0
        %v1485 = vadd.f32 %v338, %v1484
        %v1486 = vpop.f32.mrf.mxu0
        %v1487 = vadd.f32 %v338, %v1486
        %1488 = vmatmul.bf16.gmra.mxu0 %v581
        %v1489 = vpop.f32.mrf.mxu0
        %v1490 = vadd.f32 %v338, %v1489
        %v1491 = vpop.f32.mrf.mxu0
        %v1492 = vadd.f32 %v338, %v1491
        %1493 = vmatmul.bf16.gmra.mxu0 %v584
        %v1494 = vpop.f32.mrf.mxu0
        %v1495 = vadd.f32 %v338, %v1494
        %v1496 = vpop.f32.mrf.mxu0
        %v1497 = vadd.f32 %v338, %v1496
        %1498 = vmatmul.bf16.gmra.mxu0 %v587
        %v1499 = vpop.f32.mrf.mxu0
        %v1500 = vadd.f32 %v338, %v1499
        %v1501 = vpop.f32.mrf.mxu0
        %v1502 = vadd.f32 %v338, %v1501
        %1503 = vmatmul.bf16.gmra.mxu0 %v590
        %v1504 = vpop.f32.mrf.mxu0
        %v1505 = vadd.f32 %v338, %v1504
        %v1506 = vpop.f32.mrf.mxu0
        %v1507 = vadd.f32 %v338, %v1506
        %1508 = vmatmul.bf16.gmra.mxu0 %v593
        %v1509 = vpop.f32.mrf.mxu0
        %v1510 = vadd.f32 %v338, %v1509
        %v1511 = vpop.f32.mrf.mxu0
        %v1512 = vadd.f32 %v338, %v1511
        %1513 = vmatmul.bf16.gmra.mxu0 %v596
        %v1514 = vpop.f32.mrf.mxu0
        %v1515 = vadd.f32 %v338, %v1514
        %v1516 = vpop.f32.mrf.mxu0
        %v1517 = vadd.f32 %v338, %v1516
        %1518 = vmatmul.bf16.gmra.mxu0 %v599
        %v1519 = vpop.f32.mrf.mxu0
        %v1520 = vadd.f32 %v338, %v1519
        %v1521 = vpop.f32.mrf.mxu0
        %v1522 = vadd.f32 %v338, %v1521
        %1523 = vmatmul.bf16.gmra.mxu0 %v602
        %v1524 = vpop.f32.mrf.mxu0
        %v1525 = vadd.f32 %v338, %v1524
        %v1526 = vpop.f32.mrf.mxu0
        %v1527 = vadd.f32 %v338, %v1526
        %1528 = vmatmul.bf16.gmra.mxu0 %v605
        %v1529 = vpop.f32.mrf.mxu0
        %v1530 = vadd.f32 %v338, %v1529
        %v1531 = vpop.f32.mrf.mxu0
        %v1532 = vadd.f32 %v338, %v1531
        %1533 = vmatmul.bf16.gmra.mxu0 %v608
        %v1534 = vpop.f32.mrf.mxu0
        %v1535 = vadd.f32 %v338, %v1534
        %v1536 = vpop.f32.mrf.mxu0
        %v1537 = vadd.f32 %v338, %v1536
        %1538 = vmatmul.bf16.gmra.mxu0 %v611
        %v1539 = vpop.f32.mrf.mxu0
        %v1540 = vadd.f32 %v338, %v1539
        %v1541 = vpop.f32.mrf.mxu0
        %v1542 = vadd.f32 %v338, %v1541
        %1543 = vmatmul.bf16.gmra.mxu0 %v614
        %v1544 = vpop.f32.mrf.mxu0
        %v1545 = vadd.f32 %v338, %v1544
        %v1546 = vpop.f32.mrf.mxu0
        %v1547 = vadd.f32 %v338, %v1546
        %1548 = vmatmul.bf16.gmra.mxu0 %v617
        %v1549 = vpop.f32.mrf.mxu0
        %v1550 = vadd.f32 %v338, %v1549
        %v1551 = vpop.f32.mrf.mxu0
        %v1552 = vadd.f32 %v338, %v1551
        %1553 = vmatmul.bf16.gmra.mxu0 %v620
        %v1554 = vpop.f32.mrf.mxu0
        %v1555 = vadd.f32 %v338, %v1554
        %v1556 = vpop.f32.mrf.mxu0
        %v1557 = vadd.f32 %v338, %v1556
        %1558 = vmatmul.bf16.gmra.mxu0 %v623
        %v1559 = vpop.f32.mrf.mxu0
        %v1560 = vadd.f32 %v338, %v1559
        %v1561 = vpop.f32.mrf.mxu0
        %v1562 = vadd.f32 %v338, %v1561
        %1563 = vdwg.mxu0
        %1564 = vmatpush.bf16.msra.mxu0 0
        %1565 = vmatpush.bf16.msra.mxu0 0
        %1566 = vmatpush.bf16.msra.mxu0 0
        %1567 = vmatpush.bf16.msra.mxu0 0
        %1568 = vmatpush.bf16.msra.mxu0 0
        %1569 = vmatpush.bf16.msra.mxu0 0
        %1570 = vmatpush.bf16.msra.mxu0 %v660
        %1571 = vmatpush.bf16.msra.mxu0 %v541
        %1572 = vmatmul.bf16.gmra.mxu0 %v578
        %v1573 = vpop.f32.mrf.mxu0
        %v1574 = vadd.f32 %v339, %v1573
        %v1575 = vpop.f32.mrf.mxu0
        %v1576 = vadd.f32 %v339, %v1575
        %1577 = vmatmul.bf16.gmra.mxu0 %v581
        %v1578 = vpop.f32.mrf.mxu0
        %v1579 = vadd.f32 %v339, %v1578
        %v1580 = vpop.f32.mrf.mxu0
        %v1581 = vadd.f32 %v339, %v1580
        %1582 = vmatmul.bf16.gmra.mxu0 %v584
        %v1583 = vpop.f32.mrf.mxu0
        %v1584 = vadd.f32 %v339, %v1583
        %v1585 = vpop.f32.mrf.mxu0
        %v1586 = vadd.f32 %v339, %v1585
        %1587 = vmatmul.bf16.gmra.mxu0 %v587
        %v1588 = vpop.f32.mrf.mxu0
        %v1589 = vadd.f32 %v339, %v1588
        %v1590 = vpop.f32.mrf.mxu0
        %v1591 = vadd.f32 %v339, %v1590
        %1592 = vmatmul.bf16.gmra.mxu0 %v590
        %v1593 = vpop.f32.mrf.mxu0
        %v1594 = vadd.f32 %v339, %v1593
        %v1595 = vpop.f32.mrf.mxu0
        %v1596 = vadd.f32 %v339, %v1595
        %1597 = vmatmul.bf16.gmra.mxu0 %v593
        %v1598 = vpop.f32.mrf.mxu0
        %v1599 = vadd.f32 %v339, %v1598
        %v1600 = vpop.f32.mrf.mxu0
        %v1601 = vadd.f32 %v339, %v1600
        %1602 = vmatmul.bf16.gmra.mxu0 %v596
        %v1603 = vpop.f32.mrf.mxu0
        %v1604 = vadd.f32 %v339, %v1603
        %v1605 = vpop.f32.mrf.mxu0
        %v1606 = vadd.f32 %v339, %v1605
        %1607 = vmatmul.bf16.gmra.mxu0 %v599
        %v1608 = vpop.f32.mrf.mxu0
        %v1609 = vadd.f32 %v339, %v1608
        %v1610 = vpop.f32.mrf.mxu0
        %v1611 = vadd.f32 %v339, %v1610
        %1612 = vmatmul.bf16.gmra.mxu0 %v602
        %v1613 = vpop.f32.mrf.mxu0
        %v1614 = vadd.f32 %v339, %v1613
        %v1615 = vpop.f32.mrf.mxu0
        %v1616 = vadd.f32 %v339, %v1615
        %1617 = vmatmul.bf16.gmra.mxu0 %v605
        %v1618 = vpop.f32.mrf.mxu0
        %v1619 = vadd.f32 %v339, %v1618
        %v1620 = vpop.f32.mrf.mxu0
        %v1621 = vadd.f32 %v339, %v1620
        %1622 = vmatmul.bf16.gmra.mxu0 %v608
        %v1623 = vpop.f32.mrf.mxu0
        %v1624 = vadd.f32 %v339, %v1623
        %v1625 = vpop.f32.mrf.mxu0
        %v1626 = vadd.f32 %v339, %v1625
        %1627 = vmatmul.bf16.gmra.mxu0 %v611
        %v1628 = vpop.f32.mrf.mxu0
        %v1629 = vadd.f32 %v339, %v1628
        %v1630 = vpop.f32.mrf.mxu0
        %v1631 = vadd.f32 %v339, %v1630
        %1632 = vmatmul.bf16.gmra.mxu0 %v614
        %v1633 = vpop.f32.mrf.mxu0
        %v1634 = vadd.f32 %v339, %v1633
        %v1635 = vpop.f32.mrf.mxu0
        %v1636 = vadd.f32 %v339, %v1635
        %1637 = vmatmul.bf16.gmra.mxu0 %v617
        %v1638 = vpop.f32.mrf.mxu0
        %v1639 = vadd.f32 %v339, %v1638
        %v1640 = vpop.f32.mrf.mxu0
        %v1641 = vadd.f32 %v339, %v1640
        %1642 = vmatmul.bf16.gmra.mxu0 %v620
        %v1643 = vpop.f32.mrf.mxu0
        %v1644 = vadd.f32 %v339, %v1643
        %v1645 = vpop.f32.mrf.mxu0
        %v1646 = vadd.f32 %v339, %v1645
        %1647 = vmatmul.bf16.gmra.mxu0 %v623
        %v1648 = vpop.f32.mrf.mxu0
        %v1649 = vadd.f32 %v339, %v1648
        %v1650 = vpop.f32.mrf.mxu0
        %v1651 = vadd.f32 %v339, %v1650
        %1652 = vdwg.mxu0
        %1653 = vmatpush.bf16.msra.mxu0 0
        %1654 = vmatpush.bf16.msra.mxu0 0
        %1655 = vmatpush.bf16.msra.mxu0 0
        %1656 = vmatpush.bf16.msra.mxu0 0
        %1657 = vmatpush.bf16.msra.mxu0 0
        %1658 = vmatpush.bf16.msra.mxu0 0
        %1659 = vmatpush.bf16.msra.mxu0 %v663
        %1660 = vmatpush.bf16.msra.mxu0 %v542
        %1661 = vmatmul.bf16.gmra.mxu0 %v578
        %v1662 = vpop.f32.mrf.mxu0
        %v1663 = vadd.f32 %v340, %v1662
        %v1664 = vpop.f32.mrf.mxu0
        %v1665 = vadd.f32 %v340, %v1664
        %1666 = vmatmul.bf16.gmra.mxu0 %v581
        %v1667 = vpop.f32.mrf.mxu0
        %v1668 = vadd.f32 %v340, %v1667
        %v1669 = vpop.f32.mrf.mxu0
        %v1670 = vadd.f32 %v340, %v1669
        %1671 = vmatmul.bf16.gmra.mxu0 %v584
        %v1672 = vpop.f32.mrf.mxu0
        %v1673 = vadd.f32 %v340, %v1672
        %v1674 = vpop.f32.mrf.mxu0
        %v1675 = vadd.f32 %v340, %v1674
        %1676 = vmatmul.bf16.gmra.mxu0 %v587
        %v1677 = vpop.f32.mrf.mxu0
        %v1678 = vadd.f32 %v340, %v1677
        %v1679 = vpop.f32.mrf.mxu0
        %v1680 = vadd.f32 %v340, %v1679
        %1681 = vmatmul.bf16.gmra.mxu0 %v590
        %v1682 = vpop.f32.mrf.mxu0
        %v1683 = vadd.f32 %v340, %v1682
        %v1684 = vpop.f32.mrf.mxu0
        %v1685 = vadd.f32 %v340, %v1684
        %1686 = vmatmul.bf16.gmra.mxu0 %v593
        %v1687 = vpop.f32.mrf.mxu0
        %v1688 = vadd.f32 %v340, %v1687
        %v1689 = vpop.f32.mrf.mxu0
        %v1690 = vadd.f32 %v340, %v1689
        %1691 = vmatmul.bf16.gmra.mxu0 %v596
        %v1692 = vpop.f32.mrf.mxu0
        %v1693 = vadd.f32 %v340, %v1692
        %v1694 = vpop.f32.mrf.mxu0
        %v1695 = vadd.f32 %v340, %v1694
        %1696 = vmatmul.bf16.gmra.mxu0 %v599
        %v1697 = vpop.f32.mrf.mxu0
        %v1698 = vadd.f32 %v340, %v1697
        %v1699 = vpop.f32.mrf.mxu0
        %v1700 = vadd.f32 %v340, %v1699
        %1701 = vmatmul.bf16.gmra.mxu0 %v602
        %v1702 = vpop.f32.mrf.mxu0
        %v1703 = vadd.f32 %v340, %v1702
        %v1704 = vpop.f32.mrf.mxu0
        %v1705 = vadd.f32 %v340, %v1704
        %1706 = vmatmul.bf16.gmra.mxu0 %v605
        %v1707 = vpop.f32.mrf.mxu0
        %v1708 = vadd.f32 %v340, %v1707
        %v1709 = vpop.f32.mrf.mxu0
        %v1710 = vadd.f32 %v340, %v1709
        %1711 = vmatmul.bf16.gmra.mxu0 %v608
        %v1712 = vpop.f32.mrf.mxu0
        %v1713 = vadd.f32 %v340, %v1712
        %v1714 = vpop.f32.mrf.mxu0
        %v1715 = vadd.f32 %v340, %v1714
        %1716 = vmatmul.bf16.gmra.mxu0 %v611
        %v1717 = vpop.f32.mrf.mxu0
        %v1718 = vadd.f32 %v340, %v1717
        %v1719 = vpop.f32.mrf.mxu0
        %v1720 = vadd.f32 %v340, %v1719
        %1721 = vmatmul.bf16.gmra.mxu0 %v614
        %v1722 = vpop.f32.mrf.mxu0
        %v1723 = vadd.f32 %v340, %v1722
        %v1724 = vpop.f32.mrf.mxu0
        %v1725 = vadd.f32 %v340, %v1724
        %1726 = vmatmul.bf16.gmra.mxu0 %v617
        %v1727 = vpop.f32.mrf.mxu0
        %v1728 = vadd.f32 %v340, %v1727
        %v1729 = vpop.f32.mrf.mxu0
        %v1730 = vadd.f32 %v340, %v1729
        %1731 = vmatmul.bf16.gmra.mxu0 %v620
        %v1732 = vpop.f32.mrf.mxu0
        %v1733 = vadd.f32 %v340, %v1732
        %v1734 = vpop.f32.mrf.mxu0
        %v1735 = vadd.f32 %v340, %v1734
        %1736 = vmatmul.bf16.gmra.mxu0 %v623
        %v1737 = vpop.f32.mrf.mxu0
        %v1738 = vadd.f32 %v340, %v1737
        %v1739 = vpop.f32.mrf.mxu0
        %v1740 = vadd.f32 %v340, %v1739
        %1741 = vdwg.mxu0
        %1742 = vmatpush.bf16.msra.mxu0 0
        %1743 = vmatpush.bf16.msra.mxu0 0
        %1744 = vmatpush.bf16.msra.mxu0 0
        %1745 = vmatpush.bf16.msra.mxu0 0
        %1746 = vmatpush.bf16.msra.mxu0 0
        %1747 = vmatpush.bf16.msra.mxu0 0
        %1748 = vmatpush.bf16.msra.mxu0 %v666
        %1749 = vmatpush.bf16.msra.mxu0 %v543
        %1750 = vmatmul.bf16.gmra.mxu0 %v578
        %v1751 = vpop.f32.mrf.mxu0
        %v1752 = vadd.f32 %v341, %v1751
        %v1753 = vpop.f32.mrf.mxu0
        %v1754 = vadd.f32 %v341, %v1753
        %1755 = vmatmul.bf16.gmra.mxu0 %v581
        %v1756 = vpop.f32.mrf.mxu0
        %v1757 = vadd.f32 %v341, %v1756
        %v1758 = vpop.f32.mrf.mxu0
        %v1759 = vadd.f32 %v341, %v1758
        %1760 = vmatmul.bf16.gmra.mxu0 %v584
        %v1761 = vpop.f32.mrf.mxu0
        %v1762 = vadd.f32 %v341, %v1761
        %v1763 = vpop.f32.mrf.mxu0
        %v1764 = vadd.f32 %v341, %v1763
        %1765 = vmatmul.bf16.gmra.mxu0 %v587
        %v1766 = vpop.f32.mrf.mxu0
        %v1767 = vadd.f32 %v341, %v1766
        %v1768 = vpop.f32.mrf.mxu0
        %v1769 = vadd.f32 %v341, %v1768
        %1770 = vmatmul.bf16.gmra.mxu0 %v590
        %v1771 = vpop.f32.mrf.mxu0
        %v1772 = vadd.f32 %v341, %v1771
        %v1773 = vpop.f32.mrf.mxu0
        %v1774 = vadd.f32 %v341, %v1773
        %1775 = vmatmul.bf16.gmra.mxu0 %v593
        %v1776 = vpop.f32.mrf.mxu0
        %v1777 = vadd.f32 %v341, %v1776
        %v1778 = vpop.f32.mrf.mxu0
        %v1779 = vadd.f32 %v341, %v1778
        %1780 = vmatmul.bf16.gmra.mxu0 %v596
        %v1781 = vpop.f32.mrf.mxu0
        %v1782 = vadd.f32 %v341, %v1781
        %v1783 = vpop.f32.mrf.mxu0
        %v1784 = vadd.f32 %v341, %v1783
        %1785 = vmatmul.bf16.gmra.mxu0 %v599
        %v1786 = vpop.f32.mrf.mxu0
        %v1787 = vadd.f32 %v341, %v1786
        %v1788 = vpop.f32.mrf.mxu0
        %v1789 = vadd.f32 %v341, %v1788
        %1790 = vmatmul.bf16.gmra.mxu0 %v602
        %v1791 = vpop.f32.mrf.mxu0
        %v1792 = vadd.f32 %v341, %v1791
        %v1793 = vpop.f32.mrf.mxu0
        %v1794 = vadd.f32 %v341, %v1793
        %1795 = vmatmul.bf16.gmra.mxu0 %v605
        %v1796 = vpop.f32.mrf.mxu0
        %v1797 = vadd.f32 %v341, %v1796
        %v1798 = vpop.f32.mrf.mxu0
        %v1799 = vadd.f32 %v341, %v1798
        %1800 = vmatmul.bf16.gmra.mxu0 %v608
        %v1801 = vpop.f32.mrf.mxu0
        %v1802 = vadd.f32 %v341, %v1801
        %v1803 = vpop.f32.mrf.mxu0
        %v1804 = vadd.f32 %v341, %v1803
        %1805 = vmatmul.bf16.gmra.mxu0 %v611
        %v1806 = vpop.f32.mrf.mxu0
        %v1807 = vadd.f32 %v341, %v1806
        %v1808 = vpop.f32.mrf.mxu0
        %v1809 = vadd.f32 %v341, %v1808
        %1810 = vmatmul.bf16.gmra.mxu0 %v614
        %v1811 = vpop.f32.mrf.mxu0
        %v1812 = vadd.f32 %v341, %v1811
        %v1813 = vpop.f32.mrf.mxu0
        %v1814 = vadd.f32 %v341, %v1813
        %1815 = vmatmul.bf16.gmra.mxu0 %v617
        %v1816 = vpop.f32.mrf.mxu0
        %v1817 = vadd.f32 %v341, %v1816
        %v1818 = vpop.f32.mrf.mxu0
        %v1819 = vadd.f32 %v341, %v1818
        %1820 = vmatmul.bf16.gmra.mxu0 %v620
        %v1821 = vpop.f32.mrf.mxu0
        %v1822 = vadd.f32 %v341, %v1821
        %v1823 = vpop.f32.mrf.mxu0
        %v1824 = vadd.f32 %v341, %v1823
        %1825 = vmatmul.bf16.gmra.mxu0 %v623
        %v1826 = vpop.f32.mrf.mxu0
        %v1827 = vadd.f32 %v341, %v1826
        %v1828 = vpop.f32.mrf.mxu0
        %v1829 = vadd.f32 %v341, %v1828
        %1830 = vdwg.mxu0
        %1831 = vmatpush.bf16.msra.mxu0 0
        %1832 = vmatpush.bf16.msra.mxu0 0
        %1833 = vmatpush.bf16.msra.mxu0 0
        %1834 = vmatpush.bf16.msra.mxu0 0
        %1835 = vmatpush.bf16.msra.mxu0 0
        %1836 = vmatpush.bf16.msra.mxu0 0
        %1837 = vmatpush.bf16.msra.mxu0 %v669
        %1838 = vmatpush.bf16.msra.mxu0 %v544
        %1839 = vmatmul.bf16.gmra.mxu0 %v578
        %v1840 = vpop.f32.mrf.mxu0
        %v1841 = vadd.f32 %v342, %v1840
        %v1842 = vpop.f32.mrf.mxu0
        %v1843 = vadd.f32 %v342, %v1842
        %1844 = vmatmul.bf16.gmra.mxu0 %v581
        %v1845 = vpop.f32.mrf.mxu0
        %v1846 = vadd.f32 %v342, %v1845
        %v1847 = vpop.f32.mrf.mxu0
        %v1848 = vadd.f32 %v342, %v1847
        %1849 = vmatmul.bf16.gmra.mxu0 %v584
        %v1850 = vpop.f32.mrf.mxu0
        %v1851 = vadd.f32 %v342, %v1850
        %v1852 = vpop.f32.mrf.mxu0
        %v1853 = vadd.f32 %v342, %v1852
        %1854 = vmatmul.bf16.gmra.mxu0 %v587
        %v1855 = vpop.f32.mrf.mxu0
        %v1856 = vadd.f32 %v342, %v1855
        %v1857 = vpop.f32.mrf.mxu0
        %v1858 = vadd.f32 %v342, %v1857
        %1859 = vmatmul.bf16.gmra.mxu0 %v590
        %v1860 = vpop.f32.mrf.mxu0
        %v1861 = vadd.f32 %v342, %v1860
        %v1862 = vpop.f32.mrf.mxu0
        %v1863 = vadd.f32 %v342, %v1862
        %1864 = vmatmul.bf16.gmra.mxu0 %v593
        %v1865 = vpop.f32.mrf.mxu0
        %v1866 = vadd.f32 %v342, %v1865
        %v1867 = vpop.f32.mrf.mxu0
        %v1868 = vadd.f32 %v342, %v1867
        %1869 = vmatmul.bf16.gmra.mxu0 %v596
        %v1870 = vpop.f32.mrf.mxu0
        %v1871 = vadd.f32 %v342, %v1870
        %v1872 = vpop.f32.mrf.mxu0
        %v1873 = vadd.f32 %v342, %v1872
        %1874 = vmatmul.bf16.gmra.mxu0 %v599
        %v1875 = vpop.f32.mrf.mxu0
        %v1876 = vadd.f32 %v342, %v1875
        %v1877 = vpop.f32.mrf.mxu0
        %v1878 = vadd.f32 %v342, %v1877
        %1879 = vmatmul.bf16.gmra.mxu0 %v602
        %v1880 = vpop.f32.mrf.mxu0
        %v1881 = vadd.f32 %v342, %v1880
        %v1882 = vpop.f32.mrf.mxu0
        %v1883 = vadd.f32 %v342, %v1882
        %1884 = vmatmul.bf16.gmra.mxu0 %v605
        %v1885 = vpop.f32.mrf.mxu0
        %v1886 = vadd.f32 %v342, %v1885
        %v1887 = vpop.f32.mrf.mxu0
        %v1888 = vadd.f32 %v342, %v1887
        %1889 = vmatmul.bf16.gmra.mxu0 %v608
        %v1890 = vpop.f32.mrf.mxu0
        %v1891 = vadd.f32 %v342, %v1890
        %v1892 = vpop.f32.mrf.mxu0
        %v1893 = vadd.f32 %v342, %v1892
        %1894 = vmatmul.bf16.gmra.mxu0 %v611
        %v1895 = vpop.f32.mrf.mxu0
        %v1896 = vadd.f32 %v342, %v1895
        %v1897 = vpop.f32.mrf.mxu0
        %v1898 = vadd.f32 %v342, %v1897
        %1899 = vmatmul.bf16.gmra.mxu0 %v614
        %v1900 = vpop.f32.mrf.mxu0
        %v1901 = vadd.f32 %v342, %v1900
        %v1902 = vpop.f32.mrf.mxu0
        %v1903 = vadd.f32 %v342, %v1902
        %1904 = vmatmul.bf16.gmra.mxu0 %v617
        %v1905 = vpop.f32.mrf.mxu0
        %v1906 = vadd.f32 %v342, %v1905
        %v1907 = vpop.f32.mrf.mxu0
        %v1908 = vadd.f32 %v342, %v1907
        %1909 = vmatmul.bf16.gmra.mxu0 %v620
        %v1910 = vpop.f32.mrf.mxu0
        %v1911 = vadd.f32 %v342, %v1910
        %v1912 = vpop.f32.mrf.mxu0
        %v1913 = vadd.f32 %v342, %v1912
        %1914 = vmatmul.bf16.gmra.mxu0 %v623
        %v1915 = vpop.f32.mrf.mxu0
        %v1916 = vadd.f32 %v342, %v1915
        %v1917 = vpop.f32.mrf.mxu0
        %v1918 = vadd.f32 %v342, %v1917
        %1919 = vdwg.mxu0
        %1920 = vmatpush.bf16.msra.mxu0 0
        %1921 = vmatpush.bf16.msra.mxu0 0
        %1922 = vmatpush.bf16.msra.mxu0 0
        %1923 = vmatpush.bf16.msra.mxu0 0
        %1924 = vmatpush.bf16.msra.mxu0 0
        %1925 = vmatpush.bf16.msra.mxu0 0
        %1926 = vmatpush.bf16.msra.mxu0 %v672
        %1927 = vmatpush.bf16.msra.mxu0 %v545
        %1928 = vmatmul.bf16.gmra.mxu0 %v578
        %v1929 = vpop.f32.mrf.mxu0
        %v1930 = vadd.f32 %v343, %v1929
        %v1931 = vpop.f32.mrf.mxu0
        %v1932 = vadd.f32 %v343, %v1931
        %1933 = vmatmul.bf16.gmra.mxu0 %v581
        %v1934 = vpop.f32.mrf.mxu0
        %v1935 = vadd.f32 %v343, %v1934
        %v1936 = vpop.f32.mrf.mxu0
        %v1937 = vadd.f32 %v343, %v1936
        %1938 = vmatmul.bf16.gmra.mxu0 %v584
        %v1939 = vpop.f32.mrf.mxu0
        %v1940 = vadd.f32 %v343, %v1939
        %v1941 = vpop.f32.mrf.mxu0
        %v1942 = vadd.f32 %v343, %v1941
        %1943 = vmatmul.bf16.gmra.mxu0 %v587
        %v1944 = vpop.f32.mrf.mxu0
        %v1945 = vadd.f32 %v343, %v1944
        %v1946 = vpop.f32.mrf.mxu0
        %v1947 = vadd.f32 %v343, %v1946
        %1948 = vmatmul.bf16.gmra.mxu0 %v590
        %v1949 = vpop.f32.mrf.mxu0
        %v1950 = vadd.f32 %v343, %v1949
        %v1951 = vpop.f32.mrf.mxu0
        %v1952 = vadd.f32 %v343, %v1951
        %1953 = vmatmul.bf16.gmra.mxu0 %v593
        %v1954 = vpop.f32.mrf.mxu0
        %v1955 = vadd.f32 %v343, %v1954
        %v1956 = vpop.f32.mrf.mxu0
        %v1957 = vadd.f32 %v343, %v1956
        %1958 = vmatmul.bf16.gmra.mxu0 %v596
        %v1959 = vpop.f32.mrf.mxu0
        %v1960 = vadd.f32 %v343, %v1959
        %v1961 = vpop.f32.mrf.mxu0
        %v1962 = vadd.f32 %v343, %v1961
        %1963 = vmatmul.bf16.gmra.mxu0 %v599
        %v1964 = vpop.f32.mrf.mxu0
        %v1965 = vadd.f32 %v343, %v1964
        %v1966 = vpop.f32.mrf.mxu0
        %v1967 = vadd.f32 %v343, %v1966
        %1968 = vmatmul.bf16.gmra.mxu0 %v602
        %v1969 = vpop.f32.mrf.mxu0
        %v1970 = vadd.f32 %v343, %v1969
        %v1971 = vpop.f32.mrf.mxu0
        %v1972 = vadd.f32 %v343, %v1971
        %1973 = vmatmul.bf16.gmra.mxu0 %v605
        %v1974 = vpop.f32.mrf.mxu0
        %v1975 = vadd.f32 %v343, %v1974
        %v1976 = vpop.f32.mrf.mxu0
        %v1977 = vadd.f32 %v343, %v1976
        %1978 = vmatmul.bf16.gmra.mxu0 %v608
        %v1979 = vpop.f32.mrf.mxu0
        %v1980 = vadd.f32 %v343, %v1979
        %v1981 = vpop.f32.mrf.mxu0
        %v1982 = vadd.f32 %v343, %v1981
        %1983 = vmatmul.bf16.gmra.mxu0 %v611
        %v1984 = vpop.f32.mrf.mxu0
        %v1985 = vadd.f32 %v343, %v1984
        %v1986 = vpop.f32.mrf.mxu0
        %v1987 = vadd.f32 %v343, %v1986
        %1988 = vmatmul.bf16.gmra.mxu0 %v614
        %v1989 = vpop.f32.mrf.mxu0
        %v1990 = vadd.f32 %v343, %v1989
        %v1991 = vpop.f32.mrf.mxu0
        %v1992 = vadd.f32 %v343, %v1991
        %1993 = vmatmul.bf16.gmra.mxu0 %v617
        %v1994 = vpop.f32.mrf.mxu0
        %v1995 = vadd.f32 %v343, %v1994
        %v1996 = vpop.f32.mrf.mxu0
        %v1997 = vadd.f32 %v343, %v1996
        %1998 = vmatmul.bf16.gmra.mxu0 %v620
        %v1999 = vpop.f32.mrf.mxu0
        %v2000 = vadd.f32 %v343, %v1999
        %v2001 = vpop.f32.mrf.mxu0
        %v2002 = vadd.f32 %v343, %v2001
        %2003 = vmatmul.bf16.gmra.mxu0 %v623
        %v2004 = vpop.f32.mrf.mxu0
        %v2005 = vadd.f32 %v343, %v2004
        %v2006 = vpop.f32.mrf.mxu0
        %v2007 = vadd.f32 %v343, %v2006
        %2008 = vdwg.mxu0
        %v2009 = vmax.f32 %v684, 0.0
        %v2010 = vmax.f32 %v773, 0.0
        %v2011 = vmax.f32 %v862, 0.0
        %v2012 = vmax.f32 %v951, 0.0
        %v2013 = vmax.f32 %v1040, 0.0
        %v2014 = vmax.f32 %v1129, 0.0
        %v2015 = vmax.f32 %v1218, 0.0
        %v2016 = vmax.f32 %v1307, 0.0
        %v2017 = vmax.f32 %v1396, 0.0
        %v2018 = vmax.f32 %v1485, 0.0
        %v2019 = vmax.f32 %v1574, 0.0
        %v2020 = vmax.f32 %v1663, 0.0
        %v2021 = vmax.f32 %v1752, 0.0
        %v2022 = vmax.f32 %v1841, 0.0
        %v2023 = vmax.f32 %v1930, 0.0
        %v2024 = vmax.f32 %v686, 0.0
        %v2025 = vmax.f32 %v775, 0.0
        %v2026 = vmax.f32 %v864, 0.0
        %v2027 = vmax.f32 %v953, 0.0
        %v2028 = vmax.f32 %v1042, 0.0
        %v2029 = vmax.f32 %v1131, 0.0
        %v2030 = vmax.f32 %v1220, 0.0
        %v2031 = vmax.f32 %v1309, 0.0
        %v2032 = vmax.f32 %v1398, 0.0
        %v2033 = vmax.f32 %v1487, 0.0
        %v2034 = vmax.f32 %v1576, 0.0
        %v2035 = vmax.f32 %v1665, 0.0
        %v2036 = vmax.f32 %v1754, 0.0
        %v2037 = vmax.f32 %v1843, 0.0
        %v2038 = vmax.f32 %v1932, 0.0
        %v2039 = vmax.f32 %v689, 0.0
        %v2040 = vmax.f32 %v778, 0.0
        %v2041 = vmax.f32 %v867, 0.0
        %v2042 = vmax.f32 %v956, 0.0
        %v2043 = vmax.f32 %v1045, 0.0
        %v2044 = vmax.f32 %v1134, 0.0
        %v2045 = vmax.f32 %v1223, 0.0
        %v2046 = vmax.f32 %v1312, 0.0
        %v2047 = vmax.f32 %v1401, 0.0
        %v2048 = vmax.f32 %v1490, 0.0
        %v2049 = vmax.f32 %v1579, 0.0
        %v2050 = vmax.f32 %v1668, 0.0
        %v2051 = vmax.f32 %v1757, 0.0
        %v2052 = vmax.f32 %v1846, 0.0
        %v2053 = vmax.f32 %v1935, 0.0
        %v2054 = vmax.f32 %v691, 0.0
        %v2055 = vmax.f32 %v780, 0.0
        %v2056 = vmax.f32 %v869, 0.0
        %v2057 = vmax.f32 %v958, 0.0
        %v2058 = vmax.f32 %v1047, 0.0
        %v2059 = vmax.f32 %v1136, 0.0
        %v2060 = vmax.f32 %v1225, 0.0
        %v2061 = vmax.f32 %v1314, 0.0
        %v2062 = vmax.f32 %v1403, 0.0
        %v2063 = vmax.f32 %v1492, 0.0
        %v2064 = vmax.f32 %v1581, 0.0
        %v2065 = vmax.f32 %v1670, 0.0
        %v2066 = vmax.f32 %v1759, 0.0
        %v2067 = vmax.f32 %v1848, 0.0
        %v2068 = vmax.f32 %v1937, 0.0
        %v2069 = vmax.f32 %v694, 0.0
        %v2070 = vmax.f32 %v783, 0.0
        %v2071 = vmax.f32 %v872, 0.0
        %v2072 = vmax.f32 %v961, 0.0
        %v2073 = vmax.f32 %v1050, 0.0
        %v2074 = vmax.f32 %v1139, 0.0
        %v2075 = vmax.f32 %v1228, 0.0
        %v2076 = vmax.f32 %v1317, 0.0
        %v2077 = vmax.f32 %v1406, 0.0
        %v2078 = vmax.f32 %v1495, 0.0
        %v2079 = vmax.f32 %v1584, 0.0
        %v2080 = vmax.f32 %v1673, 0.0
        %v2081 = vmax.f32 %v1762, 0.0
        %v2082 = vmax.f32 %v1851, 0.0
        %v2083 = vmax.f32 %v1940, 0.0
        %v2084 = vmax.f32 %v696, 0.0
        %v2085 = vmax.f32 %v785, 0.0
        %v2086 = vmax.f32 %v874, 0.0
        %v2087 = vmax.f32 %v963, 0.0
        %v2088 = vmax.f32 %v1052, 0.0
        %v2089 = vmax.f32 %v1141, 0.0
        %v2090 = vmax.f32 %v1230, 0.0
        %v2091 = vmax.f32 %v1319, 0.0
        %v2092 = vmax.f32 %v1408, 0.0
        %v2093 = vmax.f32 %v1497, 0.0
        %v2094 = vmax.f32 %v1586, 0.0
        %v2095 = vmax.f32 %v1675, 0.0
        %v2096 = vmax.f32 %v1764, 0.0
        %v2097 = vmax.f32 %v1853, 0.0
        %v2098 = vmax.f32 %v1942, 0.0
        %v2099 = vmax.f32 %v699, 0.0
        %v2100 = vmax.f32 %v788, 0.0
        %v2101 = vmax.f32 %v877, 0.0
        %v2102 = vmax.f32 %v966, 0.0
        %v2103 = vmax.f32 %v1055, 0.0
        %v2104 = vmax.f32 %v1144, 0.0
        %v2105 = vmax.f32 %v1233, 0.0
        %v2106 = vmax.f32 %v1322, 0.0
        %v2107 = vmax.f32 %v1411, 0.0
        %v2108 = vmax.f32 %v1500, 0.0
        %v2109 = vmax.f32 %v1589, 0.0
        %v2110 = vmax.f32 %v1678, 0.0
        %v2111 = vmax.f32 %v1767, 0.0
        %v2112 = vmax.f32 %v1856, 0.0
        %v2113 = vmax.f32 %v1945, 0.0
        %v2114 = vmax.f32 %v701, 0.0
        %v2115 = vmax.f32 %v790, 0.0
        %v2116 = vmax.f32 %v879, 0.0
        %v2117 = vmax.f32 %v968, 0.0
        %v2118 = vmax.f32 %v1057, 0.0
        %v2119 = vmax.f32 %v1146, 0.0
        %v2120 = vmax.f32 %v1235, 0.0
        %v2121 = vmax.f32 %v1324, 0.0
        %v2122 = vmax.f32 %v1413, 0.0
        %v2123 = vmax.f32 %v1502, 0.0
        %v2124 = vmax.f32 %v1591, 0.0
        %v2125 = vmax.f32 %v1680, 0.0
        %v2126 = vmax.f32 %v1769, 0.0
        %v2127 = vmax.f32 %v1858, 0.0
        %v2128 = vmax.f32 %v1947, 0.0
        %v2129 = vmax.f32 %v704, 0.0
        %v2130 = vmax.f32 %v793, 0.0
        %v2131 = vmax.f32 %v882, 0.0
        %v2132 = vmax.f32 %v971, 0.0
        %v2133 = vmax.f32 %v1060, 0.0
        %v2134 = vmax.f32 %v1149, 0.0
        %v2135 = vmax.f32 %v1238, 0.0
        %v2136 = vmax.f32 %v1327, 0.0
        %v2137 = vmax.f32 %v1416, 0.0
        %v2138 = vmax.f32 %v1505, 0.0
        %v2139 = vmax.f32 %v1594, 0.0
        %v2140 = vmax.f32 %v1683, 0.0
        %v2141 = vmax.f32 %v1772, 0.0
        %v2142 = vmax.f32 %v1861, 0.0
        %v2143 = vmax.f32 %v1950, 0.0
        %v2144 = vmax.f32 %v706, 0.0
        %v2145 = vmax.f32 %v795, 0.0
        %v2146 = vmax.f32 %v884, 0.0
        %v2147 = vmax.f32 %v973, 0.0
        %v2148 = vmax.f32 %v1062, 0.0
        %v2149 = vmax.f32 %v1151, 0.0
        %v2150 = vmax.f32 %v1240, 0.0
        %v2151 = vmax.f32 %v1329, 0.0
        %v2152 = vmax.f32 %v1418, 0.0
        %v2153 = vmax.f32 %v1507, 0.0
        %v2154 = vmax.f32 %v1596, 0.0
        %v2155 = vmax.f32 %v1685, 0.0
        %v2156 = vmax.f32 %v1774, 0.0
        %v2157 = vmax.f32 %v1863, 0.0
        %v2158 = vmax.f32 %v1952, 0.0
        %v2159 = vmax.f32 %v709, 0.0
        %v2160 = vmax.f32 %v798, 0.0
        %v2161 = vmax.f32 %v887, 0.0
        %v2162 = vmax.f32 %v976, 0.0
        %v2163 = vmax.f32 %v1065, 0.0
        %v2164 = vmax.f32 %v1154, 0.0
        %v2165 = vmax.f32 %v1243, 0.0
        %v2166 = vmax.f32 %v1332, 0.0
        %v2167 = vmax.f32 %v1421, 0.0
        %v2168 = vmax.f32 %v1510, 0.0
        %v2169 = vmax.f32 %v1599, 0.0
        %v2170 = vmax.f32 %v1688, 0.0
        %v2171 = vmax.f32 %v1777, 0.0
        %v2172 = vmax.f32 %v1866, 0.0
        %v2173 = vmax.f32 %v1955, 0.0
        %v2174 = vmax.f32 %v711, 0.0
        %v2175 = vmax.f32 %v800, 0.0
        %v2176 = vmax.f32 %v889, 0.0
        %v2177 = vmax.f32 %v978, 0.0
        %v2178 = vmax.f32 %v1067, 0.0
        %v2179 = vmax.f32 %v1156, 0.0
        %v2180 = vmax.f32 %v1245, 0.0
        %v2181 = vmax.f32 %v1334, 0.0
        %v2182 = vmax.f32 %v1423, 0.0
        %v2183 = vmax.f32 %v1512, 0.0
        %v2184 = vmax.f32 %v1601, 0.0
        %v2185 = vmax.f32 %v1690, 0.0
        %v2186 = vmax.f32 %v1779, 0.0
        %v2187 = vmax.f32 %v1868, 0.0
        %v2188 = vmax.f32 %v1957, 0.0
        %v2189 = vmax.f32 %v714, 0.0
        %v2190 = vmax.f32 %v803, 0.0
        %v2191 = vmax.f32 %v892, 0.0
        %v2192 = vmax.f32 %v981, 0.0
        %v2193 = vmax.f32 %v1070, 0.0
        %v2194 = vmax.f32 %v1159, 0.0
        %v2195 = vmax.f32 %v1248, 0.0
        %v2196 = vmax.f32 %v1337, 0.0
        %v2197 = vmax.f32 %v1426, 0.0
        %v2198 = vmax.f32 %v1515, 0.0
        %v2199 = vmax.f32 %v1604, 0.0
        %v2200 = vmax.f32 %v1693, 0.0
        %v2201 = vmax.f32 %v1782, 0.0
        %v2202 = vmax.f32 %v1871, 0.0
        %v2203 = vmax.f32 %v1960, 0.0
        %v2204 = vmax.f32 %v716, 0.0
        %v2205 = vmax.f32 %v805, 0.0
        %v2206 = vmax.f32 %v894, 0.0
        %v2207 = vmax.f32 %v983, 0.0
        %v2208 = vmax.f32 %v1072, 0.0
        %v2209 = vmax.f32 %v1161, 0.0
        %v2210 = vmax.f32 %v1250, 0.0
        %v2211 = vmax.f32 %v1339, 0.0
        %v2212 = vmax.f32 %v1428, 0.0
        %v2213 = vmax.f32 %v1517, 0.0
        %v2214 = vmax.f32 %v1606, 0.0
        %v2215 = vmax.f32 %v1695, 0.0
        %v2216 = vmax.f32 %v1784, 0.0
        %v2217 = vmax.f32 %v1873, 0.0
        %v2218 = vmax.f32 %v1962, 0.0
        %v2219 = vmax.f32 %v719, 0.0
        %v2220 = vmax.f32 %v808, 0.0
        %v2221 = vmax.f32 %v897, 0.0
        %v2222 = vmax.f32 %v986, 0.0
        %v2223 = vmax.f32 %v1075, 0.0
        %v2224 = vmax.f32 %v1164, 0.0
        %v2225 = vmax.f32 %v1253, 0.0
        %v2226 = vmax.f32 %v1342, 0.0
        %v2227 = vmax.f32 %v1431, 0.0
        %v2228 = vmax.f32 %v1520, 0.0
        %v2229 = vmax.f32 %v1609, 0.0
        %v2230 = vmax.f32 %v1698, 0.0
        %v2231 = vmax.f32 %v1787, 0.0
        %v2232 = vmax.f32 %v1876, 0.0
        %v2233 = vmax.f32 %v1965, 0.0
        %v2234 = vmax.f32 %v721, 0.0
        %v2235 = vmax.f32 %v810, 0.0
        %v2236 = vmax.f32 %v899, 0.0
        %v2237 = vmax.f32 %v988, 0.0
        %v2238 = vmax.f32 %v1077, 0.0
        %v2239 = vmax.f32 %v1166, 0.0
        %v2240 = vmax.f32 %v1255, 0.0
        %v2241 = vmax.f32 %v1344, 0.0
        %v2242 = vmax.f32 %v1433, 0.0
        %v2243 = vmax.f32 %v1522, 0.0
        %v2244 = vmax.f32 %v1611, 0.0
        %v2245 = vmax.f32 %v1700, 0.0
        %v2246 = vmax.f32 %v1789, 0.0
        %v2247 = vmax.f32 %v1878, 0.0
        %v2248 = vmax.f32 %v1967, 0.0
        %v2249 = vmax.f32 %v724, 0.0
        %v2250 = vmax.f32 %v813, 0.0
        %v2251 = vmax.f32 %v902, 0.0
        %v2252 = vmax.f32 %v991, 0.0
        %v2253 = vmax.f32 %v1080, 0.0
        %v2254 = vmax.f32 %v1169, 0.0
        %v2255 = vmax.f32 %v1258, 0.0
        %v2256 = vmax.f32 %v1347, 0.0
        %v2257 = vmax.f32 %v1436, 0.0
        %v2258 = vmax.f32 %v1525, 0.0
        %v2259 = vmax.f32 %v1614, 0.0
        %v2260 = vmax.f32 %v1703, 0.0
        %v2261 = vmax.f32 %v1792, 0.0
        %v2262 = vmax.f32 %v1881, 0.0
        %v2263 = vmax.f32 %v1970, 0.0
        %v2264 = vmax.f32 %v726, 0.0
        %v2265 = vmax.f32 %v815, 0.0
        %v2266 = vmax.f32 %v904, 0.0
        %v2267 = vmax.f32 %v993, 0.0
        %v2268 = vmax.f32 %v1082, 0.0
        %v2269 = vmax.f32 %v1171, 0.0
        %v2270 = vmax.f32 %v1260, 0.0
        %v2271 = vmax.f32 %v1349, 0.0
        %v2272 = vmax.f32 %v1438, 0.0
        %v2273 = vmax.f32 %v1527, 0.0
        %v2274 = vmax.f32 %v1616, 0.0
        %v2275 = vmax.f32 %v1705, 0.0
        %v2276 = vmax.f32 %v1794, 0.0
        %v2277 = vmax.f32 %v1883, 0.0
        %v2278 = vmax.f32 %v1972, 0.0
        %v2279 = vmax.f32 %v729, 0.0
        %v2280 = vmax.f32 %v818, 0.0
        %v2281 = vmax.f32 %v907, 0.0
        %v2282 = vmax.f32 %v996, 0.0
        %v2283 = vmax.f32 %v1085, 0.0
        %v2284 = vmax.f32 %v1174, 0.0
        %v2285 = vmax.f32 %v1263, 0.0
        %v2286 = vmax.f32 %v1352, 0.0
        %v2287 = vmax.f32 %v1441, 0.0
        %v2288 = vmax.f32 %v1530, 0.0
        %v2289 = vmax.f32 %v1619, 0.0
        %v2290 = vmax.f32 %v1708, 0.0
        %v2291 = vmax.f32 %v1797, 0.0
        %v2292 = vmax.f32 %v1886, 0.0
        %v2293 = vmax.f32 %v1975, 0.0
        %v2294 = vmax.f32 %v731, 0.0
        %v2295 = vmax.f32 %v820, 0.0
        %v2296 = vmax.f32 %v909, 0.0
        %v2297 = vmax.f32 %v998, 0.0
        %v2298 = vmax.f32 %v1087, 0.0
        %v2299 = vmax.f32 %v1176, 0.0
        %v2300 = vmax.f32 %v1265, 0.0
        %v2301 = vmax.f32 %v1354, 0.0
        %v2302 = vmax.f32 %v1443, 0.0
        %v2303 = vmax.f32 %v1532, 0.0
        %v2304 = vmax.f32 %v1621, 0.0
        %v2305 = vmax.f32 %v1710, 0.0
        %v2306 = vmax.f32 %v1799, 0.0
        %v2307 = vmax.f32 %v1888, 0.0
        %v2308 = vmax.f32 %v1977, 0.0
        %v2309 = vmax.f32 %v734, 0.0
        %v2310 = vmax.f32 %v823, 0.0
        %v2311 = vmax.f32 %v912, 0.0
        %v2312 = vmax.f32 %v1001, 0.0
        %v2313 = vmax.f32 %v1090, 0.0
        %v2314 = vmax.f32 %v1179, 0.0
        %v2315 = vmax.f32 %v1268, 0.0
        %v2316 = vmax.f32 %v1357, 0.0
        %v2317 = vmax.f32 %v1446, 0.0
        %v2318 = vmax.f32 %v1535, 0.0
        %v2319 = vmax.f32 %v1624, 0.0
        %v2320 = vmax.f32 %v1713, 0.0
        %v2321 = vmax.f32 %v1802, 0.0
        %v2322 = vmax.f32 %v1891, 0.0
        %v2323 = vmax.f32 %v1980, 0.0
        %v2324 = vmax.f32 %v736, 0.0
        %v2325 = vmax.f32 %v825, 0.0
        %v2326 = vmax.f32 %v914, 0.0
        %v2327 = vmax.f32 %v1003, 0.0
        %v2328 = vmax.f32 %v1092, 0.0
        %v2329 = vmax.f32 %v1181, 0.0
        %v2330 = vmax.f32 %v1270, 0.0
        %v2331 = vmax.f32 %v1359, 0.0
        %v2332 = vmax.f32 %v1448, 0.0
        %v2333 = vmax.f32 %v1537, 0.0
        %v2334 = vmax.f32 %v1626, 0.0
        %v2335 = vmax.f32 %v1715, 0.0
        %v2336 = vmax.f32 %v1804, 0.0
        %v2337 = vmax.f32 %v1893, 0.0
        %v2338 = vmax.f32 %v1982, 0.0
        %v2339 = vmax.f32 %v739, 0.0
        %v2340 = vmax.f32 %v828, 0.0
        %v2341 = vmax.f32 %v917, 0.0
        %v2342 = vmax.f32 %v1006, 0.0
        %v2343 = vmax.f32 %v1095, 0.0
        %v2344 = vmax.f32 %v1184, 0.0
        %v2345 = vmax.f32 %v1273, 0.0
        %v2346 = vmax.f32 %v1362, 0.0
        %v2347 = vmax.f32 %v1451, 0.0
        %v2348 = vmax.f32 %v1540, 0.0
        %v2349 = vmax.f32 %v1629, 0.0
        %v2350 = vmax.f32 %v1718, 0.0
        %v2351 = vmax.f32 %v1807, 0.0
        %v2352 = vmax.f32 %v1896, 0.0
        %v2353 = vmax.f32 %v1985, 0.0
        %v2354 = vmax.f32 %v741, 0.0
        %v2355 = vmax.f32 %v830, 0.0
        %v2356 = vmax.f32 %v919, 0.0
        %v2357 = vmax.f32 %v1008, 0.0
        %v2358 = vmax.f32 %v1097, 0.0
        %v2359 = vmax.f32 %v1186, 0.0
        %v2360 = vmax.f32 %v1275, 0.0
        %v2361 = vmax.f32 %v1364, 0.0
        %v2362 = vmax.f32 %v1453, 0.0
        %v2363 = vmax.f32 %v1542, 0.0
        %v2364 = vmax.f32 %v1631, 0.0
        %v2365 = vmax.f32 %v1720, 0.0
        %v2366 = vmax.f32 %v1809, 0.0
        %v2367 = vmax.f32 %v1898, 0.0
        %v2368 = vmax.f32 %v1987, 0.0
        %v2369 = vmax.f32 %v744, 0.0
        %v2370 = vmax.f32 %v833, 0.0
        %v2371 = vmax.f32 %v922, 0.0
        %v2372 = vmax.f32 %v1011, 0.0
        %v2373 = vmax.f32 %v1100, 0.0
        %v2374 = vmax.f32 %v1189, 0.0
        %v2375 = vmax.f32 %v1278, 0.0
        %v2376 = vmax.f32 %v1367, 0.0
        %v2377 = vmax.f32 %v1456, 0.0
        %v2378 = vmax.f32 %v1545, 0.0
        %v2379 = vmax.f32 %v1634, 0.0
        %v2380 = vmax.f32 %v1723, 0.0
        %v2381 = vmax.f32 %v1812, 0.0
        %v2382 = vmax.f32 %v1901, 0.0
        %v2383 = vmax.f32 %v1990, 0.0
        %v2384 = vmax.f32 %v746, 0.0
        %v2385 = vmax.f32 %v835, 0.0
        %v2386 = vmax.f32 %v924, 0.0
        %v2387 = vmax.f32 %v1013, 0.0
        %v2388 = vmax.f32 %v1102, 0.0
        %v2389 = vmax.f32 %v1191, 0.0
        %v2390 = vmax.f32 %v1280, 0.0
        %v2391 = vmax.f32 %v1369, 0.0
        %v2392 = vmax.f32 %v1458, 0.0
        %v2393 = vmax.f32 %v1547, 0.0
        %v2394 = vmax.f32 %v1636, 0.0
        %v2395 = vmax.f32 %v1725, 0.0
        %v2396 = vmax.f32 %v1814, 0.0
        %v2397 = vmax.f32 %v1903, 0.0
        %v2398 = vmax.f32 %v1992, 0.0
        %v2399 = vmax.f32 %v749, 0.0
        %v2400 = vmax.f32 %v838, 0.0
        %v2401 = vmax.f32 %v927, 0.0
        %v2402 = vmax.f32 %v1016, 0.0
        %v2403 = vmax.f32 %v1105, 0.0
        %v2404 = vmax.f32 %v1194, 0.0
        %v2405 = vmax.f32 %v1283, 0.0
        %v2406 = vmax.f32 %v1372, 0.0
        %v2407 = vmax.f32 %v1461, 0.0
        %v2408 = vmax.f32 %v1550, 0.0
        %v2409 = vmax.f32 %v1639, 0.0
        %v2410 = vmax.f32 %v1728, 0.0
        %v2411 = vmax.f32 %v1817, 0.0
        %v2412 = vmax.f32 %v1906, 0.0
        %v2413 = vmax.f32 %v1995, 0.0
        %v2414 = vmax.f32 %v751, 0.0
        %v2415 = vmax.f32 %v840, 0.0
        %v2416 = vmax.f32 %v929, 0.0
        %v2417 = vmax.f32 %v1018, 0.0
        %v2418 = vmax.f32 %v1107, 0.0
        %v2419 = vmax.f32 %v1196, 0.0
        %v2420 = vmax.f32 %v1285, 0.0
        %v2421 = vmax.f32 %v1374, 0.0
        %v2422 = vmax.f32 %v1463, 0.0
        %v2423 = vmax.f32 %v1552, 0.0
        %v2424 = vmax.f32 %v1641, 0.0
        %v2425 = vmax.f32 %v1730, 0.0
        %v2426 = vmax.f32 %v1819, 0.0
        %v2427 = vmax.f32 %v1908, 0.0
        %v2428 = vmax.f32 %v1997, 0.0
        %v2429 = vmax.f32 %v754, 0.0
        %v2430 = vmax.f32 %v843, 0.0
        %v2431 = vmax.f32 %v932, 0.0
        %v2432 = vmax.f32 %v1021, 0.0
        %v2433 = vmax.f32 %v1110, 0.0
        %v2434 = vmax.f32 %v1199, 0.0
        %v2435 = vmax.f32 %v1288, 0.0
        %v2436 = vmax.f32 %v1377, 0.0
        %v2437 = vmax.f32 %v1466, 0.0
        %v2438 = vmax.f32 %v1555, 0.0
        %v2439 = vmax.f32 %v1644, 0.0
        %v2440 = vmax.f32 %v1733, 0.0
        %v2441 = vmax.f32 %v1822, 0.0
        %v2442 = vmax.f32 %v1911, 0.0
        %v2443 = vmax.f32 %v2000, 0.0
        %v2444 = vmax.f32 %v756, 0.0
        %v2445 = vmax.f32 %v845, 0.0
        %v2446 = vmax.f32 %v934, 0.0
        %v2447 = vmax.f32 %v1023, 0.0
        %v2448 = vmax.f32 %v1112, 0.0
        %v2449 = vmax.f32 %v1201, 0.0
        %v2450 = vmax.f32 %v1290, 0.0
        %v2451 = vmax.f32 %v1379, 0.0
        %v2452 = vmax.f32 %v1468, 0.0
        %v2453 = vmax.f32 %v1557, 0.0
        %v2454 = vmax.f32 %v1646, 0.0
        %v2455 = vmax.f32 %v1735, 0.0
        %v2456 = vmax.f32 %v1824, 0.0
        %v2457 = vmax.f32 %v1913, 0.0
        %v2458 = vmax.f32 %v2002, 0.0
        %v2459 = vmax.f32 %v759, 0.0
        %v2460 = vmax.f32 %v848, 0.0
        %v2461 = vmax.f32 %v937, 0.0
        %v2462 = vmax.f32 %v1026, 0.0
        %v2463 = vmax.f32 %v1115, 0.0
        %v2464 = vmax.f32 %v1204, 0.0
        %v2465 = vmax.f32 %v1293, 0.0
        %v2466 = vmax.f32 %v1382, 0.0
        %v2467 = vmax.f32 %v1471, 0.0
        %v2468 = vmax.f32 %v1560, 0.0
        %v2469 = vmax.f32 %v1649, 0.0
        %v2470 = vmax.f32 %v1738, 0.0
        %v2471 = vmax.f32 %v1827, 0.0
        %v2472 = vmax.f32 %v1916, 0.0
        %v2473 = vmax.f32 %v2005, 0.0
        %v2474 = vmax.f32 %v761, 0.0
        %v2475 = vmax.f32 %v850, 0.0
        %v2476 = vmax.f32 %v939, 0.0
        %v2477 = vmax.f32 %v1028, 0.0
        %v2478 = vmax.f32 %v1117, 0.0
        %v2479 = vmax.f32 %v1206, 0.0
        %v2480 = vmax.f32 %v1295, 0.0
        %v2481 = vmax.f32 %v1384, 0.0
        %v2482 = vmax.f32 %v1473, 0.0
        %v2483 = vmax.f32 %v1562, 0.0
        %v2484 = vmax.f32 %v1651, 0.0
        %v2485 = vmax.f32 %v1740, 0.0
        %v2486 = vmax.f32 %v1829, 0.0
        %v2487 = vmax.f32 %v1918, 0.0
        %v2488 = vmax.f32 %v2007, 0.0
        %v2489 = vld [vmem:[#allocation2] sm:$0xff]
        %v2490 = vld [vmem:[#allocation2 + $0x8] sm:$0xff]
        %v2491 = vadd.f32 %v2009, %v2024
        %v2492 = vadd.f32 %v2491, %v2039
        %v2493 = vadd.f32 %v2492, %v2054
        %v2494 = vadd.f32 %v2493, %v2069
        %v2495 = vadd.f32 %v2494, %v2084
        %v2496 = vadd.f32 %v2495, %v2099
        %v2497 = vadd.f32 %v2496, %v2114
        %v2498 = vadd.f32 %v2497, %v2129
        %v2499 = vadd.f32 %v2498, %v2144
        %v2500 = vadd.f32 %v2499, %v2159
        %v2501 = vadd.f32 %v2500, %v2174
        %v2502 = vadd.f32 %v2501, %v2189
        %v2503 = vadd.f32 %v2502, %v2204
        %v2504 = vadd.f32 %v2503, %v2219
        %v2505 = vadd.f32 %v2504, %v2234
        %v2506 = vadd.f32 %v2505, %v2249
        %v2507 = vadd.f32 %v2506, %v2264
        %v2508 = vadd.f32 %v2507, %v2279
        %v2509 = vadd.f32 %v2508, %v2294
        %v2510 = vadd.f32 %v2509, %v2309
        %v2511 = vadd.f32 %v2510, %v2324
        %v2512 = vadd.f32 %v2511, %v2339
        %v2513 = vadd.f32 %v2512, %v2354
        %v2514 = vadd.f32 %v2513, %v2369
        %v2515 = vadd.f32 %v2514, %v2384
        %v2516 = vadd.f32 %v2515, %v2399
        %v2517 = vadd.f32 %v2516, %v2414
        %v2518 = vadd.f32 %v2517, %v2429
        %v2519 = vadd.f32 %v2518, %v2444
        %v2520 = vadd.f32 %v2519, %v2459
        %v2521 = vadd.f32 %v2520, %v2474
        %v2522 = vrot.slane %v2521, 4
        %v2523 = vadd.f32 %v2521, %v2522
        %v2524 = vrot.slane %v2523, 2
        %v2525 = vadd.f32 %v2523, %v2524
        %v2526 = vrot.slane %v2525, 1
        %v2527 = vadd.f32 %v2525, %v2526
        %v2528 = vadd.f32 %v2010, %v2025
        %v2529 = vadd.f32 %v2528, %v2040
        %v2530 = vadd.f32 %v2529, %v2055
        %v2531 = vadd.f32 %v2530, %v2070
        %v2532 = vadd.f32 %v2531, %v2085
        %v2533 = vadd.f32 %v2532, %v2100
        %v2534 = vadd.f32 %v2533, %v2115
        %v2535 = vadd.f32 %v2534, %v2130
        %v2536 = vadd.f32 %v2535, %v2145
        %v2537 = vadd.f32 %v2536, %v2160
        %v2538 = vadd.f32 %v2537, %v2175
        %v2539 = vadd.f32 %v2538, %v2190
        %v2540 = vadd.f32 %v2539, %v2205
        %v2541 = vadd.f32 %v2540, %v2220
        %v2542 = vadd.f32 %v2541, %v2235
        %v2543 = vadd.f32 %v2542, %v2250
        %v2544 = vadd.f32 %v2543, %v2265
        %v2545 = vadd.f32 %v2544, %v2280
        %v2546 = vadd.f32 %v2545, %v2295
        %v2547 = vadd.f32 %v2546, %v2310
        %v2548 = vadd.f32 %v2547, %v2325
        %v2549 = vadd.f32 %v2548, %v2340
        %v2550 = vadd.f32 %v2549, %v2355
        %v2551 = vadd.f32 %v2550, %v2370
        %v2552 = vadd.f32 %v2551, %v2385
        %v2553 = vadd.f32 %v2552, %v2400
        %v2554 = vadd.f32 %v2553, %v2415
        %v2555 = vadd.f32 %v2554, %v2430
        %v2556 = vadd.f32 %v2555, %v2445
        %v2557 = vadd.f32 %v2556, %v2460
        %v2558 = vadd.f32 %v2557, %v2475
        %v2559 = vrot.slane %v2558, 4
        %v2560 = vadd.f32 %v2558, %v2559
        %v2561 = vrot.slane %v2560, 2
        %v2562 = vadd.f32 %v2560, %v2561
        %v2563 = vrot.slane %v2562, 1
        %v2564 = vadd.f32 %v2562, %v2563
        %v2565 = vadd.f32 %v2011, %v2026
        %v2566 = vadd.f32 %v2565, %v2041
        %v2567 = vadd.f32 %v2566, %v2056
        %v2568 = vadd.f32 %v2567, %v2071
        %v2569 = vadd.f32 %v2568, %v2086
        %v2570 = vadd.f32 %v2569, %v2101
        %v2571 = vadd.f32 %v2570, %v2116
        %v2572 = vadd.f32 %v2571, %v2131
        %v2573 = vadd.f32 %v2572, %v2146
        %v2574 = vadd.f32 %v2573, %v2161
        %v2575 = vadd.f32 %v2574, %v2176
        %v2576 = vadd.f32 %v2575, %v2191
        %v2577 = vadd.f32 %v2576, %v2206
        %v2578 = vadd.f32 %v2577, %v2221
        %v2579 = vadd.f32 %v2578, %v2236
        %v2580 = vadd.f32 %v2579, %v2251
        %v2581 = vadd.f32 %v2580, %v2266
        %v2582 = vadd.f32 %v2581, %v2281
        %v2583 = vadd.f32 %v2582, %v2296
        %v2584 = vadd.f32 %v2583, %v2311
        %v2585 = vadd.f32 %v2584, %v2326
        %v2586 = vadd.f32 %v2585, %v2341
        %v2587 = vadd.f32 %v2586, %v2356
        %v2588 = vadd.f32 %v2587, %v2371
        %v2589 = vadd.f32 %v2588, %v2386
        %v2590 = vadd.f32 %v2589, %v2401
        %v2591 = vadd.f32 %v2590, %v2416
        %v2592 = vadd.f32 %v2591, %v2431
        %v2593 = vadd.f32 %v2592, %v2446
        %v2594 = vadd.f32 %v2593, %v2461
        %v2595 = vadd.f32 %v2594, %v2476
        %v2596 = vrot.slane %v2595, 4
        %v2597 = vadd.f32 %v2595, %v2596
        %v2598 = vrot.slane %v2597, 2
        %v2599 = vadd.f32 %v2597, %v2598
        %v2600 = vrot.slane %v2599, 1
        %v2601 = vadd.f32 %v2599, %v2600
        %v2602 = vadd.f32 %v2012, %v2027
        %v2603 = vadd.f32 %v2602, %v2042
        %v2604 = vadd.f32 %v2603, %v2057
        %v2605 = vadd.f32 %v2604, %v2072
        %v2606 = vadd.f32 %v2605, %v2087
        %v2607 = vadd.f32 %v2606, %v2102
        %v2608 = vadd.f32 %v2607, %v2117
        %v2609 = vadd.f32 %v2608, %v2132
        %v2610 = vadd.f32 %v2609, %v2147
        %v2611 = vadd.f32 %v2610, %v2162
        %v2612 = vadd.f32 %v2611, %v2177
        %v2613 = vadd.f32 %v2612, %v2192
        %v2614 = vadd.f32 %v2613, %v2207
        %v2615 = vadd.f32 %v2614, %v2222
        %v2616 = vadd.f32 %v2615, %v2237
        %v2617 = vadd.f32 %v2616, %v2252
        %v2618 = vadd.f32 %v2617, %v2267
        %v2619 = vadd.f32 %v2618, %v2282
        %v2620 = vadd.f32 %v2619, %v2297
        %v2621 = vadd.f32 %v2620, %v2312
        %v2622 = vadd.f32 %v2621, %v2327
        %v2623 = vadd.f32 %v2622, %v2342
        %v2624 = vadd.f32 %v2623, %v2357
        %v2625 = vadd.f32 %v2624, %v2372
        %v2626 = vadd.f32 %v2625, %v2387
        %v2627 = vadd.f32 %v2626, %v2402
        %v2628 = vadd.f32 %v2627, %v2417
        %v2629 = vadd.f32 %v2628, %v2432
        %v2630 = vadd.f32 %v2629, %v2447
        %v2631 = vadd.f32 %v2630, %v2462
        %v2632 = vadd.f32 %v2631, %v2477
        %v2633 = vrot.slane %v2632, 4
        %v2634 = vadd.f32 %v2632, %v2633
        %v2635 = vrot.slane %v2634, 2
        %v2636 = vadd.f32 %v2634, %v2635
        %v2637 = vrot.slane %v2636, 1
        %v2638 = vadd.f32 %v2636, %v2637
        %v2639 = vadd.f32 %v2013, %v2028
        %v2640 = vadd.f32 %v2639, %v2043
        %v2641 = vadd.f32 %v2640, %v2058
        %v2642 = vadd.f32 %v2641, %v2073
        %v2643 = vadd.f32 %v2642, %v2088
        %v2644 = vadd.f32 %v2643, %v2103
        %v2645 = vadd.f32 %v2644, %v2118
        %v2646 = vadd.f32 %v2645, %v2133
        %v2647 = vadd.f32 %v2646, %v2148
        %v2648 = vadd.f32 %v2647, %v2163
        %v2649 = vadd.f32 %v2648, %v2178
        %v2650 = vadd.f32 %v2649, %v2193
        %v2651 = vadd.f32 %v2650, %v2208
        %v2652 = vadd.f32 %v2651, %v2223
        %v2653 = vadd.f32 %v2652, %v2238
        %v2654 = vadd.f32 %v2653, %v2253
        %v2655 = vadd.f32 %v2654, %v2268
        %v2656 = vadd.f32 %v2655, %v2283
        %v2657 = vadd.f32 %v2656, %v2298
        %v2658 = vadd.f32 %v2657, %v2313
        %v2659 = vadd.f32 %v2658, %v2328
        %v2660 = vadd.f32 %v2659, %v2343
        %v2661 = vadd.f32 %v2660, %v2358
        %v2662 = vadd.f32 %v2661, %v2373
        %v2663 = vadd.f32 %v2662, %v2388
        %v2664 = vadd.f32 %v2663, %v2403
        %v2665 = vadd.f32 %v2664, %v2418
        %v2666 = vadd.f32 %v2665, %v2433
        %v2667 = vadd.f32 %v2666, %v2448
        %v2668 = vadd.f32 %v2667, %v2463
        %v2669 = vadd.f32 %v2668, %v2478
        %v2670 = vrot.slane %v2669, 4
        %v2671 = vadd.f32 %v2669, %v2670
        %v2672 = vrot.slane %v2671, 2
        %v2673 = vadd.f32 %v2671, %v2672
        %v2674 = vrot.slane %v2673, 1
        %v2675 = vadd.f32 %v2673, %v2674
        %v2676 = vadd.f32 %v2014, %v2029
        %v2677 = vadd.f32 %v2676, %v2044
        %v2678 = vadd.f32 %v2677, %v2059
        %v2679 = vadd.f32 %v2678, %v2074
        %v2680 = vadd.f32 %v2679, %v2089
        %v2681 = vadd.f32 %v2680, %v2104
        %v2682 = vadd.f32 %v2681, %v2119
        %v2683 = vadd.f32 %v2682, %v2134
        %v2684 = vadd.f32 %v2683, %v2149
        %v2685 = vadd.f32 %v2684, %v2164
        %v2686 = vadd.f32 %v2685, %v2179
        %v2687 = vadd.f32 %v2686, %v2194
        %v2688 = vadd.f32 %v2687, %v2209
        %v2689 = vadd.f32 %v2688, %v2224
        %v2690 = vadd.f32 %v2689, %v2239
        %v2691 = vadd.f32 %v2690, %v2254
        %v2692 = vadd.f32 %v2691, %v2269
        %v2693 = vadd.f32 %v2692, %v2284
        %v2694 = vadd.f32 %v2693, %v2299
        %v2695 = vadd.f32 %v2694, %v2314
        %v2696 = vadd.f32 %v2695, %v2329
        %v2697 = vadd.f32 %v2696, %v2344
        %v2698 = vadd.f32 %v2697, %v2359
        %v2699 = vadd.f32 %v2698, %v2374
        %v2700 = vadd.f32 %v2699, %v2389
        %v2701 = vadd.f32 %v2700, %v2404
        %v2702 = vadd.f32 %v2701, %v2419
        %v2703 = vadd.f32 %v2702, %v2434
        %v2704 = vadd.f32 %v2703, %v2449
        %v2705 = vadd.f32 %v2704, %v2464
        %v2706 = vadd.f32 %v2705, %v2479
        %v2707 = vrot.slane %v2706, 4
        %v2708 = vadd.f32 %v2706, %v2707
        %v2709 = vrot.slane %v2708, 2
        %v2710 = vadd.f32 %v2708, %v2709
        %v2711 = vrot.slane %v2710, 1
        %v2712 = vadd.f32 %v2710, %v2711
        %v2713 = vadd.f32 %v2015, %v2030
        %v2714 = vadd.f32 %v2713, %v2045
        %v2715 = vadd.f32 %v2714, %v2060
        %v2716 = vadd.f32 %v2715, %v2075
        %v2717 = vadd.f32 %v2716, %v2090
        %v2718 = vadd.f32 %v2717, %v2105
        %v2719 = vadd.f32 %v2718, %v2120
        %v2720 = vadd.f32 %v2719, %v2135
        %v2721 = vadd.f32 %v2720, %v2150
        %v2722 = vadd.f32 %v2721, %v2165
        %v2723 = vadd.f32 %v2722, %v2180
        %v2724 = vadd.f32 %v2723, %v2195
        %v2725 = vadd.f32 %v2724, %v2210
        %v2726 = vadd.f32 %v2725, %v2225
        %v2727 = vadd.f32 %v2726, %v2240
        %v2728 = vadd.f32 %v2727, %v2255
        %v2729 = vadd.f32 %v2728, %v2270
        %v2730 = vadd.f32 %v2729, %v2285
        %v2731 = vadd.f32 %v2730, %v2300
        %v2732 = vadd.f32 %v2731, %v2315
        %v2733 = vadd.f32 %v2732, %v2330
        %v2734 = vadd.f32 %v2733, %v2345
        %v2735 = vadd.f32 %v2734, %v2360
        %v2736 = vadd.f32 %v2735, %v2375
        %v2737 = vadd.f32 %v2736, %v2390
        %v2738 = vadd.f32 %v2737, %v2405
        %v2739 = vadd.f32 %v2738, %v2420
        %v2740 = vadd.f32 %v2739, %v2435
        %v2741 = vadd.f32 %v2740, %v2450
        %v2742 = vadd.f32 %v2741, %v2465
        %v2743 = vadd.f32 %v2742, %v2480
        %v2744 = vrot.slane %v2743, 4
        %v2745 = vadd.f32 %v2743, %v2744
        %v2746 = vrot.slane %v2745, 2
        %v2747 = vadd.f32 %v2745, %v2746
        %v2748 = vrot.slane %v2747, 1
        %v2749 = vadd.f32 %v2747, %v2748
        %v2750 = vadd.f32 %v2016, %v2031
        %v2751 = vadd.f32 %v2750, %v2046
        %v2752 = vadd.f32 %v2751, %v2061
        %v2753 = vadd.f32 %v2752, %v2076
        %v2754 = vadd.f32 %v2753, %v2091
        %v2755 = vadd.f32 %v2754, %v2106
        %v2756 = vadd.f32 %v2755, %v2121
        %v2757 = vadd.f32 %v2756, %v2136
        %v2758 = vadd.f32 %v2757, %v2151
        %v2759 = vadd.f32 %v2758, %v2166
        %v2760 = vadd.f32 %v2759, %v2181
        %v2761 = vadd.f32 %v2760, %v2196
        %v2762 = vadd.f32 %v2761, %v2211
        %v2763 = vadd.f32 %v2762, %v2226
        %v2764 = vadd.f32 %v2763, %v2241
        %v2765 = vadd.f32 %v2764, %v2256
        %v2766 = vadd.f32 %v2765, %v2271
        %v2767 = vadd.f32 %v2766, %v2286
        %v2768 = vadd.f32 %v2767, %v2301
        %v2769 = vadd.f32 %v2768, %v2316
        %v2770 = vadd.f32 %v2769, %v2331
        %v2771 = vadd.f32 %v2770, %v2346
        %v2772 = vadd.f32 %v2771, %v2361
        %v2773 = vadd.f32 %v2772, %v2376
        %v2774 = vadd.f32 %v2773, %v2391
        %v2775 = vadd.f32 %v2774, %v2406
        %v2776 = vadd.f32 %v2775, %v2421
        %v2777 = vadd.f32 %v2776, %v2436
        %v2778 = vadd.f32 %v2777, %v2451
        %v2779 = vadd.f32 %v2778, %v2466
        %v2780 = vadd.f32 %v2779, %v2481
        %v2781 = vrot.slane %v2780, 4
        %v2782 = vadd.f32 %v2780, %v2781
        %v2783 = vrot.slane %v2782, 2
        %v2784 = vadd.f32 %v2782, %v2783
        %v2785 = vrot.slane %v2784, 1
        %v2786 = vadd.f32 %v2784, %v2785
        %v2787 = vadd.f32 %v2017, %v2032
        %v2788 = vadd.f32 %v2787, %v2047
        %v2789 = vadd.f32 %v2788, %v2062
        %v2790 = vadd.f32 %v2789, %v2077
        %v2791 = vadd.f32 %v2790, %v2092
        %v2792 = vadd.f32 %v2791, %v2107
        %v2793 = vadd.f32 %v2792, %v2122
        %v2794 = vadd.f32 %v2793, %v2137
        %v2795 = vadd.f32 %v2794, %v2152
        %v2796 = vadd.f32 %v2795, %v2167
        %v2797 = vadd.f32 %v2796, %v2182
        %v2798 = vadd.f32 %v2797, %v2197
        %v2799 = vadd.f32 %v2798, %v2212
        %v2800 = vadd.f32 %v2799, %v2227
        %v2801 = vadd.f32 %v2800, %v2242
        %v2802 = vadd.f32 %v2801, %v2257
        %v2803 = vadd.f32 %v2802, %v2272
        %v2804 = vadd.f32 %v2803, %v2287
        %v2805 = vadd.f32 %v2804, %v2302
        %v2806 = vadd.f32 %v2805, %v2317
        %v2807 = vadd.f32 %v2806, %v2332
        %v2808 = vadd.f32 %v2807, %v2347
        %v2809 = vadd.f32 %v2808, %v2362
        %v2810 = vadd.f32 %v2809, %v2377
        %v2811 = vadd.f32 %v2810, %v2392
        %v2812 = vadd.f32 %v2811, %v2407
        %v2813 = vadd.f32 %v2812, %v2422
        %v2814 = vadd.f32 %v2813, %v2437
        %v2815 = vadd.f32 %v2814, %v2452
        %v2816 = vadd.f32 %v2815, %v2467
        %v2817 = vadd.f32 %v2816, %v2482
        %v2818 = vrot.slane %v2817, 4
        %v2819 = vadd.f32 %v2817, %v2818
        %v2820 = vrot.slane %v2819, 2
        %v2821 = vadd.f32 %v2819, %v2820
        %v2822 = vrot.slane %v2821, 1
        %v2823 = vadd.f32 %v2821, %v2822
        %v2824 = vadd.f32 %v2018, %v2033
        %v2825 = vadd.f32 %v2824, %v2048
        %v2826 = vadd.f32 %v2825, %v2063
        %v2827 = vadd.f32 %v2826, %v2078
        %v2828 = vadd.f32 %v2827, %v2093
        %v2829 = vadd.f32 %v2828, %v2108
        %v2830 = vadd.f32 %v2829, %v2123
        %v2831 = vadd.f32 %v2830, %v2138
        %v2832 = vadd.f32 %v2831, %v2153
        %v2833 = vadd.f32 %v2832, %v2168
        %v2834 = vadd.f32 %v2833, %v2183
        %v2835 = vadd.f32 %v2834, %v2198
        %v2836 = vadd.f32 %v2835, %v2213
        %v2837 = vadd.f32 %v2836, %v2228
        %v2838 = vadd.f32 %v2837, %v2243
        %v2839 = vadd.f32 %v2838, %v2258
        %v2840 = vadd.f32 %v2839, %v2273
        %v2841 = vadd.f32 %v2840, %v2288
        %v2842 = vadd.f32 %v2841, %v2303
        %v2843 = vadd.f32 %v2842, %v2318
        %v2844 = vadd.f32 %v2843, %v2333
        %v2845 = vadd.f32 %v2844, %v2348
        %v2846 = vadd.f32 %v2845, %v2363
        %v2847 = vadd.f32 %v2846, %v2378
        %v2848 = vadd.f32 %v2847, %v2393
        %v2849 = vadd.f32 %v2848, %v2408
        %v2850 = vadd.f32 %v2849, %v2423
        %v2851 = vadd.f32 %v2850, %v2438
        %v2852 = vadd.f32 %v2851, %v2453
        %v2853 = vadd.f32 %v2852, %v2468
        %v2854 = vadd.f32 %v2853, %v2483
        %v2855 = vrot.slane %v2854, 4
        %v2856 = vadd.f32 %v2854, %v2855
        %v2857 = vrot.slane %v2856, 2
        %v2858 = vadd.f32 %v2856, %v2857
        %v2859 = vrot.slane %v2858, 1
        %v2860 = vadd.f32 %v2858, %v2859
        %v2861 = vadd.f32 %v2019, %v2034
        %v2862 = vadd.f32 %v2861, %v2049
        %v2863 = vadd.f32 %v2862, %v2064
        %v2864 = vadd.f32 %v2863, %v2079
        %v2865 = vadd.f32 %v2864, %v2094
        %v2866 = vadd.f32 %v2865, %v2109
        %v2867 = vadd.f32 %v2866, %v2124
        %v2868 = vadd.f32 %v2867, %v2139
        %v2869 = vadd.f32 %v2868, %v2154
        %v2870 = vadd.f32 %v2869, %v2169
        %v2871 = vadd.f32 %v2870, %v2184
        %v2872 = vadd.f32 %v2871, %v2199
        %v2873 = vadd.f32 %v2872, %v2214
        %v2874 = vadd.f32 %v2873, %v2229
        %v2875 = vadd.f32 %v2874, %v2244
        %v2876 = vadd.f32 %v2875, %v2259
        %v2877 = vadd.f32 %v2876, %v2274
        %v2878 = vadd.f32 %v2877, %v2289
        %v2879 = vadd.f32 %v2878, %v2304
        %v2880 = vadd.f32 %v2879, %v2319
        %v2881 = vadd.f32 %v2880, %v2334
        %v2882 = vadd.f32 %v2881, %v2349
        %v2883 = vadd.f32 %v2882, %v2364
        %v2884 = vadd.f32 %v2883, %v2379
        %v2885 = vadd.f32 %v2884, %v2394
        %v2886 = vadd.f32 %v2885, %v2409
        %v2887 = vadd.f32 %v2886, %v2424
        %v2888 = vadd.f32 %v2887, %v2439
        %v2889 = vadd.f32 %v2888, %v2454
        %v2890 = vadd.f32 %v2889, %v2469
        %v2891 = vadd.f32 %v2890, %v2484
        %v2892 = vrot.slane %v2891, 4
        %v2893 = vadd.f32 %v2891, %v2892
        %v2894 = vrot.slane %v2893, 2
        %v2895 = vadd.f32 %v2893, %v2894
        %v2896 = vrot.slane %v2895, 1
        %v2897 = vadd.f32 %v2895, %v2896
        %v2898 = vadd.f32 %v2020, %v2035
        %v2899 = vadd.f32 %v2898, %v2050
        %v2900 = vadd.f32 %v2899, %v2065
        %v2901 = vadd.f32 %v2900, %v2080
        %v2902 = vadd.f32 %v2901, %v2095
        %v2903 = vadd.f32 %v2902, %v2110
        %v2904 = vadd.f32 %v2903, %v2125
        %v2905 = vadd.f32 %v2904, %v2140
        %v2906 = vadd.f32 %v2905, %v2155
        %v2907 = vadd.f32 %v2906, %v2170
        %v2908 = vadd.f32 %v2907, %v2185
        %v2909 = vadd.f32 %v2908, %v2200
        %v2910 = vadd.f32 %v2909, %v2215
        %v2911 = vadd.f32 %v2910, %v2230
        %v2912 = vadd.f32 %v2911, %v2245
        %v2913 = vadd.f32 %v2912, %v2260
        %v2914 = vadd.f32 %v2913, %v2275
        %v2915 = vadd.f32 %v2914, %v2290
        %v2916 = vadd.f32 %v2915, %v2305
        %v2917 = vadd.f32 %v2916, %v2320
        %v2918 = vadd.f32 %v2917, %v2335
        %v2919 = vadd.f32 %v2918, %v2350
        %v2920 = vadd.f32 %v2919, %v2365
        %v2921 = vadd.f32 %v2920, %v2380
        %v2922 = vadd.f32 %v2921, %v2395
        %v2923 = vadd.f32 %v2922, %v2410
        %v2924 = vadd.f32 %v2923, %v2425
        %v2925 = vadd.f32 %v2924, %v2440
        %v2926 = vadd.f32 %v2925, %v2455
        %v2927 = vadd.f32 %v2926, %v2470
        %v2928 = vadd.f32 %v2927, %v2485
        %v2929 = vrot.slane %v2928, 4
        %v2930 = vadd.f32 %v2928, %v2929
        %v2931 = vrot.slane %v2930, 2
        %v2932 = vadd.f32 %v2930, %v2931
        %v2933 = vrot.slane %v2932, 1
        %v2934 = vadd.f32 %v2932, %v2933
        %v2935 = vadd.f32 %v2021, %v2036
        %v2936 = vadd.f32 %v2935, %v2051
        %v2937 = vadd.f32 %v2936, %v2066
        %v2938 = vadd.f32 %v2937, %v2081
        %v2939 = vadd.f32 %v2938, %v2096
        %v2940 = vadd.f32 %v2939, %v2111
        %v2941 = vadd.f32 %v2940, %v2126
        %v2942 = vadd.f32 %v2941, %v2141
        %v2943 = vadd.f32 %v2942, %v2156
        %v2944 = vadd.f32 %v2943, %v2171
        %v2945 = vadd.f32 %v2944, %v2186
        %v2946 = vadd.f32 %v2945, %v2201
        %v2947 = vadd.f32 %v2946, %v2216
        %v2948 = vadd.f32 %v2947, %v2231
        %v2949 = vadd.f32 %v2948, %v2246
        %v2950 = vadd.f32 %v2949, %v2261
        %v2951 = vadd.f32 %v2950, %v2276
        %v2952 = vadd.f32 %v2951, %v2291
        %v2953 = vadd.f32 %v2952, %v2306
        %v2954 = vadd.f32 %v2953, %v2321
        %v2955 = vadd.f32 %v2954, %v2336
        %v2956 = vadd.f32 %v2955, %v2351
        %v2957 = vadd.f32 %v2956, %v2366
        %v2958 = vadd.f32 %v2957, %v2381
        %v2959 = vadd.f32 %v2958, %v2396
        %v2960 = vadd.f32 %v2959, %v2411
        %v2961 = vadd.f32 %v2960, %v2426
        %v2962 = vadd.f32 %v2961, %v2441
        %v2963 = vadd.f32 %v2962, %v2456
        %v2964 = vadd.f32 %v2963, %v2471
        %v2965 = vadd.f32 %v2964, %v2486
        %v2966 = vrot.slane %v2965, 4
        %v2967 = vadd.f32 %v2965, %v2966
        %v2968 = vrot.slane %v2967, 2
        %v2969 = vadd.f32 %v2967, %v2968
        %v2970 = vrot.slane %v2969, 1
        %v2971 = vadd.f32 %v2969, %v2970
        %v2972 = vadd.f32 %v2022, %v2037
        %v2973 = vadd.f32 %v2972, %v2052
        %v2974 = vadd.f32 %v2973, %v2067
        %v2975 = vadd.f32 %v2974, %v2082
        %v2976 = vadd.f32 %v2975, %v2097
        %v2977 = vadd.f32 %v2976, %v2112
        %v2978 = vadd.f32 %v2977, %v2127
        %v2979 = vadd.f32 %v2978, %v2142
        %v2980 = vadd.f32 %v2979, %v2157
        %v2981 = vadd.f32 %v2980, %v2172
        %v2982 = vadd.f32 %v2981, %v2187
        %v2983 = vadd.f32 %v2982, %v2202
        %v2984 = vadd.f32 %v2983, %v2217
        %v2985 = vadd.f32 %v2984, %v2232
        %v2986 = vadd.f32 %v2985, %v2247
        %v2987 = vadd.f32 %v2986, %v2262
        %v2988 = vadd.f32 %v2987, %v2277
        %v2989 = vadd.f32 %v2988, %v2292
        %v2990 = vadd.f32 %v2989, %v2307
        %v2991 = vadd.f32 %v2990, %v2322
        %v2992 = vadd.f32 %v2991, %v2337
        %v2993 = vadd.f32 %v2992, %v2352
        %v2994 = vadd.f32 %v2993, %v2367
        %v2995 = vadd.f32 %v2994, %v2382
        %v2996 = vadd.f32 %v2995, %v2397
        %v2997 = vadd.f32 %v2996, %v2412
        %v2998 = vadd.f32 %v2997, %v2427
        %v2999 = vadd.f32 %v2998, %v2442
        %v3000 = vadd.f32 %v2999, %v2457
        %v3001 = vadd.f32 %v3000, %v2472
        %v3002 = vadd.f32 %v3001, %v2487
        %v3003 = vrot.slane %v3002, 4
        %v3004 = vadd.f32 %v3002, %v3003
        %v3005 = vrot.slane %v3004, 2
        %v3006 = vadd.f32 %v3004, %v3005
        %v3007 = vrot.slane %v3006, 1
        %v3008 = vadd.f32 %v3006, %v3007
        %v3009 = vadd.f32 %v2023, %v2038
        %v3010 = vadd.f32 %v3009, %v2053
        %v3011 = vadd.f32 %v3010, %v2068
        %v3012 = vadd.f32 %v3011, %v2083
        %v3013 = vadd.f32 %v3012, %v2098
        %v3014 = vadd.f32 %v3013, %v2113
        %v3015 = vadd.f32 %v3014, %v2128
        %v3016 = vadd.f32 %v3015, %v2143
        %v3017 = vadd.f32 %v3016, %v2158
        %v3018 = vadd.f32 %v3017, %v2173
        %v3019 = vadd.f32 %v3018, %v2188
        %v3020 = vadd.f32 %v3019, %v2203
        %v3021 = vadd.f32 %v3020, %v2218
        %v3022 = vadd.f32 %v3021, %v2233
        %v3023 = vadd.f32 %v3022, %v2248
        %v3024 = vadd.f32 %v3023, %v2263
        %v3025 = vadd.f32 %v3024, %v2278
        %v3026 = vadd.f32 %v3025, %v2293
        %v3027 = vadd.f32 %v3026, %v2308
        %v3028 = vadd.f32 %v3027, %v2323
        %v3029 = vadd.f32 %v3028, %v2338
        %v3030 = vadd.f32 %v3029, %v2353
        %v3031 = vadd.f32 %v3030, %v2368
        %v3032 = vadd.f32 %v3031, %v2383
        %v3033 = vadd.f32 %v3032, %v2398
        %v3034 = vadd.f32 %v3033, %v2413
        %v3035 = vadd.f32 %v3034, %v2428
        %v3036 = vadd.f32 %v3035, %v2443
        %v3037 = vadd.f32 %v3036, %v2458
        %v3038 = vadd.f32 %v3037, %v2473
        %v3039 = vadd.f32 %v3038, %v2488
        %v3040 = vrot.slane %v3039, 4
        %v3041 = vadd.f32 %v3039, %v3040
        %v3042 = vrot.slane %v3041, 2
        %v3043 = vadd.f32 %v3041, %v3042
        %v3044 = vrot.slane %v3043, 1
        %v3045 = vadd.f32 %v3043, %v3044
        %v3061 = vrot.slane %v2564, 7
        %v3062 = vrot.slane %v2601, 6
        %v3063 = vrot.slane %v2638, 5
        %v3064 = vrot.slane %v2675, 4
        %v3065 = vrot.slane %v2712, 3
        %v3066 = vrot.slane %v2749, 2
        %v3067 = vrot.slane %v2786, 1
        %v3068 = vrot.slane %v2860, 7
        %v3069 = vrot.slane %v2897, 6
        %v3070 = vrot.slane %v2934, 5
        %v3071 = vrot.slane %v2971, 4
        %v3072 = vrot.slane %v3008, 3
        %v3073 = vrot.slane %v3045, 2
        %vm3074 = vcmask 1040384
        %v3075 = vsel %vm3074, %v2527, %v3061
        %vm3076 = vcmask 1042434
        %v3077 = vsel %vm3076, %v3062, %v3063
        %vm3078 = vcmask 1041408
        %v3079 = vsel %vm3078, %v3075, %v3077
        %vm3080 = vcmask 1044484
        %v3081 = vsel %vm3080, %v3064, %v3065
        %vm3082 = vcmask 1046534
        %v3083 = vsel %vm3082, %v3066, %v3067
        %vm3084 = vcmask 1045508
        %v3085 = vsel %vm3084, %v3081, %v3083
        %vm3086 = vcmask 1043456
        %v3087 = vsel %vm3086, %v3079, %v3085
        %v3088 = vsel %vm3074, %v2823, %v3068
        %v3089 = vsel %vm3076, %v3069, %v3070
        %v3090 = vsel %vm3078, %v3088, %v3089
        %v3091 = vsel %vm3080, %v3071, %v3072
        %v3092 = vsel %vm3084, %v3091, %v3073
        %v3093 = vsel %vm3086, %v3090, %v3092
        %v3096 = vadd.f32 %v2489, %v3087
        %v3097 = vadd.f32 %v2490, %v3093
        %3098 = vst [vmem:[#allocation2] sm:$0xff] %v3096
        %v3099 = vlaneseq
        %vm3100 = vcmp.ge.s32.totalorder %v3099, 0
        %vm3101 = vcmp.lt.s32.totalorder %v3099, 896
        %vm3102 = vmand %vm3100, %vm3101
        %3103 = vst.msk [vmem:[#allocation2 + $0x8] sm:$0x7f] %vm3102, %v3097
        // Predicated region
        $region45: #{ensemble_forward_impl.1} parent=39 // pred_check
          %p3104 = pneg %p251
        $region46: #{ensemble_forward_impl.1} parent=39 // pred_check_branch
          %3106 = sbr.rel (%p3104) target = $region48
        $region47: #{ensemble_forward_impl.1} parent=39 // pred_region
          %v3107 = vld [vmem:[#allocation2] sm:$0xff]
          %v3108 = vld [vmem:[#allocation2 + $0x8] sm:$0xff]
          %v3109 = vmul.f32 %v3107, 0.00390625
          %v3110 = vmul.f32 %v3108, 0.00390625
          %v3111 = vld [vmem:[%s3] sm:$0xff]
          %v3112 = vld [vmem:[%s3 + $0x8] sm:$0xff]
          %v3113 = vld [vmem:[%s3 + $0x10] sm:$0xff]
          %v3114 = vld [vmem:[%s3 + $0x18] sm:$0xff]
          %v3115 = vld [vmem:[%s3 + $0x20] sm:$0xff]
          %v3116 = vld [vmem:[%s3 + $0x28] sm:$0xff]
          %v3117 = vld [vmem:[%s3 + $0x30] sm:$0xff]
          %v3118 = vld [vmem:[%s3 + $0x38] sm:$0xff]
          %v3119 = vld [vmem:[%s3 + $0x40] sm:$0xff]
          %v3120 = vld [vmem:[%s3 + $0x48] sm:$0xff]
          %v3121 = vld [vmem:[%s3 + $0x50] sm:$0xff]
          %v3122 = vld [vmem:[%s3 + $0x58] sm:$0xff]
          %v3123 = vld [vmem:[%s3 + $0x60] sm:$0xff]
          %v3124 = vld [vmem:[%s3 + $0x68] sm:$0xff]
          %v3125 = vld [vmem:[%s3 + $0x70] sm:$0xff]
          %v3126 = vld [vmem:[%s3 + $0x78] sm:$0xff]
          %v3127 = vld [vmem:[%s3 + $0x80] sm:$0xff]
          %v3128 = vld [vmem:[%s3 + $0x88] sm:$0xff]
          %v3129 = vld [vmem:[%s3 + $0x90] sm:$0xff]
          %v3130 = vld [vmem:[%s3 + $0x98] sm:$0xff]
          %v3131 = vld [vmem:[%s3 + $0xa0] sm:$0xff]
          %v3132 = vld [vmem:[%s3 + $0xa8] sm:$0xff]
          %v3133 = vld [vmem:[%s3 + $0xb0] sm:$0xff]
          %v3134 = vld [vmem:[%s3 + $0xb8] sm:$0xff]
          %v3135 = vld [vmem:[%s3 + $0xc0] sm:$0xff]
          %v3136 = vld [vmem:[%s3 + $0xc8] sm:$0xff]
          %v3137 = vld [vmem:[%s3 + $0xd0] sm:$0xff]
          %v3138 = vld [vmem:[%s3 + $0xd8] sm:$0xff]
          %v3139 = vld [vmem:[%s3 + $0xe0] sm:$0xff]
          %v3140 = vld [vmem:[%s3 + $0xe8] sm:$0xff]
          %v3141 = vld [vmem:[%s3 + $0xf0] sm:$0xff]
          %v3142 = vld [vmem:[%s3 + $0xf8] sm:$0xff]
          %v3143 = vld [vmem:[%s3 + $0x100] sm:$0xff]
          %v3144 = vld [vmem:[%s3 + $0x108] sm:$0xff]
          %v3145 = vld [vmem:[%s3 + $0x110] sm:$0xff]
          %v3146 = vld [vmem:[%s3 + $0x118] sm:$0xff]
          %v3147 = vld [vmem:[%s3 + $0x120] sm:$0xff]
          %v3148 = vld [vmem:[%s3 + $0x128] sm:$0xff]
          %v3149 = vld [vmem:[%s3 + $0x130] sm:$0xff]
          %v3150 = vld [vmem:[%s3 + $0x138] sm:$0xff]
          %v3151 = vld [vmem:[%s3 + $0x140] sm:$0xff]
          %v3152 = vld [vmem:[%s3 + $0x148] sm:$0xff]
          %v3153 = vld [vmem:[%s3 + $0x150] sm:$0xff]
          %v3154 = vld [vmem:[%s3 + $0x158] sm:$0xff]
          %v3155 = vld [vmem:[%s3 + $0x160] sm:$0xff]
          %v3156 = vld [vmem:[%s3 + $0x168] sm:$0xff]
          %v3157 = vld [vmem:[%s3 + $0x170] sm:$0xff]
          %v3158 = vld [vmem:[%s3 + $0x178] sm:$0xff]
          %v3159 = vld [vmem:[%s3 + $0x180] sm:$0xff]
          %v3160 = vld [vmem:[%s3 + $0x188] sm:$0xff]
          %v3161 = vld [vmem:[%s3 + $0x190] sm:$0xff]
          %v3162 = vld [vmem:[%s3 + $0x198] sm:$0xff]
          %v3163 = vld [vmem:[%s3 + $0x1a0] sm:$0xff]
          %v3164 = vld [vmem:[%s3 + $0x1a8] sm:$0xff]
          %v3165 = vld [vmem:[%s3 + $0x1b0] sm:$0xff]
          %v3166 = vld [vmem:[%s3 + $0x1b8] sm:$0xff]
          %v3167 = vld [vmem:[%s3 + $0x1c0] sm:$0xff]
          %v3168 = vld [vmem:[%s3 + $0x1c8] sm:$0xff]
          %v3169 = vld [vmem:[%s3 + $0x1d0] sm:$0xff]
          %v3170 = vld [vmem:[%s3 + $0x1d8] sm:$0xff]
          %v3171 = vld [vmem:[%s3 + $0x1e0] sm:$0xff]
          %v3172 = vld [vmem:[%s3 + $0x1e8] sm:$0xff]
          %v3173 = vld [vmem:[%s3 + $0x1f0] sm:$0xff]
          %v3174 = vld [vmem:[%s3 + $0x1f8] sm:$0xff]
          %v3175 = vld [vmem:[%s3 + $0x200] sm:$0xff]
          %v3176 = vld [vmem:[%s3 + $0x208] sm:$0xff]
          %v3177 = vld [vmem:[%s3 + $0x210] sm:$0xff]
          %v3178 = vld [vmem:[%s3 + $0x218] sm:$0xff]
          %v3179 = vld [vmem:[%s3 + $0x220] sm:$0xff]
          %v3180 = vld [vmem:[%s3 + $0x228] sm:$0xff]
          %v3181 = vld [vmem:[%s3 + $0x230] sm:$0xff]
          %v3182 = vld [vmem:[%s3 + $0x238] sm:$0xff]
          %v3183 = vld [vmem:[%s3 + $0x240] sm:$0xff]
          %v3184 = vld [vmem:[%s3 + $0x248] sm:$0xff]
          %v3185 = vld [vmem:[%s3 + $0x250] sm:$0xff]
          %v3186 = vld [vmem:[%s3 + $0x258] sm:$0xff]
          %v3187 = vld [vmem:[%s3 + $0x260] sm:$0xff]
          %v3188 = vld [vmem:[%s3 + $0x268] sm:$0xff]
          %v3189 = vld [vmem:[%s3 + $0x270] sm:$0xff]
          %v3190 = vld [vmem:[%s3 + $0x278] sm:$0xff]
          %v3191 = vld [vmem:[%s3 + $0x280] sm:$0xff]
          %v3192 = vld [vmem:[%s3 + $0x288] sm:$0xff]
          %v3193 = vld [vmem:[%s3 + $0x290] sm:$0xff]
          %v3194 = vld [vmem:[%s3 + $0x298] sm:$0xff]
          %v3195 = vld [vmem:[%s3 + $0x2a0] sm:$0xff]
          %v3196 = vld [vmem:[%s3 + $0x2a8] sm:$0xff]
          %v3197 = vld [vmem:[%s3 + $0x2b0] sm:$0xff]
          %v3198 = vld [vmem:[%s3 + $0x2b8] sm:$0xff]
          %v3199 = vld [vmem:[%s3 + $0x2c0] sm:$0xff]
          %v3200 = vld [vmem:[%s3 + $0x2c8] sm:$0xff]
          %v3201 = vld [vmem:[%s3 + $0x2d0] sm:$0xff]
          %v3202 = vld [vmem:[%s3 + $0x2d8] sm:$0xff]
          %v3203 = vld [vmem:[%s3 + $0x2e0] sm:$0xff]
          %v3204 = vld [vmem:[%s3 + $0x2e8] sm:$0xff]
          %v3205 = vld [vmem:[%s3 + $0x2f0] sm:$0xff]
          %v3206 = vld [vmem:[%s3 + $0x2f8] sm:$0xff]
          %v3207 = vld [vmem:[%s3 + $0x300] sm:$0xff]
          %v3208 = vld [vmem:[%s3 + $0x308] sm:$0xff]
          %v3209 = vld [vmem:[%s3 + $0x310] sm:$0xff]
          %v3210 = vld [vmem:[%s3 + $0x318] sm:$0xff]
          %v3211 = vld [vmem:[%s3 + $0x320] sm:$0xff]
          %v3212 = vld [vmem:[%s3 + $0x328] sm:$0xff]
          %v3213 = vld [vmem:[%s3 + $0x330] sm:$0xff]
          %v3214 = vld [vmem:[%s3 + $0x338] sm:$0xff]
          %v3215 = vld [vmem:[%s3 + $0x340] sm:$0xff]
          %v3216 = vld [vmem:[%s3 + $0x348] sm:$0xff]
          %v3217 = vld [vmem:[%s3 + $0x350] sm:$0xff]
          %v3218 = vld [vmem:[%s3 + $0x358] sm:$0xff]
          %v3219 = vld [vmem:[%s3 + $0x360] sm:$0xff]
          %v3220 = vld [vmem:[%s3 + $0x368] sm:$0xff]
          %v3221 = vld [vmem:[%s3 + $0x370] sm:$0xff]
          %v3222 = vld [vmem:[%s3 + $0x378] sm:$0xff]
          %v3223 = vld [vmem:[%s3 + $0x380] sm:$0xff]
          %v3224 = vld [vmem:[%s3 + $0x388] sm:$0xff]
          %v3225 = vld [vmem:[%s3 + $0x390] sm:$0xff]
          %v3226 = vld [vmem:[%s3 + $0x398] sm:$0xff]
          %v3227 = vld [vmem:[%s3 + $0x3a0] sm:$0xff]
          %v3228 = vld [vmem:[%s3 + $0x3a8] sm:$0xff]
          %v3229 = vld [vmem:[%s3 + $0x3b0] sm:$0xff]
          %v3230 = vld [vmem:[%s3 + $0x3b8] sm:$0xff]
          %v3231 = vld [vmem:[%s3 + $0x3c0] sm:$0xff]
          %v3232 = vld [vmem:[%s3 + $0x3c8] sm:$0xff]
          %v3233 = vld [vmem:[%s3 + $0x3d0] sm:$0xff]
          %v3234 = vld [vmem:[%s3 + $0x3d8] sm:$0xff]
          %v3235 = vld [vmem:[%s3 + $0x3e0] sm:$0xff]
          %v3236 = vld [vmem:[%s3 + $0x3e8] sm:$0xff]
          %v3237 = vld [vmem:[%s3 + $0x3f0] sm:$0xff]
          %v3238 = vld [vmem:[%s3 + $0x3f8] sm:$0xff]
          %v3239 = vld [vmem:[%s3 + $0x400] sm:$0xff]
          %v3240 = vld [vmem:[%s3 + $0x408] sm:$0xff]
          %v3241 = vld [vmem:[%s3 + $0x410] sm:$0xff]
          %v3242 = vld [vmem:[%s3 + $0x418] sm:$0xff]
          %v3243 = vld [vmem:[%s3 + $0x420] sm:$0xff]
          %v3244 = vld [vmem:[%s3 + $0x428] sm:$0xff]
          %v3245 = vld [vmem:[%s3 + $0x430] sm:$0xff]
          %v3246 = vld [vmem:[%s3 + $0x438] sm:$0xff]
          %v3247 = vld [vmem:[%s3 + $0x440] sm:$0xff]
          %v3248 = vld [vmem:[%s3 + $0x448] sm:$0xff]
          %v3249 = vld [vmem:[%s3 + $0x450] sm:$0xff]
          %v3250 = vld [vmem:[%s3 + $0x458] sm:$0xff]
          %v3251 = vld [vmem:[%s3 + $0x460] sm:$0xff]
          %v3252 = vld [vmem:[%s3 + $0x468] sm:$0xff]
          %v3253 = vld [vmem:[%s3 + $0x470] sm:$0xff]
          %v3254 = vld [vmem:[%s3 + $0x478] sm:$0xff]
          %v3255 = vld [vmem:[%s3 + $0x480] sm:$0xff]
          %v3256 = vld [vmem:[%s3 + $0x488] sm:$0xff]
          %v3257 = vld [vmem:[%s3 + $0x490] sm:$0xff]
          %v3258 = vld [vmem:[%s3 + $0x498] sm:$0xff]
          %v3259 = vld [vmem:[%s3 + $0x4a0] sm:$0xff]
          %v3260 = vld [vmem:[%s3 + $0x4a8] sm:$0xff]
          %v3261 = vld [vmem:[%s3 + $0x4b0] sm:$0xff]
          %v3262 = vld [vmem:[%s3 + $0x4b8] sm:$0xff]
          %v3263 = vld [vmem:[%s3 + $0x4c0] sm:$0xff]
          %v3264 = vld [vmem:[%s3 + $0x4c8] sm:$0xff]
          %v3265 = vld [vmem:[%s3 + $0x4d0] sm:$0xff]
          %v3266 = vld [vmem:[%s3 + $0x4d8] sm:$0xff]
          %v3267 = vld [vmem:[%s3 + $0x4e0] sm:$0xff]
          %v3268 = vld [vmem:[%s3 + $0x4e8] sm:$0xff]
          %v3269 = vld [vmem:[%s3 + $0x4f0] sm:$0xff]
          %v3270 = vld [vmem:[%s3 + $0x4f8] sm:$0xff]
          %v3271 = vld [vmem:[%s3 + $0x500] sm:$0xff]
          %v3272 = vld [vmem:[%s3 + $0x508] sm:$0xff]
          %v3273 = vld [vmem:[%s3 + $0x510] sm:$0xff]
          %v3274 = vld [vmem:[%s3 + $0x518] sm:$0xff]
          %v3275 = vld [vmem:[%s3 + $0x520] sm:$0xff]
          %v3276 = vld [vmem:[%s3 + $0x528] sm:$0xff]
          %v3277 = vld [vmem:[%s3 + $0x530] sm:$0xff]
          %v3278 = vld [vmem:[%s3 + $0x538] sm:$0xff]
          %v3279 = vld [vmem:[%s3 + $0x540] sm:$0xff]
          %v3280 = vld [vmem:[%s3 + $0x548] sm:$0xff]
          %v3281 = vld [vmem:[%s3 + $0x550] sm:$0xff]
          %v3282 = vld [vmem:[%s3 + $0x558] sm:$0xff]
          %v3283 = vld [vmem:[%s3 + $0x560] sm:$0xff]
          %v3284 = vld [vmem:[%s3 + $0x568] sm:$0xff]
          %v3285 = vld [vmem:[%s3 + $0x570] sm:$0xff]
          %v3286 = vld [vmem:[%s3 + $0x578] sm:$0xff]
          %v3287 = vld [vmem:[%s3 + $0x580] sm:$0xff]
          %v3288 = vld [vmem:[%s3 + $0x588] sm:$0xff]
          %v3289 = vld [vmem:[%s3 + $0x590] sm:$0xff]
          %v3290 = vld [vmem:[%s3 + $0x598] sm:$0xff]
          %v3291 = vld [vmem:[%s3 + $0x5a0] sm:$0xff]
          %v3292 = vld [vmem:[%s3 + $0x5a8] sm:$0xff]
          %v3293 = vld [vmem:[%s3 + $0x5b0] sm:$0xff]
          %v3294 = vld [vmem:[%s3 + $0x5b8] sm:$0xff]
          %v3295 = vld [vmem:[%s3 + $0x5c0] sm:$0xff]
          %v3296 = vld [vmem:[%s3 + $0x5c8] sm:$0xff]
          %v3297 = vld [vmem:[%s3 + $0x5d0] sm:$0xff]
          %v3298 = vld [vmem:[%s3 + $0x5d8] sm:$0xff]
          %v3299 = vld [vmem:[%s3 + $0x5e0] sm:$0xff]
          %v3300 = vld [vmem:[%s3 + $0x5e8] sm:$0xff]
          %v3301 = vld [vmem:[%s3 + $0x5f0] sm:$0xff]
          %v3302 = vld [vmem:[%s3 + $0x5f8] sm:$0xff]
          %v3303 = vld [vmem:[%s3 + $0x600] sm:$0xff]
          %v3304 = vld [vmem:[%s3 + $0x608] sm:$0xff]
          %v3305 = vld [vmem:[%s3 + $0x610] sm:$0xff]
          %v3306 = vld [vmem:[%s3 + $0x618] sm:$0xff]
          %v3307 = vld [vmem:[%s3 + $0x620] sm:$0xff]
          %v3308 = vld [vmem:[%s3 + $0x628] sm:$0xff]
          %v3309 = vld [vmem:[%s3 + $0x630] sm:$0xff]
          %v3310 = vld [vmem:[%s3 + $0x638] sm:$0xff]
          %v3311 = vld [vmem:[%s3 + $0x640] sm:$0xff]
          %v3312 = vld [vmem:[%s3 + $0x648] sm:$0xff]
          %v3313 = vld [vmem:[%s3 + $0x650] sm:$0xff]
          %v3314 = vld [vmem:[%s3 + $0x658] sm:$0xff]
          %v3315 = vld [vmem:[%s3 + $0x660] sm:$0xff]
          %v3316 = vld [vmem:[%s3 + $0x668] sm:$0xff]
          %v3317 = vld [vmem:[%s3 + $0x670] sm:$0xff]
          %v3318 = vld [vmem:[%s3 + $0x678] sm:$0xff]
          %v3319 = vld [vmem:[%s3 + $0x680] sm:$0xff]
          %v3320 = vld [vmem:[%s3 + $0x688] sm:$0xff]
          %v3321 = vld [vmem:[%s3 + $0x690] sm:$0xff]
          %v3322 = vld [vmem:[%s3 + $0x698] sm:$0xff]
          %v3323 = vld [vmem:[%s3 + $0x6a0] sm:$0xff]
          %v3324 = vld [vmem:[%s3 + $0x6a8] sm:$0xff]
          %v3325 = vld [vmem:[%s3 + $0x6b0] sm:$0xff]
          %v3326 = vld [vmem:[%s3 + $0x6b8] sm:$0xff]
          %v3327 = vld [vmem:[%s3 + $0x6c0] sm:$0xff]
          %v3328 = vld [vmem:[%s3 + $0x6c8] sm:$0xff]
          %v3329 = vld [vmem:[%s3 + $0x6d0] sm:$0xff]
          %v3330 = vld [vmem:[%s3 + $0x6d8] sm:$0xff]
          %v3331 = vld [vmem:[%s3 + $0x6e0] sm:$0xff]
          %v3332 = vld [vmem:[%s3 + $0x6e8] sm:$0xff]
          %v3333 = vld [vmem:[%s3 + $0x6f0] sm:$0xff]
          %v3334 = vld [vmem:[%s3 + $0x6f8] sm:$0xff]
          %v3335 = vld [vmem:[%s3 + $0x700] sm:$0xff]
          %v3336 = vld [vmem:[%s3 + $0x708] sm:$0xff]
          %v3337 = vld [vmem:[%s3 + $0x710] sm:$0xff]
          %v3338 = vld [vmem:[%s3 + $0x718] sm:$0xff]
          %v3339 = vld [vmem:[%s3 + $0x720] sm:$0xff]
          %v3340 = vld [vmem:[%s3 + $0x728] sm:$0xff]
          %v3341 = vld [vmem:[%s3 + $0x730] sm:$0xff]
          %v3342 = vld [vmem:[%s3 + $0x738] sm:$0xff]
          %v3343 = vld [vmem:[%s3 + $0x740] sm:$0xff]
          %v3344 = vld [vmem:[%s3 + $0x748] sm:$0xff]
          %v3345 = vld [vmem:[%s3 + $0x750] sm:$0xff]
          %v3346 = vld [vmem:[%s3 + $0x758] sm:$0xff]
          %v3347 = vld [vmem:[%s3 + $0x760] sm:$0xff]
          %v3348 = vld [vmem:[%s3 + $0x768] sm:$0xff]
          %v3349 = vld [vmem:[%s3 + $0x770] sm:$0xff]
          %v3350 = vld [vmem:[%s3 + $0x778] sm:$0xff]
          %v3351 = vld [vmem:[%s4] sm:$0x1]
          %v3354 = vperm.slane %v3109, 0
          %v3355 = vperm.slane %v3109, 1
          %v3356 = vperm.slane %v3109, 2
          %v3357 = vperm.slane %v3109, 3
          %v3358 = vperm.slane %v3109, 4
          %v3359 = vperm.slane %v3109, 5
          %v3360 = vperm.slane %v3109, 6
          %v3361 = vperm.slane %v3109, 7
          %v3362 = vperm.slane %v3110, 0
          %v3363 = vperm.slane %v3110, 1
          %v3364 = vperm.slane %v3110, 2
          %v3365 = vperm.slane %v3110, 3
          %v3366 = vperm.slane %v3110, 4
          %v3367 = vperm.slane %v3110, 5
          %v3368 = vperm.slane %v3110, 6
          %3384 = vmatpush.msra.mxu0 %v3126
          %3385 = vmatpush.msra.mxu0 %v3125
          %3386 = vmatpush.msra.mxu0 %v3124
          %3387 = vmatpush.msra.mxu0 %v3123
          %3388 = vmatpush.msra.mxu0 %v3122
          %3389 = vmatpush.msra.mxu0 %v3121
          %3390 = vmatpush.msra.mxu0 %v3120
          %3391 = vmatpush.msra.mxu0 %v3119
          %3392 = vmatpush.msra.mxu0 %v3118
          %3393 = vmatpush.msra.mxu0 %v3117
          %3394 = vmatpush.msra.mxu0 %v3116
          %3395 = vmatpush.msra.mxu0 %v3115
          %3396 = vmatpush.msra.mxu0 %v3114
          %3397 = vmatpush.msra.mxu0 %v3113
          %3398 = vmatpush.msra.mxu0 %v3112
          %3399 = vmatpush.msra.mxu0 %v3111
          %3400 = vmatmul.f32.gmra.mxu0 %v3354
          %v3401 = vpop.f32.mrf.mxu0
          %v3402 = vadd.f32 %v3351, %v3401
          %3403 = vdwg.mxu0
          %3404 = vmatpush.msra.mxu0 %v3142
          %3405 = vmatpush.msra.mxu0 %v3141
          %3406 = vmatpush.msra.mxu0 %v3140
          %3407 = vmatpush.msra.mxu0 %v3139
          %3408 = vmatpush.msra.mxu0 %v3138
          %3409 = vmatpush.msra.mxu0 %v3137
          %3410 = vmatpush.msra.mxu0 %v3136
          %3411 = vmatpush.msra.mxu0 %v3135
          %3412 = vmatpush.msra.mxu0 %v3134
          %3413 = vmatpush.msra.mxu0 %v3133
          %3414 = vmatpush.msra.mxu0 %v3132
          %3415 = vmatpush.msra.mxu0 %v3131
          %3416 = vmatpush.msra.mxu0 %v3130
          %3417 = vmatpush.msra.mxu0 %v3129
          %3418 = vmatpush.msra.mxu0 %v3128
          %3419 = vmatpush.msra.mxu0 %v3127
          %3420 = vmatmul.f32.gmra.mxu0 %v3355
          %v3421 = vpop.f32.mrf.mxu0
          %v3422 = vadd.f32 %v3402, %v3421
          %3423 = vdwg.mxu0
          %3424 = vmatpush.msra.mxu0 %v3158
          %3425 = vmatpush.msra.mxu0 %v3157
          %3426 = vmatpush.msra.mxu0 %v3156
          %3427 = vmatpush.msra.mxu0 %v3155
          %3428 = vmatpush.msra.mxu0 %v3154
          %3429 = vmatpush.msra.mxu0 %v3153
          %3430 = vmatpush.msra.mxu0 %v3152
          %3431 = vmatpush.msra.mxu0 %v3151
          %3432 = vmatpush.msra.mxu0 %v3150
          %3433 = vmatpush.msra.mxu0 %v3149
          %3434 = vmatpush.msra.mxu0 %v3148
          %3435 = vmatpush.msra.mxu0 %v3147
          %3436 = vmatpush.msra.mxu0 %v3146
          %3437 = vmatpush.msra.mxu0 %v3145
          %3438 = vmatpush.msra.mxu0 %v3144
          %3439 = vmatpush.msra.mxu0 %v3143
          %3440 = vmatmul.f32.gmra.mxu0 %v3356
          %v3441 = vpop.f32.mrf.mxu0
          %v3442 = vadd.f32 %v3422, %v3441
          %3443 = vdwg.mxu0
          %3444 = vmatpush.msra.mxu0 %v3174
          %3445 = vmatpush.msra.mxu0 %v3173
          %3446 = vmatpush.msra.mxu0 %v3172
          %3447 = vmatpush.msra.mxu0 %v3171
          %3448 = vmatpush.msra.mxu0 %v3170
          %3449 = vmatpush.msra.mxu0 %v3169
          %3450 = vmatpush.msra.mxu0 %v3168
          %3451 = vmatpush.msra.mxu0 %v3167
          %3452 = vmatpush.msra.mxu0 %v3166
          %3453 = vmatpush.msra.mxu0 %v3165
          %3454 = vmatpush.msra.mxu0 %v3164
          %3455 = vmatpush.msra.mxu0 %v3163
          %3456 = vmatpush.msra.mxu0 %v3162
          %3457 = vmatpush.msra.mxu0 %v3161
          %3458 = vmatpush.msra.mxu0 %v3160
          %3459 = vmatpush.msra.mxu0 %v3159
          %3460 = vmatmul.f32.gmra.mxu0 %v3357
          %v3461 = vpop.f32.mrf.mxu0
          %v3462 = vadd.f32 %v3442, %v3461
          %3463 = vdwg.mxu0
          %3464 = vmatpush.msra.mxu0 %v3190
          %3465 = vmatpush.msra.mxu0 %v3189
          %3466 = vmatpush.msra.mxu0 %v3188
          %3467 = vmatpush.msra.mxu0 %v3187
          %3468 = vmatpush.msra.mxu0 %v3186
          %3469 = vmatpush.msra.mxu0 %v3185
          %3470 = vmatpush.msra.mxu0 %v3184
          %3471 = vmatpush.msra.mxu0 %v3183
          %3472 = vmatpush.msra.mxu0 %v3182
          %3473 = vmatpush.msra.mxu0 %v3181
          %3474 = vmatpush.msra.mxu0 %v3180
          %3475 = vmatpush.msra.mxu0 %v3179
          %3476 = vmatpush.msra.mxu0 %v3178
          %3477 = vmatpush.msra.mxu0 %v3177
          %3478 = vmatpush.msra.mxu0 %v3176
          %3479 = vmatpush.msra.mxu0 %v3175
          %3480 = vmatmul.f32.gmra.mxu0 %v3358
          %v3481 = vpop.f32.mrf.mxu0
          %v3482 = vadd.f32 %v3462, %v3481
          %3483 = vdwg.mxu0
          %3484 = vmatpush.msra.mxu0 %v3206
          %3485 = vmatpush.msra.mxu0 %v3205
          %3486 = vmatpush.msra.mxu0 %v3204
          %3487 = vmatpush.msra.mxu0 %v3203
          %3488 = vmatpush.msra.mxu0 %v3202
          %3489 = vmatpush.msra.mxu0 %v3201
          %3490 = vmatpush.msra.mxu0 %v3200
          %3491 = vmatpush.msra.mxu0 %v3199
          %3492 = vmatpush.msra.mxu0 %v3198
          %3493 = vmatpush.msra.mxu0 %v3197
          %3494 = vmatpush.msra.mxu0 %v3196
          %3495 = vmatpush.msra.mxu0 %v3195
          %3496 = vmatpush.msra.mxu0 %v3194
          %3497 = vmatpush.msra.mxu0 %v3193
          %3498 = vmatpush.msra.mxu0 %v3192
          %3499 = vmatpush.msra.mxu0 %v3191
          %3500 = vmatmul.f32.gmra.mxu0 %v3359
          %v3501 = vpop.f32.mrf.mxu0
          %v3502 = vadd.f32 %v3482, %v3501
          %3503 = vdwg.mxu0
          %3504 = vmatpush.msra.mxu0 %v3222
          %3505 = vmatpush.msra.mxu0 %v3221
          %3506 = vmatpush.msra.mxu0 %v3220
          %3507 = vmatpush.msra.mxu0 %v3219
          %3508 = vmatpush.msra.mxu0 %v3218
          %3509 = vmatpush.msra.mxu0 %v3217
          %3510 = vmatpush.msra.mxu0 %v3216
          %3511 = vmatpush.msra.mxu0 %v3215
          %3512 = vmatpush.msra.mxu0 %v3214
          %3513 = vmatpush.msra.mxu0 %v3213
          %3514 = vmatpush.msra.mxu0 %v3212
          %3515 = vmatpush.msra.mxu0 %v3211
          %3516 = vmatpush.msra.mxu0 %v3210
          %3517 = vmatpush.msra.mxu0 %v3209
          %3518 = vmatpush.msra.mxu0 %v3208
          %3519 = vmatpush.msra.mxu0 %v3207
          %3520 = vmatmul.f32.gmra.mxu0 %v3360
          %v3521 = vpop.f32.mrf.mxu0
          %v3522 = vadd.f32 %v3502, %v3521
          %3523 = vdwg.mxu0
          %3524 = vmatpush.msra.mxu0 %v3238
          %3525 = vmatpush.msra.mxu0 %v3237
          %3526 = vmatpush.msra.mxu0 %v3236
          %3527 = vmatpush.msra.mxu0 %v3235
          %3528 = vmatpush.msra.mxu0 %v3234
          %3529 = vmatpush.msra.mxu0 %v3233
          %3530 = vmatpush.msra.mxu0 %v3232
          %3531 = vmatpush.msra.mxu0 %v3231
          %3532 = vmatpush.msra.mxu0 %v3230
          %3533 = vmatpush.msra.mxu0 %v3229
          %3534 = vmatpush.msra.mxu0 %v3228
          %3535 = vmatpush.msra.mxu0 %v3227
          %3536 = vmatpush.msra.mxu0 %v3226
          %3537 = vmatpush.msra.mxu0 %v3225
          %3538 = vmatpush.msra.mxu0 %v3224
          %3539 = vmatpush.msra.mxu0 %v3223
          %3540 = vmatmul.f32.gmra.mxu0 %v3361
          %v3541 = vpop.f32.mrf.mxu0
          %v3542 = vadd.f32 %v3522, %v3541
          %3543 = vdwg.mxu0
          %3544 = vmatpush.msra.mxu0 %v3254
          %3545 = vmatpush.msra.mxu0 %v3253
          %3546 = vmatpush.msra.mxu0 %v3252
          %3547 = vmatpush.msra.mxu0 %v3251
          %3548 = vmatpush.msra.mxu0 %v3250
          %3549 = vmatpush.msra.mxu0 %v3249
          %3550 = vmatpush.msra.mxu0 %v3248
          %3551 = vmatpush.msra.mxu0 %v3247
          %3552 = vmatpush.msra.mxu0 %v3246
          %3553 = vmatpush.msra.mxu0 %v3245
          %3554 = vmatpush.msra.mxu0 %v3244
          %3555 = vmatpush.msra.mxu0 %v3243
          %3556 = vmatpush.msra.mxu0 %v3242
          %3557 = vmatpush.msra.mxu0 %v3241
          %3558 = vmatpush.msra.mxu0 %v3240
          %3559 = vmatpush.msra.mxu0 %v3239
          %3560 = vmatmul.f32.gmra.mxu0 %v3362
          %v3561 = vpop.f32.mrf.mxu0
          %v3562 = vadd.f32 %v3542, %v3561
          %3563 = vdwg.mxu0
          %3564 = vmatpush.msra.mxu0 %v3270
          %3565 = vmatpush.msra.mxu0 %v3269
          %3566 = vmatpush.msra.mxu0 %v3268
          %3567 = vmatpush.msra.mxu0 %v3267
          %3568 = vmatpush.msra.mxu0 %v3266
          %3569 = vmatpush.msra.mxu0 %v3265
          %3570 = vmatpush.msra.mxu0 %v3264
          %3571 = vmatpush.msra.mxu0 %v3263
          %3572 = vmatpush.msra.mxu0 %v3262
          %3573 = vmatpush.msra.mxu0 %v3261
          %3574 = vmatpush.msra.mxu0 %v3260
          %3575 = vmatpush.msra.mxu0 %v3259
          %3576 = vmatpush.msra.mxu0 %v3258
          %3577 = vmatpush.msra.mxu0 %v3257
          %3578 = vmatpush.msra.mxu0 %v3256
          %3579 = vmatpush.msra.mxu0 %v3255
          %3580 = vmatmul.f32.gmra.mxu0 %v3363
          %v3581 = vpop.f32.mrf.mxu0
          %v3582 = vadd.f32 %v3562, %v3581
          %3583 = vdwg.mxu0
          %3584 = vmatpush.msra.mxu0 %v3286
          %3585 = vmatpush.msra.mxu0 %v3285
          %3586 = vmatpush.msra.mxu0 %v3284
          %3587 = vmatpush.msra.mxu0 %v3283
          %3588 = vmatpush.msra.mxu0 %v3282
          %3589 = vmatpush.msra.mxu0 %v3281
          %3590 = vmatpush.msra.mxu0 %v3280
          %3591 = vmatpush.msra.mxu0 %v3279
          %3592 = vmatpush.msra.mxu0 %v3278
          %3593 = vmatpush.msra.mxu0 %v3277
          %3594 = vmatpush.msra.mxu0 %v3276
          %3595 = vmatpush.msra.mxu0 %v3275
          %3596 = vmatpush.msra.mxu0 %v3274
          %3597 = vmatpush.msra.mxu0 %v3273
          %3598 = vmatpush.msra.mxu0 %v3272
          %3599 = vmatpush.msra.mxu0 %v3271
          %3600 = vmatmul.f32.gmra.mxu0 %v3364
          %v3601 = vpop.f32.mrf.mxu0
          %v3602 = vadd.f32 %v3582, %v3601
          %3603 = vdwg.mxu0
          %3604 = vmatpush.msra.mxu0 %v3302
          %3605 = vmatpush.msra.mxu0 %v3301
          %3606 = vmatpush.msra.mxu0 %v3300
          %3607 = vmatpush.msra.mxu0 %v3299
          %3608 = vmatpush.msra.mxu0 %v3298
          %3609 = vmatpush.msra.mxu0 %v3297
          %3610 = vmatpush.msra.mxu0 %v3296
          %3611 = vmatpush.msra.mxu0 %v3295
          %3612 = vmatpush.msra.mxu0 %v3294
          %3613 = vmatpush.msra.mxu0 %v3293
          %3614 = vmatpush.msra.mxu0 %v3292
          %3615 = vmatpush.msra.mxu0 %v3291
          %3616 = vmatpush.msra.mxu0 %v3290
          %3617 = vmatpush.msra.mxu0 %v3289
          %3618 = vmatpush.msra.mxu0 %v3288
          %3619 = vmatpush.msra.mxu0 %v3287
          %3620 = vmatmul.f32.gmra.mxu0 %v3365
          %v3621 = vpop.f32.mrf.mxu0
          %v3622 = vadd.f32 %v3602, %v3621
          %3623 = vdwg.mxu0
          %3624 = vmatpush.msra.mxu0 %v3318
          %3625 = vmatpush.msra.mxu0 %v3317
          %3626 = vmatpush.msra.mxu0 %v3316
          %3627 = vmatpush.msra.mxu0 %v3315
          %3628 = vmatpush.msra.mxu0 %v3314
          %3629 = vmatpush.msra.mxu0 %v3313
          %3630 = vmatpush.msra.mxu0 %v3312
          %3631 = vmatpush.msra.mxu0 %v3311
          %3632 = vmatpush.msra.mxu0 %v3310
          %3633 = vmatpush.msra.mxu0 %v3309
          %3634 = vmatpush.msra.mxu0 %v3308
          %3635 = vmatpush.msra.mxu0 %v3307
          %3636 = vmatpush.msra.mxu0 %v3306
          %3637 = vmatpush.msra.mxu0 %v3305
          %3638 = vmatpush.msra.mxu0 %v3304
          %3639 = vmatpush.msra.mxu0 %v3303
          %3640 = vmatmul.f32.gmra.mxu0 %v3366
          %v3641 = vpop.f32.mrf.mxu0
          %v3642 = vadd.f32 %v3622, %v3641
          %3643 = vdwg.mxu0
          %3644 = vmatpush.msra.mxu0 %v3334
          %3645 = vmatpush.msra.mxu0 %v3333
          %3646 = vmatpush.msra.mxu0 %v3332
          %3647 = vmatpush.msra.mxu0 %v3331
          %3648 = vmatpush.msra.mxu0 %v3330
          %3649 = vmatpush.msra.mxu0 %v3329
          %3650 = vmatpush.msra.mxu0 %v3328
          %3651 = vmatpush.msra.mxu0 %v3327
          %3652 = vmatpush.msra.mxu0 %v3326
          %3653 = vmatpush.msra.mxu0 %v3325
          %3654 = vmatpush.msra.mxu0 %v3324
          %3655 = vmatpush.msra.mxu0 %v3323
          %3656 = vmatpush.msra.mxu0 %v3322
          %3657 = vmatpush.msra.mxu0 %v3321
          %3658 = vmatpush.msra.mxu0 %v3320
          %3659 = vmatpush.msra.mxu0 %v3319
          %3660 = vmatmul.f32.gmra.mxu0 %v3367
          %v3661 = vpop.f32.mrf.mxu0
          %v3662 = vadd.f32 %v3642, %v3661
          %3663 = vdwg.mxu0
          %3664 = vmatpush.msra.mxu0 %v3350
          %3665 = vmatpush.msra.mxu0 %v3349
          %3666 = vmatpush.msra.mxu0 %v3348
          %3667 = vmatpush.msra.mxu0 %v3347
          %3668 = vmatpush.msra.mxu0 %v3346
          %3669 = vmatpush.msra.mxu0 %v3345
          %3670 = vmatpush.msra.mxu0 %v3344
          %3671 = vmatpush.msra.mxu0 %v3343
          %3672 = vmatpush.msra.mxu0 %v3342
          %3673 = vmatpush.msra.mxu0 %v3341
          %3674 = vmatpush.msra.mxu0 %v3340
          %3675 = vmatpush.msra.mxu0 %v3339
          %3676 = vmatpush.msra.mxu0 %v3338
          %3677 = vmatpush.msra.mxu0 %v3337
          %3678 = vmatpush.msra.mxu0 %v3336
          %3679 = vmatpush.msra.mxu0 %v3335
          %3680 = vmatmul.f32.gmra.mxu0 %v3368
          %v3681 = vpop.f32.mrf.mxu0
          %v3682 = vadd.f32 %v3662, %v3681
          %3683 = vdwg.mxu0
          %3684 = vst [vmem:[%s239] sm:$0x1] %v3682
        $region48: #{ensemble_forward_impl.1} parent=39 // pred_fallthru
          _
        %s3685 = sand.u32 %s151, 1
        %s3686 = scalar_lea.sflag [#allocation4], %s3685
        %s3687 = sand.u32 %s151, 1
        %s3688 = scalar_lea.vmem [#allocation3], %s3687
        // Predicated region
        $region49: #{ensemble_forward_impl.1} parent=39 // pred_check
          %p3689 = pneg %p161
        $region50: #{ensemble_forward_impl.1} parent=39 // pred_check_branch
          %3691 = sbr.rel (%p3689) target = $region52
        $region51: #{ensemble_forward_impl.1} parent=39 // pred_region
          %3693 = vsyncadd %s3686, 0
          %s3694 = scalar_lea.hbm %s5, %s23
          %s3696 = sshll.u32 %s3688, 4
          %s3697 = int_to_ptr.vmem [resolvable:$true] %s3696
          %s3698 = sshll.u32 %s3694, 4
          %s3699 = int_to_ptr.hbm [resolvable:$true] %s3698
          %3701 = dma.vmem_to_hbm [thread:$0]  %s3697, 16, %s3699, %s3686
        $region52: #{ensemble_forward_impl.1} parent=39 // pred_fallthru
          _
      $region40: #{ensemble_forward_impl.1} parent=5 // pred_fallthru
        _
      %p3702 = scmp.le.s32.totalorder 2, %s14
      // Predicated region
      $region53: #{ensemble_forward_impl.1} parent=5 // pred_check
        %p3703 = pneg %p3702
      $region54: #{ensemble_forward_impl.1} parent=5 // pred_check_branch
        %3705 = sbr.rel (%p3703) target = $region56
      $region55: #{ensemble_forward_impl.1} parent=5 // pred_region
        %s3706 = ssub.s32 %s14, 2
        // Predicated region
        $region57: #{ensemble_forward_impl.1} parent=55 // pred_check
          %p3707 = pneg %p167
        $region58: #{ensemble_forward_impl.1} parent=55 // pred_check_branch
          %3709 = sbr.rel (%p3707) target = $region60
        $region59: #{ensemble_forward_impl.1} parent=55 // pred_region
          %s3710 = sand.u32 %s152, 1
          %s3711 = scalar_lea.sflag [#allocation4], %s3710
          %s3712 = sand.u32 %s152, 1
          %s3713 = scalar_lea.vmem [#allocation3], %s3712
          %3715 = dma.done %s3711, 16
        $region60: #{ensemble_forward_impl.1} parent=55 // pred_fallthru
          _
      $region56: #{ensemble_forward_impl.1} parent=5 // pred_fallthru
        _
    $region6: #{ensemble_forward_impl.1} parent=1 // loop_footer
      %s18 = sadd.s32 1, %s14
    $region7: #{ensemble_forward_impl.1} parent=1 // loop_footer_branch
      %13 = sbr.rel target = $region3
    $region8: #{ensemble_forward_impl.1} parent=1 // loop_exit
      _
    %3716 = vsyncpa [#allocation4], 1
    %s3717 = scalar_lea.sflag [#allocation4], 1
    %3718 = vsyncpa %s3717, 1

</llo_original>
